<compile_context>
chip_gen: v7x
topology: tpu7x:2x2x1
jax: 0.10.0
libtpu: 0.0.40
codegen_flags: <defaults>
</compile_context>

<pallas_src>
import functools

import jax
import jax.numpy as jnp
from jax import lax
from jax.experimental import pallas as pl
from jax.experimental.pallas import tpu as pltpu


def _round_up(a, b):
    return (a + b - 1) // b * b


# ----------------------------------------------------------------------------
# Fused Pallas kernel (one batch element per grid step)
# ----------------------------------------------------------------------------
def _rdb5c_kernel(x_ref, mask_ref, w1_ref, w2_ref, w3_ref, w4_ref, w5_ref,
                  b1_ref, b2_ref, b3_ref, b4_ref, b5_ref, o_ref, s_ref,
                  *, nc_p, gc_p, W, HWp, neg_slope, res_scale):
    """
    x_ref    : (1, nc_p, HWp)  f32   channels on sublanes, flat spatial on lanes
    mask_ref : (9, HWp)        f32   0/1 border masks, one row per 3x3 tap
    wX_ref   : (CoutX_p, 9*CinX_p) bf16  weights, K ordered [slab, tap, channel]
    bX_ref   : (CoutX_p, 1)    f32   biases
    o_ref    : (1, nc_p, HWp)
    s_ref    : (9*(nc_p+4*gc_p), HWp) bf16 scratch of shifted dense features
    """
    taps = [(dy, dx) for dy in (-1, 0, 1) for dx in (-1, 0, 1)]

    # Hoist the 8 border-mask loads: loaded once, reused across all 5 slabs.
    masks = [None if t == 4 else mask_ref[t:t + 1, :] for t in range(9)]

    def scatter_shifts(feat, base_row):
        # feat: (C, HWp) f32.  Write its 9 zero-masked spatial shifts into
        # s_ref rows [base_row, base_row + 9*C) as bf16, tap-major /
        # channel-minor (matches the packed weight layout).
        C = feat.shape[0]
        for t, (dy, dx) in enumerate(taps):
            off = dy * W + dx
            shift = (-off) % HWp          # out[:, p] = feat[:, (p + off) % HWp]
            if shift == 0:
                sh = feat
            else:
                sh = pltpu.roll(feat, shift, axis=1)   # XLU lane rotate
            if not (dy == 0 and dx == 0):
                sh = sh * masks[t]         # zero out-of-image taps (f32 VPU)
            s_ref[base_row + t * C: base_row + (t + 1) * C, :] = (
                sh.astype(s_ref.dtype))

    def conv(w_ref, b_ref, k_rows, apply_act):
        # One MXU matmul: (Cout, 9*Cin) x (9*Cin, HWp), bf16 in / f32 accum.
        acc = jnp.dot(w_ref[...], s_ref[0:k_rows, :],
                      preferred_element_type=jnp.float32)
        acc = acc + b_ref[...]
        if apply_act:
            acc = jnp.where(acc >= 0.0, acc, acc * neg_slope)
        return acc

    x = x_ref[0].astype(jnp.float32)            # (nc_p, HWp)
    scatter_shifts(x, 0)

    c = nc_p
    x1 = conv(w1_ref, b1_ref, 9 * c, True)
    scatter_shifts(x1, 9 * c); c += gc_p
    x2 = conv(w2_ref, b2_ref, 9 * c, True)
    scatter_shifts(x2, 9 * c); c += gc_p
    x3 = conv(w3_ref, b3_ref, 9 * c, True)
    scatter_shifts(x3, 9 * c); c += gc_p
    x4 = conv(w4_ref, b4_ref, 9 * c, True)
    scatter_shifts(x4, 9 * c); c += gc_p
    x5 = conv(w5_ref, b5_ref, 9 * c, False)

    o_ref[0] = (x5 * res_scale + x).astype(o_ref.dtype)


# ----------------------------------------------------------------------------
# Host-side helpers: weight packing (with channel padding) + border masks
# ----------------------------------------------------------------------------
def _pack_weight(w_oihw, nc, gc, nc_p, gc_p, cout_p):
    """(O, Cin, 3, 3) OIHW weight -> (cout_p, 9*sum(padded slab sizes)) bf16.

    Contraction axis ordered [dense slab (x, x1, x2, ...), tap (kh,kw),
    channel-in-slab], matching the s_ref layout written by `scatter_shifts`.
    Per-slab channel counts are zero-padded to nc_p / gc_p; output channels
    zero-padded to cout_p."""
    O, Cin = w_oihw.shape[0], w_oihw.shape[1]
    n_extra = (Cin - nc) // gc
    sizes = [(nc, nc_p)] + [(gc, gc_p)] * n_extra
    pieces, start = [], 0
    for s, s_p in sizes:
        p = w_oihw[:, start:start + s, :, :]              # (O, s, 3, 3)
        p = jnp.transpose(p, (0, 2, 3, 1))                # (O, 3, 3, s)
        p = jnp.pad(p, ((0, 0), (0, 0), (0, 0), (0, s_p - s)))
        pieces.append(p.reshape(O, 9 * s_p))              # k = (kh*3+kw)*s_p + c
        start += s
    wk = jnp.concatenate(pieces, axis=1)
    wk = jnp.pad(wk, ((0, cout_p - O), (0, 0)))
    return wk.astype(jnp.bfloat16)


def _border_masks(H, W, HWp):
    """(9, HWp) 0/1 masks: mask[t, h*W+w] == 1 iff (h+dy, w+dx) is in-image.
    Lane-pad region is 0."""
    hh = jnp.repeat(jnp.arange(H), W)
    ww = jnp.tile(jnp.arange(W), H)
    rows = []
    for dy in (-1, 0, 1):
        for dx in (-1, 0, 1):
            rows.append((hh + dy >= 0) & (hh + dy < H) &
                        (ww + dx >= 0) & (ww + dx < W))
    m = jnp.stack(rows, axis=0).astype(jnp.float32)        # (9, H*W)
    return jnp.pad(m, ((0, 0), (0, HWp - H * W)))


# ----------------------------------------------------------------------------
# Forward wrapper (NCHW in -> NCHW out, like the PyTorch module)
# ----------------------------------------------------------------------------
def rdb5c_forward(x_nchw, params):
    N, nc, H, W = x_nchw.shape
    gc = params["w1"].shape[0]
    HW = H * W

    SUB = 16                               # bf16 sublane packing
    nc_p = _round_up(nc, SUB)
    gc_p = _round_up(gc, SUB)
    HWp = _round_up(HW, 128)               # lane-dense stores
    k_total = 9 * (nc_p + 4 * gc_p)

    # Alignment padding (no-op for aligned production shapes, e.g. nc=64, gc=32).
    x = x_nchw.reshape(N, nc, HW)
    x = jnp.pad(x, ((0, 0), (0, nc_p - nc), (0, HWp - HW)))

    mask = _border_masks(H, W, HWp)
    ws, bs = [], []
    for i in range(1, 6):
        cout = nc if i == 5 else gc
        cout_p = nc_p if i == 5 else gc_p
        ws.append(_pack_weight(params[f"w{i}"], nc, gc, nc_p, gc_p, cout_p))
        b = params[f"b{i}"].astype(jnp.float32)
        bs.append(jnp.pad(b, (0, cout_p - cout)).reshape(cout_p, 1))

    kernel = functools.partial(_rdb5c_kernel, nc_p=nc_p, gc_p=gc_p, W=W,
                               HWp=HWp, neg_slope=0.2, res_scale=0.2)

    in_specs = [pl.BlockSpec((1, nc_p, HWp), lambda n: (n, 0, 0)),
                pl.BlockSpec((9, HWp), lambda n: (0, 0))]
    in_specs += [pl.BlockSpec(w.shape, lambda n: (0, 0)) for w in ws]
    in_specs += [pl.BlockSpec(b.shape, lambda n: (0, 0)) for b in bs]

    # Cost hint for XLA's scheduler (matmul flops dominate; transcendentals 0).
    cins = [nc_p + i * gc_p for i in range(5)]
    couts = [gc_p] * 4 + [nc_p]
    flops = 2 * N * HWp * 9 * sum(ci * co for ci, co in zip(cins, couts))
    w_bytes = sum(int(w.size) * 2 for w in ws)
    b_bytes = sum(int(b.size) * 4 for b in bs)
    io_bytes = 2 * N * nc_p * HWp * 4 + 16 * HWp * 4
    cost = pl.CostEstimate(flops=int(flops), transcendentals=0,
                           bytes_accessed=int(io_bytes + w_bytes + b_bytes))

    # VMEM budget: bf16 scratch + double-buffered x/out blocks + resident params.
    need = (k_total * HWp * 2                       # s_ref (bf16)
            + 2 * 2 * nc_p * HWp * 4                # x / out blocks, 2-deep
            + 2 * (w_bytes + b_bytes + 16 * HWp * 4))
    try:
        vmem_cap = int(pltpu.get_tpu_info().vmem_capacity_bytes)  # 64M v7x / 128M v5e,v6e
    except Exception:
        vmem_cap = 64 << 20
    vmem_limit = int(min(max(int(1.4 * need) + (8 << 20), 32 << 20),
                         int(0.9 * vmem_cap)))

    out = pl.pallas_call(
        kernel,
        out_shape=jax.ShapeDtypeStruct((N, nc_p, HWp), x_nchw.dtype),
        grid=(N,),
        in_specs=in_specs,
        out_specs=pl.BlockSpec((1, nc_p, HWp), lambda n: (n, 0, 0)),
        scratch_shapes=[pltpu.VMEM((k_total, HWp), jnp.bfloat16)],
        compiler_params=pltpu.CompilerParams(
            dimension_semantics=("parallel",),
            vmem_limit_bytes=vmem_limit),
        cost_estimate=cost,
    )(x, mask, *ws, *bs)

    return out[:, :nc, :HW].reshape(N, nc, H, W)


# ----------------------------------------------------------------------------
# Parameter init (PyTorch-style OIHW) and pure-JAX f32 reference
# ----------------------------------------------------------------------------
def init_rdb5c_params(key, nc, gc):
    params = {}
    in_chs = [nc, nc + gc, nc + 2 * gc, nc + 3 * gc, nc + 4 * gc]
    out_chs = [gc, gc, gc, gc, nc]
    for i, (ci, co) in enumerate(zip(in_chs, out_chs), start=1):
        key, kw, kb = jax.random.split(key, 3)
        params[f"w{i}"] = jax.random.normal(kw, (co, ci, 3, 3),
                                            jnp.float32) * 0.05
        params[f"b{i}"] = jax.random.normal(kb, (co,), jnp.float32) * 0.05
    return params


def _ref_conv(x, w, b, apply_act):
    y = lax.conv_general_dilated(
        x, w, window_strides=(1, 1), padding="SAME",
        dimension_numbers=("NCHW", "OIHW", "NCHW"))
    y = y + b[None, :, None, None]
    if apply_act:
        y = jnp.where(y >= 0.0, y, 0.2 * y)
    return y


def rdb5c_reference(x, params):
    x1 = _ref_conv(x, params["w1"], params["b1"], True)
    x2 = _ref_conv(jnp.concatenate([x, x1], 1), params["w2"], params["b2"], True)
    x3 = _ref_conv(jnp.concatenate([x, x1, x2], 1), params["w3"], params["b3"], True)
    x4 = _ref_conv(jnp.concatenate([x, x1, x2, x3], 1), params["w4"], params["b4"], True)
    x5 = _ref_conv(jnp.concatenate([x, x1, x2, x3, x4], 1), params["w5"], params["b5"], False)
    return x5 * 0.2 + x


# ----------------------------------------------------------------------------
if __name__ == "__main__":
    nc, gc = 4, 8
    N, H, W = 2, 16, 16

    key = jax.random.PRNGKey(0)
    k_x, k_p = jax.random.split(key)
    x = jax.random.normal(k_x, (N, nc, H, W), jnp.float32)   # NCHW like PyTorch
    params = init_rdb5c_params(k_p, nc, gc)

    out = jax.block_until_ready(jax.jit(rdb5c_forward)(x, params))
    assert out.shape == (N, nc, H, W), out.shape

    ref = jax.block_until_ready(rdb5c_reference(x, params))
    max_err = float(jnp.max(jnp.abs(out - ref)))
    # bf16 MXU operands with f32 accumulation -> loosened tolerance vs f32 ref.
    assert jnp.allclose(out, ref, atol=2e-2, rtol=2e-2), max_err

    print("KERNEL_OK")
</pallas_src>

<mosaic_0001>
module attributes {stable_mosaic.version = 11 : i64} {
  func.func @_rdb5c_kernel(%arg0: i32, %arg1: memref<1x16x256xf32, #tpu.memory_space<vmem>>, %arg2: memref<9x256xf32, #tpu.memory_space<vmem>>, %arg3: memref<16x144xbf16, #tpu.memory_space<vmem>>, %arg4: memref<16x288xbf16, #tpu.memory_space<vmem>>, %arg5: memref<16x432xbf16, #tpu.memory_space<vmem>>, %arg6: memref<16x576xbf16, #tpu.memory_space<vmem>>, %arg7: memref<16x720xbf16, #tpu.memory_space<vmem>>, %arg8: memref<16x1xf32, #tpu.memory_space<vmem>>, %arg9: memref<16x1xf32, #tpu.memory_space<vmem>>, %arg10: memref<16x1xf32, #tpu.memory_space<vmem>>, %arg11: memref<16x1xf32, #tpu.memory_space<vmem>>, %arg12: memref<16x1xf32, #tpu.memory_space<vmem>>, %arg13: memref<1x16x256xf32, #tpu.memory_space<vmem>>, %arg14: memref<720x256xbf16, #tpu.memory_space<vmem>>) attributes {dimension_semantics = [#tpu.dimension_semantics<parallel>], iteration_bounds = array<i64: 2>, scalar_prefetch = 0 : i64, scratch_operands = 1 : i64, tpu.core_type = #tpu.core_type<tc>, window_params = [{transform_indices = @transform_0, window_bounds = array<i64: 1, 16, 256>}, {pipeline_mode = #tpu.pipeline_mode<synchronous>, transform_indices = @transform_1, window_bounds = array<i64: 9, 256>}, {pipeline_mode = #tpu.pipeline_mode<synchronous>, transform_indices = @transform_2, window_bounds = array<i64: 16, 144>}, {pipeline_mode = #tpu.pipeline_mode<synchronous>, transform_indices = @transform_3, window_bounds = array<i64: 16, 288>}, {pipeline_mode = #tpu.pipeline_mode<synchronous>, transform_indices = @transform_4, window_bounds = array<i64: 16, 432>}, {pipeline_mode = #tpu.pipeline_mode<synchronous>, transform_indices = @transform_5, window_bounds = array<i64: 16, 576>}, {pipeline_mode = #tpu.pipeline_mode<synchronous>, transform_indices = @transform_6, window_bounds = array<i64: 16, 720>}, {pipeline_mode = #tpu.pipeline_mode<synchronous>, transform_indices = @transform_7, window_bounds = array<i64: 16, 1>}, {pipeline_mode = #tpu.pipeline_mode<synchronous>, transform_indices = @transform_8, window_bounds = array<i64: 16, 1>}, {pipeline_mode = #tpu.pipeline_mode<synchronous>, transform_indices = @transform_9, window_bounds = array<i64: 16, 1>}, {pipeline_mode = #tpu.pipeline_mode<synchronous>, transform_indices = @transform_10, window_bounds = array<i64: 16, 1>}, {pipeline_mode = #tpu.pipeline_mode<synchronous>, transform_indices = @transform_11, window_bounds = array<i64: 16, 1>}, {transform_indices = @transform_12, window_bounds = array<i64: 1, 16, 256>}]} {
    %c0 = arith.constant 0 : index
    %c0_0 = arith.constant 0 : index
    %0 = vector.load %arg2[%c0, %c0_0] : memref<9x256xf32, #tpu.memory_space<vmem>>, vector<1x256xf32>
    %c1 = arith.constant 1 : index
    %c0_1 = arith.constant 0 : index
    %1 = vector.load %arg2[%c1, %c0_1] : memref<9x256xf32, #tpu.memory_space<vmem>>, vector<1x256xf32>
    %c2 = arith.constant 2 : index
    %c0_2 = arith.constant 0 : index
    %2 = vector.load %arg2[%c2, %c0_2] : memref<9x256xf32, #tpu.memory_space<vmem>>, vector<1x256xf32>
    %c3 = arith.constant 3 : index
    %c0_3 = arith.constant 0 : index
    %3 = vector.load %arg2[%c3, %c0_3] : memref<9x256xf32, #tpu.memory_space<vmem>>, vector<1x256xf32>
    %c5 = arith.constant 5 : index
    %c0_4 = arith.constant 0 : index
    %4 = vector.load %arg2[%c5, %c0_4] : memref<9x256xf32, #tpu.memory_space<vmem>>, vector<1x256xf32>
    %c6 = arith.constant 6 : index
    %c0_5 = arith.constant 0 : index
    %5 = vector.load %arg2[%c6, %c0_5] : memref<9x256xf32, #tpu.memory_space<vmem>>, vector<1x256xf32>
    %c7 = arith.constant 7 : index
    %c0_6 = arith.constant 0 : index
    %6 = vector.load %arg2[%c7, %c0_6] : memref<9x256xf32, #tpu.memory_space<vmem>>, vector<1x256xf32>
    %c8 = arith.constant 8 : index
    %c0_7 = arith.constant 0 : index
    %7 = vector.load %arg2[%c8, %c0_7] : memref<9x256xf32, #tpu.memory_space<vmem>>, vector<1x256xf32>
    %c0_8 = arith.constant 0 : index
    %c0_9 = arith.constant 0 : index
    %c0_10 = arith.constant 0 : index
    %8 = vector.load %arg1[%c0_8, %c0_9, %c0_10] : memref<1x16x256xf32, #tpu.memory_space<vmem>>, vector<1x16x256xf32>
    %9 = vector.shape_cast %8 : vector<1x16x256xf32> to vector<16x256xf32>
    %c17_i32 = arith.constant 17 : i32
    %10 = tpu.dynamic_rotate %9 by %c17_i32 dim 1 : vector<16x256xf32>, i32 -> vector<16x256xf32>
    %11 = vector.broadcast %0 : vector<1x256xf32> to vector<16x256xf32>
    %12 = arith.mulf %10, %11 : vector<16x256xf32>
    %13 = arith.truncf %12 : vector<16x256xf32> to vector<16x256xbf16>
    %c0_11 = arith.constant 0 : index
    %c0_12 = arith.constant 0 : index
    %14 = vector.load %arg14[%c0_11, %c0_12] : memref<720x256xbf16, #tpu.memory_space<vmem>>, vector<16x256xbf16>
    tpu.vector_store %arg14[%c0_11, %c0_12], %13 {strides = array<i32>} : memref<720x256xbf16, #tpu.memory_space<vmem>>, vector<16x256xbf16>,
    %c16_i32 = arith.constant 16 : i32
    %15 = tpu.dynamic_rotate %9 by %c16_i32 dim 1 : vector<16x256xf32>, i32 -> vector<16x256xf32>
    %16 = vector.broadcast %1 : vector<1x256xf32> to vector<16x256xf32>
    %17 = arith.mulf %15, %16 : vector<16x256xf32>
    %18 = arith.truncf %17 : vector<16x256xf32> to vector<16x256xbf16>
    %c16 = arith.constant 16 : index
    %c0_13 = arith.constant 0 : index
    %19 = vector.load %arg14[%c16, %c0_13] : memref<720x256xbf16, #tpu.memory_space<vmem>>, vector<16x256xbf16>
    tpu.vector_store %arg14[%c16, %c0_13], %18 {strides = array<i32>} : memref<720x256xbf16, #tpu.memory_space<vmem>>, vector<16x256xbf16>,
    %c15_i32 = arith.constant 15 : i32
    %20 = tpu.dynamic_rotate %9 by %c15_i32 dim 1 : vector<16x256xf32>, i32 -> vector<16x256xf32>
    %21 = vector.broadcast %2 : vector<1x256xf32> to vector<16x256xf32>
    %22 = arith.mulf %20, %21 : vector<16x256xf32>
    %23 = arith.truncf %22 : vector<16x256xf32> to vector<16x256xbf16>
    %c32 = arith.constant 32 : index
    %c0_14 = arith.constant 0 : index
    %24 = vector.load %arg14[%c32, %c0_14] : memref<720x256xbf16, #tpu.memory_space<vmem>>, vector<16x256xbf16>
    tpu.vector_store %arg14[%c32, %c0_14], %23 {strides = array<i32>} : memref<720x256xbf16, #tpu.memory_space<vmem>>, vector<16x256xbf16>,
    %c1_i32 = arith.constant 1 : i32
    %25 = tpu.dynamic_rotate %9 by %c1_i32 dim 1 : vector<16x256xf32>, i32 -> vector<16x256xf32>
    %26 = vector.broadcast %3 : vector<1x256xf32> to vector<16x256xf32>
    %27 = arith.mulf %25, %26 : vector<16x256xf32>
    %28 = arith.truncf %27 : vector<16x256xf32> to vector<16x256xbf16>
    %c48 = arith.constant 48 : index
    %c0_15 = arith.constant 0 : index
    %29 = vector.load %arg14[%c48, %c0_15] : memref<720x256xbf16, #tpu.memory_space<vmem>>, vector<16x256xbf16>
    tpu.vector_store %arg14[%c48, %c0_15], %28 {strides = array<i32>} : memref<720x256xbf16, #tpu.memory_space<vmem>>, vector<16x256xbf16>,
    %30 = arith.truncf %9 : vector<16x256xf32> to vector<16x256xbf16>
    %c64 = arith.constant 64 : index
    %c0_16 = arith.constant 0 : index
    %31 = vector.load %arg14[%c64, %c0_16] : memref<720x256xbf16, #tpu.memory_space<vmem>>, vector<16x256xbf16>
    tpu.vector_store %arg14[%c64, %c0_16], %30 {strides = array<i32>} : memref<720x256xbf16, #tpu.memory_space<vmem>>, vector<16x256xbf16>,
    %c255_i32 = arith.constant 255 : i32
    %32 = tpu.dynamic_rotate %9 by %c255_i32 dim 1 : vector<16x256xf32>, i32 -> vector<16x256xf32>
    %33 = vector.broadcast %4 : vector<1x256xf32> to vector<16x256xf32>
    %34 = arith.mulf %32, %33 : vector<16x256xf32>
    %35 = arith.truncf %34 : vector<16x256xf32> to vector<16x256xbf16>
    %c80 = arith.constant 80 : index
    %c0_17 = arith.constant 0 : index
    %36 = vector.load %arg14[%c80, %c0_17] : memref<720x256xbf16, #tpu.memory_space<vmem>>, vector<16x256xbf16>
    tpu.vector_store %arg14[%c80, %c0_17], %35 {strides = array<i32>} : memref<720x256xbf16, #tpu.memory_space<vmem>>, vector<16x256xbf16>,
    %c241_i32 = arith.constant 241 : i32
    %37 = tpu.dynamic_rotate %9 by %c241_i32 dim 1 : vector<16x256xf32>, i32 -> vector<16x256xf32>
    %38 = vector.broadcast %5 : vector<1x256xf32> to vector<16x256xf32>
    %39 = arith.mulf %37, %38 : vector<16x256xf32>
    %40 = arith.truncf %39 : vector<16x256xf32> to vector<16x256xbf16>
    %c96 = arith.constant 96 : index
    %c0_18 = arith.constant 0 : index
    %41 = vector.load %arg14[%c96, %c0_18] : memref<720x256xbf16, #tpu.memory_space<vmem>>, vector<16x256xbf16>
    tpu.vector_store %arg14[%c96, %c0_18], %40 {strides = array<i32>} : memref<720x256xbf16, #tpu.memory_space<vmem>>, vector<16x256xbf16>,
    %c240_i32 = arith.constant 240 : i32
    %42 = tpu.dynamic_rotate %9 by %c240_i32 dim 1 : vector<16x256xf32>, i32 -> vector<16x256xf32>
    %43 = vector.broadcast %6 : vector<1x256xf32> to vector<16x256xf32>
    %44 = arith.mulf %42, %43 : vector<16x256xf32>
    %45 = arith.truncf %44 : vector<16x256xf32> to vector<16x256xbf16>
    %c112 = arith.constant 112 : index
    %c0_19 = arith.constant 0 : index
    %46 = vector.load %arg14[%c112, %c0_19] : memref<720x256xbf16, #tpu.memory_space<vmem>>, vector<16x256xbf16>
    tpu.vector_store %arg14[%c112, %c0_19], %45 {strides = array<i32>} : memref<720x256xbf16, #tpu.memory_space<vmem>>, vector<16x256xbf16>,
    %c239_i32 = arith.constant 239 : i32
    %47 = tpu.dynamic_rotate %9 by %c239_i32 dim 1 : vector<16x256xf32>, i32 -> vector<16x256xf32>
    %48 = vector.broadcast %7 : vector<1x256xf32> to vector<16x256xf32>
    %49 = arith.mulf %47, %48 : vector<16x256xf32>
    %50 = arith.truncf %49 : vector<16x256xf32> to vector<16x256xbf16>
    %c128 = arith.constant 128 : index
    %c0_20 = arith.constant 0 : index
    %51 = vector.load %arg14[%c128, %c0_20] : memref<720x256xbf16, #tpu.memory_space<vmem>>, vector<16x256xbf16>
    tpu.vector_store %arg14[%c128, %c0_20], %50 {strides = array<i32>} : memref<720x256xbf16, #tpu.memory_space<vmem>>, vector<16x256xbf16>,
    %c0_21 = arith.constant 0 : index
    %c0_22 = arith.constant 0 : index
    %52 = vector.load %arg3[%c0_21, %c0_22] : memref<16x144xbf16, #tpu.memory_space<vmem>>, vector<16x144xbf16>
    %c0_23 = arith.constant 0 : index
    %c0_24 = arith.constant 0 : index
    %53 = vector.load %arg14[%c0_23, %c0_24] : memref<720x256xbf16, #tpu.memory_space<vmem>>, vector<144x256xbf16>
    %cst = arith.constant dense<0.000000e+00> : vector<16x256xf32>
    %54 = tpu.matmul %52, %53, %cst {dimension_numbers = #tpu.dot_dimension_numbers<[1], [0], [0], [1], [0, 0, 1, 1], [], []>} : vector<16x144xbf16>, vector<144x256xbf16>, vector<16x256xf32> -> vector<16x256xf32>
    %c0_25 = arith.constant 0 : index
    %c0_26 = arith.constant 0 : index
    %55 = vector.load %arg8[%c0_25, %c0_26] : memref<16x1xf32, #tpu.memory_space<vmem>>, vector<16x1xf32>
    %56 = vector.broadcast %55 : vector<16x1xf32> to vector<16x256xf32>
    %57 = arith.addf %54, %56 : vector<16x256xf32>
    %cst_27 = arith.constant 0.000000e+00 : f32
    %58 = vector.broadcast %cst_27 : f32 to vector<16x256xf32>
    %59 = arith.cmpf oge, %57, %58 : vector<16x256xf32>
    %cst_28 = arith.constant 2.000000e-01 : f32
    %60 = vector.broadcast %cst_28 : f32 to vector<16x256xf32>
    %61 = arith.mulf %57, %60 : vector<16x256xf32>
    %62 = arith.select %59, %57, %61 : vector<16x256xi1>, vector<16x256xf32>
    %c17_i32_29 = arith.constant 17 : i32
    %63 = tpu.dynamic_rotate %62 by %c17_i32_29 dim 1 : vector<16x256xf32>, i32 -> vector<16x256xf32>
    %64 = vector.broadcast %0 : vector<1x256xf32> to vector<16x256xf32>
    %65 = arith.mulf %63, %64 : vector<16x256xf32>
    %66 = arith.truncf %65 : vector<16x256xf32> to vector<16x256xbf16>
    %c144 = arith.constant 144 : index
    %c0_30 = arith.constant 0 : index
    %67 = vector.load %arg14[%c144, %c0_30] : memref<720x256xbf16, #tpu.memory_space<vmem>>, vector<16x256xbf16>
    tpu.vector_store %arg14[%c144, %c0_30], %66 {strides = array<i32>} : memref<720x256xbf16, #tpu.memory_space<vmem>>, vector<16x256xbf16>,
    %c16_i32_31 = arith.constant 16 : i32
    %68 = tpu.dynamic_rotate %62 by %c16_i32_31 dim 1 : vector<16x256xf32>, i32 -> vector<16x256xf32>
    %69 = vector.broadcast %1 : vector<1x256xf32> to vector<16x256xf32>
    %70 = arith.mulf %68, %69 : vector<16x256xf32>
    %71 = arith.truncf %70 : vector<16x256xf32> to vector<16x256xbf16>
    %c160 = arith.constant 160 : index
    %c0_32 = arith.constant 0 : index
    %72 = vector.load %arg14[%c160, %c0_32] : memref<720x256xbf16, #tpu.memory_space<vmem>>, vector<16x256xbf16>
    tpu.vector_store %arg14[%c160, %c0_32], %71 {strides = array<i32>} : memref<720x256xbf16, #tpu.memory_space<vmem>>, vector<16x256xbf16>,
    %c15_i32_33 = arith.constant 15 : i32
    %73 = tpu.dynamic_rotate %62 by %c15_i32_33 dim 1 : vector<16x256xf32>, i32 -> vector<16x256xf32>
    %74 = vector.broadcast %2 : vector<1x256xf32> to vector<16x256xf32>
    %75 = arith.mulf %73, %74 : vector<16x256xf32>
    %76 = arith.truncf %75 : vector<16x256xf32> to vector<16x256xbf16>
    %c176 = arith.constant 176 : index
    %c0_34 = arith.constant 0 : index
    %77 = vector.load %arg14[%c176, %c0_34] : memref<720x256xbf16, #tpu.memory_space<vmem>>, vector<16x256xbf16>
    tpu.vector_store %arg14[%c176, %c0_34], %76 {strides = array<i32>} : memref<720x256xbf16, #tpu.memory_space<vmem>>, vector<16x256xbf16>,
    %c1_i32_35 = arith.constant 1 : i32
    %78 = tpu.dynamic_rotate %62 by %c1_i32_35 dim 1 : vector<16x256xf32>, i32 -> vector<16x256xf32>
    %79 = vector.broadcast %3 : vector<1x256xf32> to vector<16x256xf32>
    %80 = arith.mulf %78, %79 : vector<16x256xf32>
    %81 = arith.truncf %80 : vector<16x256xf32> to vector<16x256xbf16>
    %c192 = arith.constant 192 : index
    %c0_36 = arith.constant 0 : index
    %82 = vector.load %arg14[%c192, %c0_36] : memref<720x256xbf16, #tpu.memory_space<vmem>>, vector<16x256xbf16>
    tpu.vector_store %arg14[%c192, %c0_36], %81 {strides = array<i32>} : memref<720x256xbf16, #tpu.memory_space<vmem>>, vector<16x256xbf16>,
    %83 = arith.truncf %62 : vector<16x256xf32> to vector<16x256xbf16>
    %c208 = arith.constant 208 : index
    %c0_37 = arith.constant 0 : index
    %84 = vector.load %arg14[%c208, %c0_37] : memref<720x256xbf16, #tpu.memory_space<vmem>>, vector<16x256xbf16>
    tpu.vector_store %arg14[%c208, %c0_37], %83 {strides = array<i32>} : memref<720x256xbf16, #tpu.memory_space<vmem>>, vector<16x256xbf16>,
    %c255_i32_38 = arith.constant 255 : i32
    %85 = tpu.dynamic_rotate %62 by %c255_i32_38 dim 1 : vector<16x256xf32>, i32 -> vector<16x256xf32>
    %86 = vector.broadcast %4 : vector<1x256xf32> to vector<16x256xf32>
    %87 = arith.mulf %85, %86 : vector<16x256xf32>
    %88 = arith.truncf %87 : vector<16x256xf32> to vector<16x256xbf16>
    %c224 = arith.constant 224 : index
    %c0_39 = arith.constant 0 : index
    %89 = vector.load %arg14[%c224, %c0_39] : memref<720x256xbf16, #tpu.memory_space<vmem>>, vector<16x256xbf16>
    tpu.vector_store %arg14[%c224, %c0_39], %88 {strides = array<i32>} : memref<720x256xbf16, #tpu.memory_space<vmem>>, vector<16x256xbf16>,
    %c241_i32_40 = arith.constant 241 : i32
    %90 = tpu.dynamic_rotate %62 by %c241_i32_40 dim 1 : vector<16x256xf32>, i32 -> vector<16x256xf32>
    %91 = vector.broadcast %5 : vector<1x256xf32> to vector<16x256xf32>
    %92 = arith.mulf %90, %91 : vector<16x256xf32>
    %93 = arith.truncf %92 : vector<16x256xf32> to vector<16x256xbf16>
    %c240 = arith.constant 240 : index
    %c0_41 = arith.constant 0 : index
    %94 = vector.load %arg14[%c240, %c0_41] : memref<720x256xbf16, #tpu.memory_space<vmem>>, vector<16x256xbf16>
    tpu.vector_store %arg14[%c240, %c0_41], %93 {strides = array<i32>} : memref<720x256xbf16, #tpu.memory_space<vmem>>, vector<16x256xbf16>,
    %c240_i32_42 = arith.constant 240 : i32
    %95 = tpu.dynamic_rotate %62 by %c240_i32_42 dim 1 : vector<16x256xf32>, i32 -> vector<16x256xf32>
    %96 = vector.broadcast %6 : vector<1x256xf32> to vector<16x256xf32>
    %97 = arith.mulf %95, %96 : vector<16x256xf32>
    %98 = arith.truncf %97 : vector<16x256xf32> to vector<16x256xbf16>
    %c256 = arith.constant 256 : index
    %c0_43 = arith.constant 0 : index
    %99 = vector.load %arg14[%c256, %c0_43] : memref<720x256xbf16, #tpu.memory_space<vmem>>, vector<16x256xbf16>
    tpu.vector_store %arg14[%c256, %c0_43], %98 {strides = array<i32>} : memref<720x256xbf16, #tpu.memory_space<vmem>>, vector<16x256xbf16>,
    %c239_i32_44 = arith.constant 239 : i32
    %100 = tpu.dynamic_rotate %62 by %c239_i32_44 dim 1 : vector<16x256xf32>, i32 -> vector<16x256xf32>
    %101 = vector.broadcast %7 : vector<1x256xf32> to vector<16x256xf32>
    %102 = arith.mulf %100, %101 : vector<16x256xf32>
    %103 = arith.truncf %102 : vector<16x256xf32> to vector<16x256xbf16>
    %c272 = arith.constant 272 : index
    %c0_45 = arith.constant 0 : index
    %104 = vector.load %arg14[%c272, %c0_45] : memref<720x256xbf16, #tpu.memory_space<vmem>>, vector<16x256xbf16>
    tpu.vector_store %arg14[%c272, %c0_45], %103 {strides = array<i32>} : memref<720x256xbf16, #tpu.memory_space<vmem>>, vector<16x256xbf16>,
    %c0_46 = arith.constant 0 : index
    %c0_47 = arith.constant 0 : index
    %105 = vector.load %arg4[%c0_46, %c0_47] : memref<16x288xbf16, #tpu.memory_space<vmem>>, vector<16x288xbf16>
    %c0_48 = arith.constant 0 : index
    %c0_49 = arith.constant 0 : index
    %106 = vector.load %arg14[%c0_48, %c0_49] : memref<720x256xbf16, #tpu.memory_space<vmem>>, vector<288x256xbf16>
    %cst_50 = arith.constant dense<0.000000e+00> : vector<16x256xf32>
    %107 = tpu.matmul %105, %106, %cst_50 {dimension_numbers = #tpu.dot_dimension_numbers<[1], [0], [0], [1], [0, 0, 1, 1], [], []>} : vector<16x288xbf16>, vector<288x256xbf16>, vector<16x256xf32> -> vector<16x256xf32>
    %c0_51 = arith.constant 0 : index
    %c0_52 = arith.constant 0 : index
    %108 = vector.load %arg9[%c0_51, %c0_52] : memref<16x1xf32, #tpu.memory_space<vmem>>, vector<16x1xf32>
    %109 = vector.broadcast %108 : vector<16x1xf32> to vector<16x256xf32>
    %110 = arith.addf %107, %109 : vector<16x256xf32>
    %cst_53 = arith.constant 0.000000e+00 : f32
    %111 = vector.broadcast %cst_53 : f32 to vector<16x256xf32>
    %112 = arith.cmpf oge, %110, %111 : vector<16x256xf32>
    %cst_54 = arith.constant 2.000000e-01 : f32
    %113 = vector.broadcast %cst_54 : f32 to vector<16x256xf32>
    %114 = arith.mulf %110, %113 : vector<16x256xf32>
    %115 = arith.select %112, %110, %114 : vector<16x256xi1>, vector<16x256xf32>
    %c17_i32_55 = arith.constant 17 : i32
    %116 = tpu.dynamic_rotate %115 by %c17_i32_55 dim 1 : vector<16x256xf32>, i32 -> vector<16x256xf32>
    %117 = vector.broadcast %0 : vector<1x256xf32> to vector<16x256xf32>
    %118 = arith.mulf %116, %117 : vector<16x256xf32>
    %119 = arith.truncf %118 : vector<16x256xf32> to vector<16x256xbf16>
    %c288 = arith.constant 288 : index
    %c0_56 = arith.constant 0 : index
    %120 = vector.load %arg14[%c288, %c0_56] : memref<720x256xbf16, #tpu.memory_space<vmem>>, vector<16x256xbf16>
    tpu.vector_store %arg14[%c288, %c0_56], %119 {strides = array<i32>} : memref<720x256xbf16, #tpu.memory_space<vmem>>, vector<16x256xbf16>,
    %c16_i32_57 = arith.constant 16 : i32
    %121 = tpu.dynamic_rotate %115 by %c16_i32_57 dim 1 : vector<16x256xf32>, i32 -> vector<16x256xf32>
    %122 = vector.broadcast %1 : vector<1x256xf32> to vector<16x256xf32>
    %123 = arith.mulf %121, %122 : vector<16x256xf32>
    %124 = arith.truncf %123 : vector<16x256xf32> to vector<16x256xbf16>
    %c304 = arith.constant 304 : index
    %c0_58 = arith.constant 0 : index
    %125 = vector.load %arg14[%c304, %c0_58] : memref<720x256xbf16, #tpu.memory_space<vmem>>, vector<16x256xbf16>
    tpu.vector_store %arg14[%c304, %c0_58], %124 {strides = array<i32>} : memref<720x256xbf16, #tpu.memory_space<vmem>>, vector<16x256xbf16>,
    %c15_i32_59 = arith.constant 15 : i32
    %126 = tpu.dynamic_rotate %115 by %c15_i32_59 dim 1 : vector<16x256xf32>, i32 -> vector<16x256xf32>
    %127 = vector.broadcast %2 : vector<1x256xf32> to vector<16x256xf32>
    %128 = arith.mulf %126, %127 : vector<16x256xf32>
    %129 = arith.truncf %128 : vector<16x256xf32> to vector<16x256xbf16>
    %c320 = arith.constant 320 : index
    %c0_60 = arith.constant 0 : index
    %130 = vector.load %arg14[%c320, %c0_60] : memref<720x256xbf16, #tpu.memory_space<vmem>>, vector<16x256xbf16>
    tpu.vector_store %arg14[%c320, %c0_60], %129 {strides = array<i32>} : memref<720x256xbf16, #tpu.memory_space<vmem>>, vector<16x256xbf16>,
    %c1_i32_61 = arith.constant 1 : i32
    %131 = tpu.dynamic_rotate %115 by %c1_i32_61 dim 1 : vector<16x256xf32>, i32 -> vector<16x256xf32>
    %132 = vector.broadcast %3 : vector<1x256xf32> to vector<16x256xf32>
    %133 = arith.mulf %131, %132 : vector<16x256xf32>
    %134 = arith.truncf %133 : vector<16x256xf32> to vector<16x256xbf16>
    %c336 = arith.constant 336 : index
    %c0_62 = arith.constant 0 : index
    %135 = vector.load %arg14[%c336, %c0_62] : memref<720x256xbf16, #tpu.memory_space<vmem>>, vector<16x256xbf16>
    tpu.vector_store %arg14[%c336, %c0_62], %134 {strides = array<i32>} : memref<720x256xbf16, #tpu.memory_space<vmem>>, vector<16x256xbf16>,
    %136 = arith.truncf %115 : vector<16x256xf32> to vector<16x256xbf16>
    %c352 = arith.constant 352 : index
    %c0_63 = arith.constant 0 : index
    %137 = vector.load %arg14[%c352, %c0_63] : memref<720x256xbf16, #tpu.memory_space<vmem>>, vector<16x256xbf16>
    tpu.vector_store %arg14[%c352, %c0_63], %136 {strides = array<i32>} : memref<720x256xbf16, #tpu.memory_space<vmem>>, vector<16x256xbf16>,
    %c255_i32_64 = arith.constant 255 : i32
    %138 = tpu.dynamic_rotate %115 by %c255_i32_64 dim 1 : vector<16x256xf32>, i32 -> vector<16x256xf32>
    %139 = vector.broadcast %4 : vector<1x256xf32> to vector<16x256xf32>
    %140 = arith.mulf %138, %139 : vector<16x256xf32>
    %141 = arith.truncf %140 : vector<16x256xf32> to vector<16x256xbf16>
    %c368 = arith.constant 368 : index
    %c0_65 = arith.constant 0 : index
    %142 = vector.load %arg14[%c368, %c0_65] : memref<720x256xbf16, #tpu.memory_space<vmem>>, vector<16x256xbf16>
    tpu.vector_store %arg14[%c368, %c0_65], %141 {strides = array<i32>} : memref<720x256xbf16, #tpu.memory_space<vmem>>, vector<16x256xbf16>,
    %c241_i32_66 = arith.constant 241 : i32
    %143 = tpu.dynamic_rotate %115 by %c241_i32_66 dim 1 : vector<16x256xf32>, i32 -> vector<16x256xf32>
    %144 = vector.broadcast %5 : vector<1x256xf32> to vector<16x256xf32>
    %145 = arith.mulf %143, %144 : vector<16x256xf32>
    %146 = arith.truncf %145 : vector<16x256xf32> to vector<16x256xbf16>
    %c384 = arith.constant 384 : index
    %c0_67 = arith.constant 0 : index
    %147 = vector.load %arg14[%c384, %c0_67] : memref<720x256xbf16, #tpu.memory_space<vmem>>, vector<16x256xbf16>
    tpu.vector_store %arg14[%c384, %c0_67], %146 {strides = array<i32>} : memref<720x256xbf16, #tpu.memory_space<vmem>>, vector<16x256xbf16>,
    %c240_i32_68 = arith.constant 240 : i32
    %148 = tpu.dynamic_rotate %115 by %c240_i32_68 dim 1 : vector<16x256xf32>, i32 -> vector<16x256xf32>
    %149 = vector.broadcast %6 : vector<1x256xf32> to vector<16x256xf32>
    %150 = arith.mulf %148, %149 : vector<16x256xf32>
    %151 = arith.truncf %150 : vector<16x256xf32> to vector<16x256xbf16>
    %c400 = arith.constant 400 : index
    %c0_69 = arith.constant 0 : index
    %152 = vector.load %arg14[%c400, %c0_69] : memref<720x256xbf16, #tpu.memory_space<vmem>>, vector<16x256xbf16>
    tpu.vector_store %arg14[%c400, %c0_69], %151 {strides = array<i32>} : memref<720x256xbf16, #tpu.memory_space<vmem>>, vector<16x256xbf16>,
    %c239_i32_70 = arith.constant 239 : i32
    %153 = tpu.dynamic_rotate %115 by %c239_i32_70 dim 1 : vector<16x256xf32>, i32 -> vector<16x256xf32>
    %154 = vector.broadcast %7 : vector<1x256xf32> to vector<16x256xf32>
    %155 = arith.mulf %153, %154 : vector<16x256xf32>
    %156 = arith.truncf %155 : vector<16x256xf32> to vector<16x256xbf16>
    %c416 = arith.constant 416 : index
    %c0_71 = arith.constant 0 : index
    %157 = vector.load %arg14[%c416, %c0_71] : memref<720x256xbf16, #tpu.memory_space<vmem>>, vector<16x256xbf16>
    tpu.vector_store %arg14[%c416, %c0_71], %156 {strides = array<i32>} : memref<720x256xbf16, #tpu.memory_space<vmem>>, vector<16x256xbf16>,
    %c0_72 = arith.constant 0 : index
    %c0_73 = arith.constant 0 : index
    %158 = vector.load %arg5[%c0_72, %c0_73] : memref<16x432xbf16, #tpu.memory_space<vmem>>, vector<16x432xbf16>
    %c0_74 = arith.constant 0 : index
    %c0_75 = arith.constant 0 : index
    %159 = vector.load %arg14[%c0_74, %c0_75] : memref<720x256xbf16, #tpu.memory_space<vmem>>, vector<432x256xbf16>
    %cst_76 = arith.constant dense<0.000000e+00> : vector<16x256xf32>
    %160 = tpu.matmul %158, %159, %cst_76 {dimension_numbers = #tpu.dot_dimension_numbers<[1], [0], [0], [1], [0, 0, 1, 1], [], []>} : vector<16x432xbf16>, vector<432x256xbf16>, vector<16x256xf32> -> vector<16x256xf32>
    %c0_77 = arith.constant 0 : index
    %c0_78 = arith.constant 0 : index
    %161 = vector.load %arg10[%c0_77, %c0_78] : memref<16x1xf32, #tpu.memory_space<vmem>>, vector<16x1xf32>
    %162 = vector.broadcast %161 : vector<16x1xf32> to vector<16x256xf32>
    %163 = arith.addf %160, %162 : vector<16x256xf32>
    %cst_79 = arith.constant 0.000000e+00 : f32
    %164 = vector.broadcast %cst_79 : f32 to vector<16x256xf32>
    %165 = arith.cmpf oge, %163, %164 : vector<16x256xf32>
    %cst_80 = arith.constant 2.000000e-01 : f32
    %166 = vector.broadcast %cst_80 : f32 to vector<16x256xf32>
    %167 = arith.mulf %163, %166 : vector<16x256xf32>
    %168 = arith.select %165, %163, %167 : vector<16x256xi1>, vector<16x256xf32>
    %c17_i32_81 = arith.constant 17 : i32
    %169 = tpu.dynamic_rotate %168 by %c17_i32_81 dim 1 : vector<16x256xf32>, i32 -> vector<16x256xf32>
    %170 = vector.broadcast %0 : vector<1x256xf32> to vector<16x256xf32>
    %171 = arith.mulf %169, %170 : vector<16x256xf32>
    %172 = arith.truncf %171 : vector<16x256xf32> to vector<16x256xbf16>
    %c432 = arith.constant 432 : index
    %c0_82 = arith.constant 0 : index
    %173 = vector.load %arg14[%c432, %c0_82] : memref<720x256xbf16, #tpu.memory_space<vmem>>, vector<16x256xbf16>
    tpu.vector_store %arg14[%c432, %c0_82], %172 {strides = array<i32>} : memref<720x256xbf16, #tpu.memory_space<vmem>>, vector<16x256xbf16>,
    %c16_i32_83 = arith.constant 16 : i32
    %174 = tpu.dynamic_rotate %168 by %c16_i32_83 dim 1 : vector<16x256xf32>, i32 -> vector<16x256xf32>
    %175 = vector.broadcast %1 : vector<1x256xf32> to vector<16x256xf32>
    %176 = arith.mulf %174, %175 : vector<16x256xf32>
    %177 = arith.truncf %176 : vector<16x256xf32> to vector<16x256xbf16>
    %c448 = arith.constant 448 : index
    %c0_84 = arith.constant 0 : index
    %178 = vector.load %arg14[%c448, %c0_84] : memref<720x256xbf16, #tpu.memory_space<vmem>>, vector<16x256xbf16>
    tpu.vector_store %arg14[%c448, %c0_84], %177 {strides = array<i32>} : memref<720x256xbf16, #tpu.memory_space<vmem>>, vector<16x256xbf16>,
    %c15_i32_85 = arith.constant 15 : i32
    %179 = tpu.dynamic_rotate %168 by %c15_i32_85 dim 1 : vector<16x256xf32>, i32 -> vector<16x256xf32>
    %180 = vector.broadcast %2 : vector<1x256xf32> to vector<16x256xf32>
    %181 = arith.mulf %179, %180 : vector<16x256xf32>
    %182 = arith.truncf %181 : vector<16x256xf32> to vector<16x256xbf16>
    %c464 = arith.constant 464 : index
    %c0_86 = arith.constant 0 : index
    %183 = vector.load %arg14[%c464, %c0_86] : memref<720x256xbf16, #tpu.memory_space<vmem>>, vector<16x256xbf16>
    tpu.vector_store %arg14[%c464, %c0_86], %182 {strides = array<i32>} : memref<720x256xbf16, #tpu.memory_space<vmem>>, vector<16x256xbf16>,
    %c1_i32_87 = arith.constant 1 : i32
    %184 = tpu.dynamic_rotate %168 by %c1_i32_87 dim 1 : vector<16x256xf32>, i32 -> vector<16x256xf32>
    %185 = vector.broadcast %3 : vector<1x256xf32> to vector<16x256xf32>
    %186 = arith.mulf %184, %185 : vector<16x256xf32>
    %187 = arith.truncf %186 : vector<16x256xf32> to vector<16x256xbf16>
    %c480 = arith.constant 480 : index
    %c0_88 = arith.constant 0 : index
    %188 = vector.load %arg14[%c480, %c0_88] : memref<720x256xbf16, #tpu.memory_space<vmem>>, vector<16x256xbf16>
    tpu.vector_store %arg14[%c480, %c0_88], %187 {strides = array<i32>} : memref<720x256xbf16, #tpu.memory_space<vmem>>, vector<16x256xbf16>,
    %189 = arith.truncf %168 : vector<16x256xf32> to vector<16x256xbf16>
    %c496 = arith.constant 496 : index
    %c0_89 = arith.constant 0 : index
    %190 = vector.load %arg14[%c496, %c0_89] : memref<720x256xbf16, #tpu.memory_space<vmem>>, vector<16x256xbf16>
    tpu.vector_store %arg14[%c496, %c0_89], %189 {strides = array<i32>} : memref<720x256xbf16, #tpu.memory_space<vmem>>, vector<16x256xbf16>,
    %c255_i32_90 = arith.constant 255 : i32
    %191 = tpu.dynamic_rotate %168 by %c255_i32_90 dim 1 : vector<16x256xf32>, i32 -> vector<16x256xf32>
    %192 = vector.broadcast %4 : vector<1x256xf32> to vector<16x256xf32>
    %193 = arith.mulf %191, %192 : vector<16x256xf32>
    %194 = arith.truncf %193 : vector<16x256xf32> to vector<16x256xbf16>
    %c512 = arith.constant 512 : index
    %c0_91 = arith.constant 0 : index
    %195 = vector.load %arg14[%c512, %c0_91] : memref<720x256xbf16, #tpu.memory_space<vmem>>, vector<16x256xbf16>
    tpu.vector_store %arg14[%c512, %c0_91], %194 {strides = array<i32>} : memref<720x256xbf16, #tpu.memory_space<vmem>>, vector<16x256xbf16>,
    %c241_i32_92 = arith.constant 241 : i32
    %196 = tpu.dynamic_rotate %168 by %c241_i32_92 dim 1 : vector<16x256xf32>, i32 -> vector<16x256xf32>
    %197 = vector.broadcast %5 : vector<1x256xf32> to vector<16x256xf32>
    %198 = arith.mulf %196, %197 : vector<16x256xf32>
    %199 = arith.truncf %198 : vector<16x256xf32> to vector<16x256xbf16>
    %c528 = arith.constant 528 : index
    %c0_93 = arith.constant 0 : index
    %200 = vector.load %arg14[%c528, %c0_93] : memref<720x256xbf16, #tpu.memory_space<vmem>>, vector<16x256xbf16>
    tpu.vector_store %arg14[%c528, %c0_93], %199 {strides = array<i32>} : memref<720x256xbf16, #tpu.memory_space<vmem>>, vector<16x256xbf16>,
    %c240_i32_94 = arith.constant 240 : i32
    %201 = tpu.dynamic_rotate %168 by %c240_i32_94 dim 1 : vector<16x256xf32>, i32 -> vector<16x256xf32>
    %202 = vector.broadcast %6 : vector<1x256xf32> to vector<16x256xf32>
    %203 = arith.mulf %201, %202 : vector<16x256xf32>
    %204 = arith.truncf %203 : vector<16x256xf32> to vector<16x256xbf16>
    %c544 = arith.constant 544 : index
    %c0_95 = arith.constant 0 : index
    %205 = vector.load %arg14[%c544, %c0_95] : memref<720x256xbf16, #tpu.memory_space<vmem>>, vector<16x256xbf16>
    tpu.vector_store %arg14[%c544, %c0_95], %204 {strides = array<i32>} : memref<720x256xbf16, #tpu.memory_space<vmem>>, vector<16x256xbf16>,
    %c239_i32_96 = arith.constant 239 : i32
    %206 = tpu.dynamic_rotate %168 by %c239_i32_96 dim 1 : vector<16x256xf32>, i32 -> vector<16x256xf32>
    %207 = vector.broadcast %7 : vector<1x256xf32> to vector<16x256xf32>
    %208 = arith.mulf %206, %207 : vector<16x256xf32>
    %209 = arith.truncf %208 : vector<16x256xf32> to vector<16x256xbf16>
    %c560 = arith.constant 560 : index
    %c0_97 = arith.constant 0 : index
    %210 = vector.load %arg14[%c560, %c0_97] : memref<720x256xbf16, #tpu.memory_space<vmem>>, vector<16x256xbf16>
    tpu.vector_store %arg14[%c560, %c0_97], %209 {strides = array<i32>} : memref<720x256xbf16, #tpu.memory_space<vmem>>, vector<16x256xbf16>,
    %c0_98 = arith.constant 0 : index
    %c0_99 = arith.constant 0 : index
    %211 = vector.load %arg6[%c0_98, %c0_99] : memref<16x576xbf16, #tpu.memory_space<vmem>>, vector<16x576xbf16>
    %c0_100 = arith.constant 0 : index
    %c0_101 = arith.constant 0 : index
    %212 = vector.load %arg14[%c0_100, %c0_101] : memref<720x256xbf16, #tpu.memory_space<vmem>>, vector<576x256xbf16>
    %cst_102 = arith.constant dense<0.000000e+00> : vector<16x256xf32>
    %213 = tpu.matmul %211, %212, %cst_102 {dimension_numbers = #tpu.dot_dimension_numbers<[1], [0], [0], [1], [0, 0, 1, 1], [], []>} : vector<16x576xbf16>, vector<576x256xbf16>, vector<16x256xf32> -> vector<16x256xf32>
    %c0_103 = arith.constant 0 : index
    %c0_104 = arith.constant 0 : index
    %214 = vector.load %arg11[%c0_103, %c0_104] : memref<16x1xf32, #tpu.memory_space<vmem>>, vector<16x1xf32>
    %215 = vector.broadcast %214 : vector<16x1xf32> to vector<16x256xf32>
    %216 = arith.addf %213, %215 : vector<16x256xf32>
    %cst_105 = arith.constant 0.000000e+00 : f32
    %217 = vector.broadcast %cst_105 : f32 to vector<16x256xf32>
    %218 = arith.cmpf oge, %216, %217 : vector<16x256xf32>
    %cst_106 = arith.constant 2.000000e-01 : f32
    %219 = vector.broadcast %cst_106 : f32 to vector<16x256xf32>
    %220 = arith.mulf %216, %219 : vector<16x256xf32>
    %221 = arith.select %218, %216, %220 : vector<16x256xi1>, vector<16x256xf32>
    %c17_i32_107 = arith.constant 17 : i32
    %222 = tpu.dynamic_rotate %221 by %c17_i32_107 dim 1 : vector<16x256xf32>, i32 -> vector<16x256xf32>
    %223 = vector.broadcast %0 : vector<1x256xf32> to vector<16x256xf32>
    %224 = arith.mulf %222, %223 : vector<16x256xf32>
    %225 = arith.truncf %224 : vector<16x256xf32> to vector<16x256xbf16>
    %c576 = arith.constant 576 : index
    %c0_108 = arith.constant 0 : index
    %226 = vector.load %arg14[%c576, %c0_108] : memref<720x256xbf16, #tpu.memory_space<vmem>>, vector<16x256xbf16>
    tpu.vector_store %arg14[%c576, %c0_108], %225 {strides = array<i32>} : memref<720x256xbf16, #tpu.memory_space<vmem>>, vector<16x256xbf16>,
    %c16_i32_109 = arith.constant 16 : i32
    %227 = tpu.dynamic_rotate %221 by %c16_i32_109 dim 1 : vector<16x256xf32>, i32 -> vector<16x256xf32>
    %228 = vector.broadcast %1 : vector<1x256xf32> to vector<16x256xf32>
    %229 = arith.mulf %227, %228 : vector<16x256xf32>
    %230 = arith.truncf %229 : vector<16x256xf32> to vector<16x256xbf16>
    %c592 = arith.constant 592 : index
    %c0_110 = arith.constant 0 : index
    %231 = vector.load %arg14[%c592, %c0_110] : memref<720x256xbf16, #tpu.memory_space<vmem>>, vector<16x256xbf16>
    tpu.vector_store %arg14[%c592, %c0_110], %230 {strides = array<i32>} : memref<720x256xbf16, #tpu.memory_space<vmem>>, vector<16x256xbf16>,
    %c15_i32_111 = arith.constant 15 : i32
    %232 = tpu.dynamic_rotate %221 by %c15_i32_111 dim 1 : vector<16x256xf32>, i32 -> vector<16x256xf32>
    %233 = vector.broadcast %2 : vector<1x256xf32> to vector<16x256xf32>
    %234 = arith.mulf %232, %233 : vector<16x256xf32>
    %235 = arith.truncf %234 : vector<16x256xf32> to vector<16x256xbf16>
    %c608 = arith.constant 608 : index
    %c0_112 = arith.constant 0 : index
    %236 = vector.load %arg14[%c608, %c0_112] : memref<720x256xbf16, #tpu.memory_space<vmem>>, vector<16x256xbf16>
    tpu.vector_store %arg14[%c608, %c0_112], %235 {strides = array<i32>} : memref<720x256xbf16, #tpu.memory_space<vmem>>, vector<16x256xbf16>,
    %c1_i32_113 = arith.constant 1 : i32
    %237 = tpu.dynamic_rotate %221 by %c1_i32_113 dim 1 : vector<16x256xf32>, i32 -> vector<16x256xf32>
    %238 = vector.broadcast %3 : vector<1x256xf32> to vector<16x256xf32>
    %239 = arith.mulf %237, %238 : vector<16x256xf32>
    %240 = arith.truncf %239 : vector<16x256xf32> to vector<16x256xbf16>
    %c624 = arith.constant 624 : index
    %c0_114 = arith.constant 0 : index
    %241 = vector.load %arg14[%c624, %c0_114] : memref<720x256xbf16, #tpu.memory_space<vmem>>, vector<16x256xbf16>
    tpu.vector_store %arg14[%c624, %c0_114], %240 {strides = array<i32>} : memref<720x256xbf16, #tpu.memory_space<vmem>>, vector<16x256xbf16>,
    %242 = arith.truncf %221 : vector<16x256xf32> to vector<16x256xbf16>
    %c640 = arith.constant 640 : index
    %c0_115 = arith.constant 0 : index
    %243 = vector.load %arg14[%c640, %c0_115] : memref<720x256xbf16, #tpu.memory_space<vmem>>, vector<16x256xbf16>
    tpu.vector_store %arg14[%c640, %c0_115], %242 {strides = array<i32>} : memref<720x256xbf16, #tpu.memory_space<vmem>>, vector<16x256xbf16>,
    %c255_i32_116 = arith.constant 255 : i32
    %244 = tpu.dynamic_rotate %221 by %c255_i32_116 dim 1 : vector<16x256xf32>, i32 -> vector<16x256xf32>
    %245 = vector.broadcast %4 : vector<1x256xf32> to vector<16x256xf32>
    %246 = arith.mulf %244, %245 : vector<16x256xf32>
    %247 = arith.truncf %246 : vector<16x256xf32> to vector<16x256xbf16>
    %c656 = arith.constant 656 : index
    %c0_117 = arith.constant 0 : index
    %248 = vector.load %arg14[%c656, %c0_117] : memref<720x256xbf16, #tpu.memory_space<vmem>>, vector<16x256xbf16>
    tpu.vector_store %arg14[%c656, %c0_117], %247 {strides = array<i32>} : memref<720x256xbf16, #tpu.memory_space<vmem>>, vector<16x256xbf16>,
    %c241_i32_118 = arith.constant 241 : i32
    %249 = tpu.dynamic_rotate %221 by %c241_i32_118 dim 1 : vector<16x256xf32>, i32 -> vector<16x256xf32>
    %250 = vector.broadcast %5 : vector<1x256xf32> to vector<16x256xf32>
    %251 = arith.mulf %249, %250 : vector<16x256xf32>
    %252 = arith.truncf %251 : vector<16x256xf32> to vector<16x256xbf16>
    %c672 = arith.constant 672 : index
    %c0_119 = arith.constant 0 : index
    %253 = vector.load %arg14[%c672, %c0_119] : memref<720x256xbf16, #tpu.memory_space<vmem>>, vector<16x256xbf16>
    tpu.vector_store %arg14[%c672, %c0_119], %252 {strides = array<i32>} : memref<720x256xbf16, #tpu.memory_space<vmem>>, vector<16x256xbf16>,
    %c240_i32_120 = arith.constant 240 : i32
    %254 = tpu.dynamic_rotate %221 by %c240_i32_120 dim 1 : vector<16x256xf32>, i32 -> vector<16x256xf32>
    %255 = vector.broadcast %6 : vector<1x256xf32> to vector<16x256xf32>
    %256 = arith.mulf %254, %255 : vector<16x256xf32>
    %257 = arith.truncf %256 : vector<16x256xf32> to vector<16x256xbf16>
    %c688 = arith.constant 688 : index
    %c0_121 = arith.constant 0 : index
    %258 = vector.load %arg14[%c688, %c0_121] : memref<720x256xbf16, #tpu.memory_space<vmem>>, vector<16x256xbf16>
    tpu.vector_store %arg14[%c688, %c0_121], %257 {strides = array<i32>} : memref<720x256xbf16, #tpu.memory_space<vmem>>, vector<16x256xbf16>,
    %c239_i32_122 = arith.constant 239 : i32
    %259 = tpu.dynamic_rotate %221 by %c239_i32_122 dim 1 : vector<16x256xf32>, i32 -> vector<16x256xf32>
    %260 = vector.broadcast %7 : vector<1x256xf32> to vector<16x256xf32>
    %261 = arith.mulf %259, %260 : vector<16x256xf32>
    %262 = arith.truncf %261 : vector<16x256xf32> to vector<16x256xbf16>
    %c704 = arith.constant 704 : index
    %c0_123 = arith.constant 0 : index
    %263 = vector.load %arg14[%c704, %c0_123] : memref<720x256xbf16, #tpu.memory_space<vmem>>, vector<16x256xbf16>
    tpu.vector_store %arg14[%c704, %c0_123], %262 {strides = array<i32>} : memref<720x256xbf16, #tpu.memory_space<vmem>>, vector<16x256xbf16>,
    %c0_124 = arith.constant 0 : index
    %c0_125 = arith.constant 0 : index
    %264 = vector.load %arg7[%c0_124, %c0_125] : memref<16x720xbf16, #tpu.memory_space<vmem>>, vector<16x720xbf16>
    %c0_126 = arith.constant 0 : index
    %c0_127 = arith.constant 0 : index
    %265 = vector.load %arg14[%c0_126, %c0_127] : memref<720x256xbf16, #tpu.memory_space<vmem>>, vector<720x256xbf16>
    %cst_128 = arith.constant dense<0.000000e+00> : vector<16x256xf32>
    %266 = tpu.matmul %264, %265, %cst_128 {dimension_numbers = #tpu.dot_dimension_numbers<[1], [0], [0], [1], [0, 0, 1, 1], [], []>} : vector<16x720xbf16>, vector<720x256xbf16>, vector<16x256xf32> -> vector<16x256xf32>
    %c0_129 = arith.constant 0 : index
    %c0_130 = arith.constant 0 : index
    %267 = vector.load %arg12[%c0_129, %c0_130] : memref<16x1xf32, #tpu.memory_space<vmem>>, vector<16x1xf32>
    %268 = vector.broadcast %267 : vector<16x1xf32> to vector<16x256xf32>
    %269 = arith.addf %266, %268 : vector<16x256xf32>
    %cst_131 = arith.constant 2.000000e-01 : f32
    %270 = vector.broadcast %cst_131 : f32 to vector<16x256xf32>
    %271 = arith.mulf %269, %270 : vector<16x256xf32>
    %272 = arith.addf %271, %9 : vector<16x256xf32>
    %c0_132 = arith.constant 0 : index
    %c0_133 = arith.constant 0 : index
    %c0_134 = arith.constant 0 : index
    %273 = vector.load %arg13[%c0_132, %c0_133, %c0_134] : memref<1x16x256xf32, #tpu.memory_space<vmem>>, vector<1x16x256xf32>
    %274 = vector.shape_cast %273 : vector<1x16x256xf32> to vector<16x256xf32>
    %275 = vector.shape_cast %272 : vector<16x256xf32> to vector<1x16x256xf32>
    tpu.vector_store %arg13[%c0_132, %c0_133, %c0_134], %275 {strides = array<i32>} : memref<1x16x256xf32, #tpu.memory_space<vmem>>, vector<1x16x256xf32>,
    return
  }
  func.func @transform_0(%arg0: i32) -> (i32, i32, i32) {
    %c0_i32 = arith.constant 0 : i32
    %c0_i32_0 = arith.constant 0 : i32
    %c0_i32_1 = arith.constant 0 : i32
    return %arg0, %c0_i32, %c0_i32_0 : i32, i32, i32
  }
  func.func @transform_1(%arg0: i32) -> (i32, i32) {
    %c0_i32 = arith.constant 0 : i32
    %c0_i32_0 = arith.constant 0 : i32
    %c0_i32_1 = arith.constant 0 : i32
    return %c0_i32, %c0_i32_0 : i32, i32
  }
  func.func @transform_2(%arg0: i32) -> (i32, i32) {
    %c0_i32 = arith.constant 0 : i32
    %c0_i32_0 = arith.constant 0 : i32
    %c0_i32_1 = arith.constant 0 : i32
    return %c0_i32, %c0_i32_0 : i32, i32
  }
  func.func @transform_3(%arg0: i32) -> (i32, i32) {
    %c0_i32 = arith.constant 0 : i32
    %c0_i32_0 = arith.constant 0 : i32
    %c0_i32_1 = arith.constant 0 : i32
    return %c0_i32, %c0_i32_0 : i32, i32
  }
  func.func @transform_4(%arg0: i32) -> (i32, i32) {
    %c0_i32 = arith.constant 0 : i32
    %c0_i32_0 = arith.constant 0 : i32
    %c0_i32_1 = arith.constant 0 : i32
    return %c0_i32, %c0_i32_0 : i32, i32
  }
  func.func @transform_5(%arg0: i32) -> (i32, i32) {
    %c0_i32 = arith.constant 0 : i32
    %c0_i32_0 = arith.constant 0 : i32
    %c0_i32_1 = arith.constant 0 : i32
    return %c0_i32, %c0_i32_0 : i32, i32
  }
  func.func @transform_6(%arg0: i32) -> (i32, i32) {
    %c0_i32 = arith.constant 0 : i32
    %c0_i32_0 = arith.constant 0 : i32
    %c0_i32_1 = arith.constant 0 : i32
    return %c0_i32, %c0_i32_0 : i32, i32
  }
  func.func @transform_7(%arg0: i32) -> (i32, i32) {
    %c0_i32 = arith.constant 0 : i32
    %c0_i32_0 = arith.constant 0 : i32
    %c0_i32_1 = arith.constant 0 : i32
    return %c0_i32, %c0_i32_0 : i32, i32
  }
  func.func @transform_8(%arg0: i32) -> (i32, i32) {
    %c0_i32 = arith.constant 0 : i32
    %c0_i32_0 = arith.constant 0 : i32
    %c0_i32_1 = arith.constant 0 : i32
    return %c0_i32, %c0_i32_0 : i32, i32
  }
  func.func @transform_9(%arg0: i32) -> (i32, i32) {
    %c0_i32 = arith.constant 0 : i32
    %c0_i32_0 = arith.constant 0 : i32
    %c0_i32_1 = arith.constant 0 : i32
    return %c0_i32, %c0_i32_0 : i32, i32
  }
  func.func @transform_10(%arg0: i32) -> (i32, i32) {
    %c0_i32 = arith.constant 0 : i32
    %c0_i32_0 = arith.constant 0 : i32
    %c0_i32_1 = arith.constant 0 : i32
    return %c0_i32, %c0_i32_0 : i32, i32
  }
  func.func @transform_11(%arg0: i32) -> (i32, i32) {
    %c0_i32 = arith.constant 0 : i32
    %c0_i32_0 = arith.constant 0 : i32
    %c0_i32_1 = arith.constant 0 : i32
    return %c0_i32, %c0_i32_0 : i32, i32
  }
  func.func @transform_12(%arg0: i32) -> (i32, i32, i32) {
    %c0_i32 = arith.constant 0 : i32
    %c0_i32_0 = arith.constant 0 : i32
    %c0_i32_1 = arith.constant 0 : i32
    return %arg0, %c0_i32, %c0_i32_0 : i32, i32, i32
  }
}

</mosaic_0001>

<llo_original>
// kernel: rdb5c_forward.1
$region0: #{rdb5c_forward.1}
  #allocation0 [shape = 'u32[]', space=smem, size = 0x4, offset = 0x4, fixed_abs, tag = 'smem constant byte address 0x4 - core index']
  #allocation1 [shape = 'u32[144,128]{1,0:T(1,128)}', space=vmem, size = 0x12000, scoped, tag = 'internal scratch']
  #allocation2 [shape = 'bf16[720,256]{1,0:T(16,128)(2,1)}', space=vmem, size = 0x5a000, scoped, tag = 'scratch operand']
  %s0 = inlined_call_operand.vmem [shape: f32[2,16,256], index: 0, kind: input, shape index: {}]
  %s1 = inlined_call_operand.vmem [shape: f32[9,256], index: 1, kind: input, shape index: {}]
  %s2 = inlined_call_operand.vmem [shape: bf16[16,144], index: 2, kind: input, shape index: {}]
  %s3 = inlined_call_operand.vmem [shape: bf16[16,288], index: 3, kind: input, shape index: {}]
  %s4 = inlined_call_operand.vmem [shape: bf16[16,432], index: 4, kind: input, shape index: {}]
  %s5 = inlined_call_operand.vmem [shape: bf16[16,576], index: 5, kind: input, shape index: {}]
  %s6 = inlined_call_operand.vmem [shape: bf16[16,720], index: 6, kind: input, shape index: {}]
  %s7 = inlined_call_operand.vmem [shape: f32[16,1], index: 7, kind: input, shape index: {}]
  %s8 = inlined_call_operand.vmem [shape: f32[16,1], index: 8, kind: input, shape index: {}]
  %s9 = inlined_call_operand.vmem [shape: f32[16,1], index: 9, kind: input, shape index: {}]
  %s10 = inlined_call_operand.vmem [shape: f32[16,1], index: 10, kind: input, shape index: {}]
  %s11 = inlined_call_operand.vmem [shape: f32[16,1], index: 11, kind: input, shape index: {}]
  %s12 = inlined_call_operand.vmem [shape: f32[2,16,256], index: 12, kind: output, shape index: {}]
  %s13 = sld [smem:[#allocation0]]
  $region81: #{rdb5c_forward.1} parent=0
    _
  %s15 = ssub.s32 1, %s13
  %s16 = scalar_select 0, %s15, %s13
  loop: start=0, step=1, limit=4
  $region2: #{rdb5c_forward.1} parent=0 // loop_pre_header
    _
  $region3: #{rdb5c_forward.1} parent=0 // loop_header
    %s18 = sphi 0, %s22
    %p19 = scmp.ge.s32.totalorder %s18, 4
    %s28 = sphi 0, %s30
    %s31 = sphi 0, %s28
    %s32 = sphi 0, %s31
    %s48 = sphi 0, %s32
    %s52 = sphi 0, %s52
    %s54 = sphi 0, %s52
    %s55 = sphi 0, %s54
    %s69 = sphi 0, %s55
    %s73 = sphi 0, %s73
    %s75 = sphi 0, %s73
    %s76 = sphi 0, %s75
    %s90 = sphi 0, %s76
    %s94 = sphi 0, %s94
    %s96 = sphi 0, %s94
    %s97 = sphi 0, %s96
    %s111 = sphi 0, %s97
    %s115 = sphi 0, %s115
    %s117 = sphi 0, %s115
    %s118 = sphi 0, %s117
    %s132 = sphi 0, %s118
    %s136 = sphi 0, %s136
    %s138 = sphi 0, %s136
    %s139 = sphi 0, %s138
    %s153 = sphi 0, %s139
    %s157 = sphi 0, %s157
    %s159 = sphi 0, %s157
    %s160 = sphi 0, %s159
    %s174 = sphi 0, %s160
    %s178 = sphi 0, %s178
    %s180 = sphi 0, %s178
    %s181 = sphi 0, %s180
    %s195 = sphi 0, %s181
    %s199 = sphi 0, %s199
    %s201 = sphi 0, %s199
    %s202 = sphi 0, %s201
    %s216 = sphi 0, %s202
    %s220 = sphi 0, %s220
    %s222 = sphi 0, %s220
    %s223 = sphi 0, %s222
    %s237 = sphi 0, %s223
    %s241 = sphi 0, %s241
    %s243 = sphi 0, %s241
    %s244 = sphi 0, %s243
    %s258 = sphi 0, %s244
    %s262 = sphi 0, %s262
    %s264 = sphi 0, %s262
    %s265 = sphi 0, %s264
    %s279 = sphi 0, %s265
    %s285 = sphi 0, %s287
    %s288 = sphi 0, %s285
    %s289 = sphi 0, %s288
    %s305 = sphi 0, %s289
  $region4: #{rdb5c_forward.1} parent=0 // loop_header_branch
    %21 = sbr.rel (%p19) target = $region8
  $region5: #{rdb5c_forward.1} parent=0 // loop_body
    %s23 = ssub.s32 %s18, 1
    %s24 = ssub.s32 %s18, 2
    %s25 = sadd.s32 %s18, 1
    %s26 = ssub.s32 %s18, %s25
    %p27 = scmp.eq.s32.totalorder %s26, 0
    %s29 = sadd.s32 %s28, 1
    %s30 = scalar_select %p27, %s28, %s29
    %p33 = pneg %p27
    %p34 = scmp.eq.s32.totalorder %s18, 1
    %p35 = por %p33, %p34
    %p36 = scmp.ne.s32.totalorder %s28, %s31
    %p37 = scmp.eq.s32.totalorder %s18, 0
    %p38 = por %p36, %p37
    %p39 = scmp.ne.s32.totalorder %s28, %s31
    %p40 = scmp.eq.s32.totalorder %s23, 1
    %p41 = por %p39, %p40
    %p42 = scmp.ne.s32.totalorder %s31, %s32
    %p43 = scmp.eq.s32.totalorder %s23, 0
    %p44 = por %p42, %p43
    %p45 = scmp.ne.s32.totalorder %s31, %s32
    %p46 = scmp.eq.s32.totalorder %s24, 1
    %p47 = por %p45, %p46
    %p49 = scmp.ne.s32.totalorder %s32, %s48
    %p50 = scmp.eq.s32.totalorder %s24, 0
    %p51 = por %p49, %p50
    %s53 = sadd.s32 %s52, 1
    %p56 = scmp.eq.s32.totalorder %s18, 1
    %p57 = scmp.ne.s32.totalorder %s52, %s54
    %p58 = scmp.eq.s32.totalorder %s18, 0
    %p59 = por %p57, %p58
    %p60 = scmp.ne.s32.totalorder %s52, %s54
    %p61 = scmp.eq.s32.totalorder %s23, 1
    %p62 = por %p60, %p61
    %p63 = scmp.ne.s32.totalorder %s54, %s55
    %p64 = scmp.eq.s32.totalorder %s23, 0
    %p65 = por %p63, %p64
    %p66 = scmp.ne.s32.totalorder %s54, %s55
    %p67 = scmp.eq.s32.totalorder %s24, 1
    %p68 = por %p66, %p67
    %p70 = scmp.ne.s32.totalorder %s55, %s69
    %p71 = scmp.eq.s32.totalorder %s24, 0
    %p72 = por %p70, %p71
    %s74 = sadd.s32 %s73, 1
    %p77 = scmp.eq.s32.totalorder %s18, 1
    %p78 = scmp.ne.s32.totalorder %s73, %s75
    %p79 = scmp.eq.s32.totalorder %s18, 0
    %p80 = por %p78, %p79
    %p81 = scmp.ne.s32.totalorder %s73, %s75
    %p82 = scmp.eq.s32.totalorder %s23, 1
    %p83 = por %p81, %p82
    %p84 = scmp.ne.s32.totalorder %s75, %s76
    %p85 = scmp.eq.s32.totalorder %s23, 0
    %p86 = por %p84, %p85
    %p87 = scmp.ne.s32.totalorder %s75, %s76
    %p88 = scmp.eq.s32.totalorder %s24, 1
    %p89 = por %p87, %p88
    %p91 = scmp.ne.s32.totalorder %s76, %s90
    %p92 = scmp.eq.s32.totalorder %s24, 0
    %p93 = por %p91, %p92
    %s95 = sadd.s32 %s94, 1
    %p98 = scmp.eq.s32.totalorder %s18, 1
    %p99 = scmp.ne.s32.totalorder %s94, %s96
    %p100 = scmp.eq.s32.totalorder %s18, 0
    %p101 = por %p99, %p100
    %p102 = scmp.ne.s32.totalorder %s94, %s96
    %p103 = scmp.eq.s32.totalorder %s23, 1
    %p104 = por %p102, %p103
    %p105 = scmp.ne.s32.totalorder %s96, %s97
    %p106 = scmp.eq.s32.totalorder %s23, 0
    %p107 = por %p105, %p106
    %p108 = scmp.ne.s32.totalorder %s96, %s97
    %p109 = scmp.eq.s32.totalorder %s24, 1
    %p110 = por %p108, %p109
    %p112 = scmp.ne.s32.totalorder %s97, %s111
    %p113 = scmp.eq.s32.totalorder %s24, 0
    %p114 = por %p112, %p113
    %s116 = sadd.s32 %s115, 1
    %p119 = scmp.eq.s32.totalorder %s18, 1
    %p120 = scmp.ne.s32.totalorder %s115, %s117
    %p121 = scmp.eq.s32.totalorder %s18, 0
    %p122 = por %p120, %p121
    %p123 = scmp.ne.s32.totalorder %s115, %s117
    %p124 = scmp.eq.s32.totalorder %s23, 1
    %p125 = por %p123, %p124
    %p126 = scmp.ne.s32.totalorder %s117, %s118
    %p127 = scmp.eq.s32.totalorder %s23, 0
    %p128 = por %p126, %p127
    %p129 = scmp.ne.s32.totalorder %s117, %s118
    %p130 = scmp.eq.s32.totalorder %s24, 1
    %p131 = por %p129, %p130
    %p133 = scmp.ne.s32.totalorder %s118, %s132
    %p134 = scmp.eq.s32.totalorder %s24, 0
    %p135 = por %p133, %p134
    %s137 = sadd.s32 %s136, 1
    %p140 = scmp.eq.s32.totalorder %s18, 1
    %p141 = scmp.ne.s32.totalorder %s136, %s138
    %p142 = scmp.eq.s32.totalorder %s18, 0
    %p143 = por %p141, %p142
    %p144 = scmp.ne.s32.totalorder %s136, %s138
    %p145 = scmp.eq.s32.totalorder %s23, 1
    %p146 = por %p144, %p145
    %p147 = scmp.ne.s32.totalorder %s138, %s139
    %p148 = scmp.eq.s32.totalorder %s23, 0
    %p149 = por %p147, %p148
    %p150 = scmp.ne.s32.totalorder %s138, %s139
    %p151 = scmp.eq.s32.totalorder %s24, 1
    %p152 = por %p150, %p151
    %p154 = scmp.ne.s32.totalorder %s139, %s153
    %p155 = scmp.eq.s32.totalorder %s24, 0
    %p156 = por %p154, %p155
    %s158 = sadd.s32 %s157, 1
    %p161 = scmp.eq.s32.totalorder %s18, 1
    %p162 = scmp.ne.s32.totalorder %s157, %s159
    %p163 = scmp.eq.s32.totalorder %s18, 0
    %p164 = por %p162, %p163
    %p165 = scmp.ne.s32.totalorder %s157, %s159
    %p166 = scmp.eq.s32.totalorder %s23, 1
    %p167 = por %p165, %p166
    %p168 = scmp.ne.s32.totalorder %s159, %s160
    %p169 = scmp.eq.s32.totalorder %s23, 0
    %p170 = por %p168, %p169
    %p171 = scmp.ne.s32.totalorder %s159, %s160
    %p172 = scmp.eq.s32.totalorder %s24, 1
    %p173 = por %p171, %p172
    %p175 = scmp.ne.s32.totalorder %s160, %s174
    %p176 = scmp.eq.s32.totalorder %s24, 0
    %p177 = por %p175, %p176
    %s179 = sadd.s32 %s178, 1
    %p182 = scmp.eq.s32.totalorder %s18, 1
    %p183 = scmp.ne.s32.totalorder %s178, %s180
    %p184 = scmp.eq.s32.totalorder %s18, 0
    %p185 = por %p183, %p184
    %p186 = scmp.ne.s32.totalorder %s178, %s180
    %p187 = scmp.eq.s32.totalorder %s23, 1
    %p188 = por %p186, %p187
    %p189 = scmp.ne.s32.totalorder %s180, %s181
    %p190 = scmp.eq.s32.totalorder %s23, 0
    %p191 = por %p189, %p190
    %p192 = scmp.ne.s32.totalorder %s180, %s181
    %p193 = scmp.eq.s32.totalorder %s24, 1
    %p194 = por %p192, %p193
    %p196 = scmp.ne.s32.totalorder %s181, %s195
    %p197 = scmp.eq.s32.totalorder %s24, 0
    %p198 = por %p196, %p197
    %s200 = sadd.s32 %s199, 1
    %p203 = scmp.eq.s32.totalorder %s18, 1
    %p204 = scmp.ne.s32.totalorder %s199, %s201
    %p205 = scmp.eq.s32.totalorder %s18, 0
    %p206 = por %p204, %p205
    %p207 = scmp.ne.s32.totalorder %s199, %s201
    %p208 = scmp.eq.s32.totalorder %s23, 1
    %p209 = por %p207, %p208
    %p210 = scmp.ne.s32.totalorder %s201, %s202
    %p211 = scmp.eq.s32.totalorder %s23, 0
    %p212 = por %p210, %p211
    %p213 = scmp.ne.s32.totalorder %s201, %s202
    %p214 = scmp.eq.s32.totalorder %s24, 1
    %p215 = por %p213, %p214
    %p217 = scmp.ne.s32.totalorder %s202, %s216
    %p218 = scmp.eq.s32.totalorder %s24, 0
    %p219 = por %p217, %p218
    %s221 = sadd.s32 %s220, 1
    %p224 = scmp.eq.s32.totalorder %s18, 1
    %p225 = scmp.ne.s32.totalorder %s220, %s222
    %p226 = scmp.eq.s32.totalorder %s18, 0
    %p227 = por %p225, %p226
    %p228 = scmp.ne.s32.totalorder %s220, %s222
    %p229 = scmp.eq.s32.totalorder %s23, 1
    %p230 = por %p228, %p229
    %p231 = scmp.ne.s32.totalorder %s222, %s223
    %p232 = scmp.eq.s32.totalorder %s23, 0
    %p233 = por %p231, %p232
    %p234 = scmp.ne.s32.totalorder %s222, %s223
    %p235 = scmp.eq.s32.totalorder %s24, 1
    %p236 = por %p234, %p235
    %p238 = scmp.ne.s32.totalorder %s223, %s237
    %p239 = scmp.eq.s32.totalorder %s24, 0
    %p240 = por %p238, %p239
    %s242 = sadd.s32 %s241, 1
    %p245 = scmp.eq.s32.totalorder %s18, 1
    %p246 = scmp.ne.s32.totalorder %s241, %s243
    %p247 = scmp.eq.s32.totalorder %s18, 0
    %p248 = por %p246, %p247
    %p249 = scmp.ne.s32.totalorder %s241, %s243
    %p250 = scmp.eq.s32.totalorder %s23, 1
    %p251 = por %p249, %p250
    %p252 = scmp.ne.s32.totalorder %s243, %s244
    %p253 = scmp.eq.s32.totalorder %s23, 0
    %p254 = por %p252, %p253
    %p255 = scmp.ne.s32.totalorder %s243, %s244
    %p256 = scmp.eq.s32.totalorder %s24, 1
    %p257 = por %p255, %p256
    %p259 = scmp.ne.s32.totalorder %s244, %s258
    %p260 = scmp.eq.s32.totalorder %s24, 0
    %p261 = por %p259, %p260
    %s263 = sadd.s32 %s262, 1
    %p266 = scmp.eq.s32.totalorder %s18, 1
    %p267 = scmp.ne.s32.totalorder %s262, %s264
    %p268 = scmp.eq.s32.totalorder %s18, 0
    %p269 = por %p267, %p268
    %p270 = scmp.ne.s32.totalorder %s262, %s264
    %p271 = scmp.eq.s32.totalorder %s23, 1
    %p272 = por %p270, %p271
    %p273 = scmp.ne.s32.totalorder %s264, %s265
    %p274 = scmp.eq.s32.totalorder %s23, 0
    %p275 = por %p273, %p274
    %p276 = scmp.ne.s32.totalorder %s264, %s265
    %p277 = scmp.eq.s32.totalorder %s24, 1
    %p278 = por %p276, %p277
    %p280 = scmp.ne.s32.totalorder %s265, %s279
    %p281 = scmp.eq.s32.totalorder %s24, 0
    %p282 = por %p280, %p281
    %s283 = ssub.s32 %s18, %s25
    %p284 = scmp.eq.s32.totalorder %s283, 0
    %s286 = sadd.s32 %s285, 1
    %s287 = scalar_select %p284, %s285, %s286
    %p290 = pneg %p284
    %p291 = scmp.eq.s32.totalorder %s18, 1
    %p292 = por %p290, %p291
    %p293 = scmp.ne.s32.totalorder %s285, %s288
    %p294 = scmp.eq.s32.totalorder %s18, 0
    %p295 = por %p293, %p294
    %p296 = scmp.ne.s32.totalorder %s285, %s288
    %p297 = scmp.eq.s32.totalorder %s23, 1
    %p298 = por %p296, %p297
    %p299 = scmp.ne.s32.totalorder %s288, %s289
    %p300 = scmp.eq.s32.totalorder %s23, 0
    %p301 = por %p299, %p300
    %p302 = scmp.ne.s32.totalorder %s288, %s289
    %p303 = scmp.eq.s32.totalorder %s24, 1
    %p304 = por %p302, %p303
    %p306 = scmp.ne.s32.totalorder %s289, %s305
    %p307 = scmp.eq.s32.totalorder %s24, 0
    %p308 = por %p306, %p307
    %p309 = scmp.le.s32.totalorder 1, %s18
    %p310 = scmp.lt.s32.totalorder %s18, 3
    %p311 = pnand %p309, %p310
    %p312 = pneg %p311
    // Predicated region
    $region9: #{rdb5c_forward.1} parent=5 // pred_check
      _
    $region10: #{rdb5c_forward.1} parent=5 // pred_check_branch
      %314 = sbr.rel (%p311) target = $region12
    $region11: #{rdb5c_forward.1} parent=5 // pred_region
      %s315 = ssub.s32 %s18, 1
      // Predicated region
      $region13: #{rdb5c_forward.1} parent=11 // pred_check
        %p316 = pneg %p65
      $region14: #{rdb5c_forward.1} parent=11 // pred_check_branch
        %318 = sbr.rel (%p316) target = $region16
      $region15: #{rdb5c_forward.1} parent=11 // pred_region
        _
      $region16: #{rdb5c_forward.1} parent=11 // pred_fallthru
        _
      // Predicated region
      $region17: #{rdb5c_forward.1} parent=11 // pred_check
        %p319 = pneg %p86
      $region18: #{rdb5c_forward.1} parent=11 // pred_check_branch
        %321 = sbr.rel (%p319) target = $region20
      $region19: #{rdb5c_forward.1} parent=11 // pred_region
        _
      $region20: #{rdb5c_forward.1} parent=11 // pred_fallthru
        _
      // Predicated region
      $region21: #{rdb5c_forward.1} parent=11 // pred_check
        %p322 = pneg %p107
      $region22: #{rdb5c_forward.1} parent=11 // pred_check_branch
        %324 = sbr.rel (%p322) target = $region24
      $region23: #{rdb5c_forward.1} parent=11 // pred_region
        _
      $region24: #{rdb5c_forward.1} parent=11 // pred_fallthru
        _
      // Predicated region
      $region25: #{rdb5c_forward.1} parent=11 // pred_check
        %p325 = pneg %p128
      $region26: #{rdb5c_forward.1} parent=11 // pred_check_branch
        %327 = sbr.rel (%p325) target = $region28
      $region27: #{rdb5c_forward.1} parent=11 // pred_region
        _
      $region28: #{rdb5c_forward.1} parent=11 // pred_fallthru
        _
      // Predicated region
      $region29: #{rdb5c_forward.1} parent=11 // pred_check
        %p328 = pneg %p149
      $region30: #{rdb5c_forward.1} parent=11 // pred_check_branch
        %330 = sbr.rel (%p328) target = $region32
      $region31: #{rdb5c_forward.1} parent=11 // pred_region
        _
      $region32: #{rdb5c_forward.1} parent=11 // pred_fallthru
        _
      // Predicated region
      $region33: #{rdb5c_forward.1} parent=11 // pred_check
        %p331 = pneg %p170
      $region34: #{rdb5c_forward.1} parent=11 // pred_check_branch
        %333 = sbr.rel (%p331) target = $region36
      $region35: #{rdb5c_forward.1} parent=11 // pred_region
        _
      $region36: #{rdb5c_forward.1} parent=11 // pred_fallthru
        _
      // Predicated region
      $region37: #{rdb5c_forward.1} parent=11 // pred_check
        %p334 = pneg %p191
      $region38: #{rdb5c_forward.1} parent=11 // pred_check_branch
        %336 = sbr.rel (%p334) target = $region40
      $region39: #{rdb5c_forward.1} parent=11 // pred_region
        _
      $region40: #{rdb5c_forward.1} parent=11 // pred_fallthru
        _
      // Predicated region
      $region41: #{rdb5c_forward.1} parent=11 // pred_check
        %p337 = pneg %p212
      $region42: #{rdb5c_forward.1} parent=11 // pred_check_branch
        %339 = sbr.rel (%p337) target = $region44
      $region43: #{rdb5c_forward.1} parent=11 // pred_region
        _
      $region44: #{rdb5c_forward.1} parent=11 // pred_fallthru
        _
      // Predicated region
      $region45: #{rdb5c_forward.1} parent=11 // pred_check
        %p340 = pneg %p233
      $region46: #{rdb5c_forward.1} parent=11 // pred_check_branch
        %342 = sbr.rel (%p340) target = $region48
      $region47: #{rdb5c_forward.1} parent=11 // pred_region
        _
      $region48: #{rdb5c_forward.1} parent=11 // pred_fallthru
        _
      // Predicated region
      $region49: #{rdb5c_forward.1} parent=11 // pred_check
        %p343 = pneg %p254
      $region50: #{rdb5c_forward.1} parent=11 // pred_check_branch
        %345 = sbr.rel (%p343) target = $region52
      $region51: #{rdb5c_forward.1} parent=11 // pred_region
        _
      $region52: #{rdb5c_forward.1} parent=11 // pred_fallthru
        _
      // Predicated region
      $region53: #{rdb5c_forward.1} parent=11 // pred_check
        %p346 = pneg %p275
      $region54: #{rdb5c_forward.1} parent=11 // pred_check_branch
        %348 = sbr.rel (%p346) target = $region56
      $region55: #{rdb5c_forward.1} parent=11 // pred_region
        _
      $region56: #{rdb5c_forward.1} parent=11 // pred_fallthru
        _
    $region12: #{rdb5c_forward.1} parent=5 // pred_fallthru
      _
    %p349 = scmp.lt.s32.totalorder %s18, 2
    // Predicated region
    $region57: #{rdb5c_forward.1} parent=5 // pred_check
      %p350 = pneg %p349
    $region58: #{rdb5c_forward.1} parent=5 // pred_check_branch
      %352 = sbr.rel (%p350) target = $region60
    $region59: #{rdb5c_forward.1} parent=5 // pred_region
      // Predicated region
      $region61: #{rdb5c_forward.1} parent=59 // pred_check
        %p353 = pneg %p38
      $region62: #{rdb5c_forward.1} parent=59 // pred_check_branch
        %355 = sbr.rel (%p353) target = $region64
      $region63: #{rdb5c_forward.1} parent=59 // pred_region
        %p356 = scmp.lt.s32.totalorder %s18, 1
        %s357 = scalar_select %p356, %s18, 1
        %s358 = smul.addr %s357, 4
        %s359 = smul.addr %s358, 8
        %s360 = scalar_lea.vmem %s0, %s359
      $region64: #{rdb5c_forward.1} parent=59 // pred_fallthru
        _
    $region60: #{rdb5c_forward.1} parent=5 // pred_fallthru
      _
    %p361 = scmp.le.s32.totalorder 1, %s18
    %p362 = scmp.lt.s32.totalorder %s18, 3
    %p363 = pnand %p361, %p362
    %p364 = pneg %p363
    // Predicated region
    $region65: #{rdb5c_forward.1} parent=5 // pred_check
      _
    $region66: #{rdb5c_forward.1} parent=5 // pred_check_branch
      %366 = sbr.rel (%p363) target = $region68
    $region67: #{rdb5c_forward.1} parent=5 // pred_region
      %s367 = ssub.s32 %s18, 1
      %p368 = scmp.lt.s32.totalorder %s23, 1
      %s369 = scalar_select %p368, %s23, 1
      %s370 = smul.addr %s369, 4
      %s371 = smul.addr %s370, 8
      %s372 = scalar_lea.vmem %s0, %s371
      %p373 = pneg %p44
      %p374 = pneg %p41
      %p375 = pneg %p65
      %p376 = pneg %p62
      %p377 = pneg %p86
      %p378 = pneg %p83
      %p379 = pneg %p107
      %p380 = pneg %p104
      %p381 = pneg %p128
      %p382 = pneg %p125
      %p383 = pneg %p149
      %p384 = pneg %p146
      %p385 = pneg %p170
      %p386 = pneg %p167
      %p387 = pneg %p191
      %p388 = pneg %p188
      %p389 = pneg %p212
      %p390 = pneg %p209
      %p391 = pneg %p233
      %p392 = pneg %p230
      %p393 = pneg %p254
      %p394 = pneg %p251
      %p395 = pneg %p275
      %p396 = pneg %p272
      %p397 = pneg %p301
      %p398 = pneg %p298
      %p399 = scmp.lt.s32.totalorder %s23, 1
      %s400 = scalar_select %p399, %s23, 1
      %s401 = smul.addr %s400, 4
      %s402 = smul.addr %s401, 8
      %s403 = scalar_lea.vmem %s12, %s402
      %p404 = scmp.lt.s32.totalorder %s23, 1
      %s405 = scalar_select %p404, %s23, 1
      %s406 = smul.addr %s405, 4
      %s407 = smul.addr %s406, 8
      %s408 = scalar_lea.vmem %s0, %s407
      %p409 = scmp.lt.s32.totalorder %s23, 1
      %s410 = scalar_select %p409, %s23, 1
      %s411 = smul.addr %s410, 4
      %s412 = smul.addr %s411, 8
      %s413 = scalar_lea.vmem %s12, %s412
      %v415 = vld [vmem:[%s1] ss:$8 sm:$0x3]
      %s416 = scalar_lea.vmem %s1, 1
      %v417 = vld [vmem:[%s416] ss:$8 sm:$0x3]
      %s418 = scalar_lea.vmem %s1, 2
      %v419 = vld [vmem:[%s418] ss:$8 sm:$0x3]
      %s420 = scalar_lea.vmem %s1, 3
      %v421 = vld [vmem:[%s420] ss:$8 sm:$0x3]
      %s422 = scalar_lea.vmem %s1, 5
      %v423 = vld [vmem:[%s422] ss:$8 sm:$0x3]
      %s424 = scalar_lea.vmem %s1, 6
      %v425 = vld [vmem:[%s424] ss:$8 sm:$0x3]
      %s426 = scalar_lea.vmem %s1, 7
      %v427 = vld [vmem:[%s426] ss:$8 sm:$0x3]
      %s428 = scalar_lea.vmem %s1, 16
      %v429 = vld [vmem:[%s428] ss:$8 sm:$0x3]
      %v430 = vld [vmem:[%s408] sm:$0xff]
      %v431 = vld [vmem:[%s408 + $0x8] sm:$0xff]
      %v432 = vld [vmem:[%s408 + $0x10] sm:$0xff]
      %v433 = vld [vmem:[%s408 + $0x18] sm:$0xff]
      %434 = vrot.lane.b32.xlu0 %v430, 17
      %v435 = vpop.permute.xlu0 %434
      %436 = vrot.lane.b32.xlu0 %v432, 17
      %v437 = vpop.permute.xlu0 %436
      %438 = vrot.lane.b32.xlu0 %v431, 17
      %v439 = vpop.permute.xlu0 %438
      %440 = vrot.lane.b32.xlu0 %v433, 17
      %v441 = vpop.permute.xlu0 %440
      %v442 = vlaneseq
      %v443 = vand.u32 %v442, 127
      %vm444 = vcmp.lt.s32.totalorder %v443, 17
      %v445 = vsel %vm444, %v435, %v439
      %v446 = vsel %vm444, %v437, %v441
      %v447 = vsel %vm444, %v439, %v435
      %v448 = vsel %vm444, %v441, %v437
      %v450 = vlaneseq
      %v451 = vshrl.u32 %v450, 7
      %v452 = vsub.s32 0, %v451
      %v453 = vrot.slane %v415, %v452
      %v454 = vlaneseq
      %v455 = vshrl.u32 %v454, 7
      %v456 = vsub.s32 1, %v455
      %v457 = vrot.slane %v415, %v456
      %v460 = vmul.f32 %v447, %v453
      %v461 = vmul.f32 %v445, %v457
      %v462 = vmul.f32 %v448, %v453
      %v463 = vmul.f32 %v446, %v457
      %v464 = vpack.c.bf16 %v462, %v460
      %v465 = vpack.c.bf16 %v463, %v461
      %466 = vst [vmem:[#allocation2] sm:$0xff] %v464
      %467 = vst [vmem:[#allocation2 + $0x8] sm:$0xff] %v465
      %468 = vrot.lane.b32.xlu0 %v430, 16
      %v469 = vpop.permute.xlu0 %468
      %470 = vrot.lane.b32.xlu0 %v432, 16
      %v471 = vpop.permute.xlu0 %470
      %472 = vrot.lane.b32.xlu0 %v431, 16
      %v473 = vpop.permute.xlu0 %472
      %474 = vrot.lane.b32.xlu0 %v433, 16
      %v475 = vpop.permute.xlu0 %474
      %vm476 = vcmp.lt.s32.totalorder %v443, 16
      %v477 = vsel %vm476, %v469, %v473
      %v478 = vsel %vm476, %v471, %v475
      %v479 = vsel %vm476, %v473, %v469
      %v480 = vsel %vm476, %v475, %v471
      %v482 = vlaneseq
      %v483 = vshrl.u32 %v482, 7
      %v484 = vsub.s32 0, %v483
      %v485 = vrot.slane %v417, %v484
      %v486 = vlaneseq
      %v487 = vshrl.u32 %v486, 7
      %v488 = vsub.s32 1, %v487
      %v489 = vrot.slane %v417, %v488
      %v492 = vmul.f32 %v479, %v485
      %v493 = vmul.f32 %v477, %v489
      %v494 = vmul.f32 %v480, %v485
      %v495 = vmul.f32 %v478, %v489
      %v496 = vpack.c.bf16 %v494, %v492
      %v497 = vpack.c.bf16 %v495, %v493
      %498 = vst [vmem:[#allocation2 + $0x10] sm:$0xff] %v496
      %499 = vst [vmem:[#allocation2 + $0x18] sm:$0xff] %v497
      %500 = vrot.lane.b32.xlu0 %v430, 15
      %v501 = vpop.permute.xlu0 %500
      %502 = vrot.lane.b32.xlu0 %v432, 15
      %v503 = vpop.permute.xlu0 %502
      %504 = vrot.lane.b32.xlu0 %v431, 15
      %v505 = vpop.permute.xlu0 %504
      %506 = vrot.lane.b32.xlu0 %v433, 15
      %v507 = vpop.permute.xlu0 %506
      %vm508 = vcmp.lt.s32.totalorder %v443, 15
      %v509 = vsel %vm508, %v501, %v505
      %v510 = vsel %vm508, %v503, %v507
      %v511 = vsel %vm508, %v505, %v501
      %v512 = vsel %vm508, %v507, %v503
      %v514 = vlaneseq
      %v515 = vshrl.u32 %v514, 7
      %v516 = vsub.s32 0, %v515
      %v517 = vrot.slane %v419, %v516
      %v518 = vlaneseq
      %v519 = vshrl.u32 %v518, 7
      %v520 = vsub.s32 1, %v519
      %v521 = vrot.slane %v419, %v520
      %v524 = vmul.f32 %v511, %v517
      %v525 = vmul.f32 %v509, %v521
      %v526 = vmul.f32 %v512, %v517
      %v527 = vmul.f32 %v510, %v521
      %v528 = vpack.c.bf16 %v526, %v524
      %v529 = vpack.c.bf16 %v527, %v525
      %530 = vst [vmem:[#allocation2 + $0x20] sm:$0xff] %v528
      %531 = vst [vmem:[#allocation2 + $0x28] sm:$0xff] %v529
      %532 = vrot.lane.b32.xlu0 %v430, 1
      %v533 = vpop.permute.xlu0 %532
      %534 = vrot.lane.b32.xlu0 %v432, 1
      %v535 = vpop.permute.xlu0 %534
      %536 = vrot.lane.b32.xlu0 %v431, 1
      %v537 = vpop.permute.xlu0 %536
      %538 = vrot.lane.b32.xlu0 %v433, 1
      %v539 = vpop.permute.xlu0 %538
      %vm540 = vcmp.lt.s32.totalorder %v443, 1
      %v541 = vsel %vm540, %v533, %v537
      %v542 = vsel %vm540, %v535, %v539
      %v543 = vsel %vm540, %v537, %v533
      %v544 = vsel %vm540, %v539, %v535
      %v546 = vlaneseq
      %v547 = vshrl.u32 %v546, 7
      %v548 = vsub.s32 0, %v547
      %v549 = vrot.slane %v421, %v548
      %v550 = vlaneseq
      %v551 = vshrl.u32 %v550, 7
      %v552 = vsub.s32 1, %v551
      %v553 = vrot.slane %v421, %v552
      %v556 = vmul.f32 %v543, %v549
      %v557 = vmul.f32 %v541, %v553
      %v558 = vmul.f32 %v544, %v549
      %v559 = vmul.f32 %v542, %v553
      %v560 = vpack.c.bf16 %v558, %v556
      %v561 = vpack.c.bf16 %v559, %v557
      %562 = vst [vmem:[#allocation2 + $0x30] sm:$0xff] %v560
      %563 = vst [vmem:[#allocation2 + $0x38] sm:$0xff] %v561
      %v564 = vpack.c.bf16 %v432, %v430
      %v565 = vpack.c.bf16 %v433, %v431
      %566 = vst [vmem:[#allocation2 + $0x40] sm:$0xff] %v564
      %567 = vst [vmem:[#allocation2 + $0x48] sm:$0xff] %v565
      %568 = vrot.lane.b32.xlu0 %v430, 127
      %v569 = vpop.permute.xlu0 %568
      %570 = vrot.lane.b32.xlu0 %v432, 127
      %v571 = vpop.permute.xlu0 %570
      %572 = vrot.lane.b32.xlu0 %v431, 127
      %v573 = vpop.permute.xlu0 %572
      %574 = vrot.lane.b32.xlu0 %v433, 127
      %v575 = vpop.permute.xlu0 %574
      %vm576 = vcmp.lt.s32.totalorder %v443, 127
      %v577 = vsel %vm576, %v569, %v573
      %v578 = vsel %vm576, %v571, %v575
      %v579 = vsel %vm576, %v573, %v569
      %v580 = vsel %vm576, %v575, %v571
      %v582 = vlaneseq
      %v583 = vshrl.u32 %v582, 7
      %v584 = vsub.s32 0, %v583
      %v585 = vrot.slane %v423, %v584
      %v586 = vlaneseq
      %v587 = vshrl.u32 %v586, 7
      %v588 = vsub.s32 1, %v587
      %v589 = vrot.slane %v423, %v588
      %v592 = vmul.f32 %v577, %v585
      %v593 = vmul.f32 %v579, %v589
      %v594 = vmul.f32 %v578, %v585
      %v595 = vmul.f32 %v580, %v589
      %v596 = vpack.c.bf16 %v594, %v592
      %v597 = vpack.c.bf16 %v595, %v593
      %598 = vst [vmem:[#allocation2 + $0x50] sm:$0xff] %v596
      %599 = vst [vmem:[#allocation2 + $0x58] sm:$0xff] %v597
      %600 = vrot.lane.b32.xlu0 %v430, 113
      %v601 = vpop.permute.xlu0 %600
      %602 = vrot.lane.b32.xlu0 %v432, 113
      %v603 = vpop.permute.xlu0 %602
      %604 = vrot.lane.b32.xlu0 %v431, 113
      %v605 = vpop.permute.xlu0 %604
      %606 = vrot.lane.b32.xlu0 %v433, 113
      %v607 = vpop.permute.xlu0 %606
      %vm608 = vcmp.lt.s32.totalorder %v443, 113
      %v609 = vsel %vm608, %v601, %v605
      %v610 = vsel %vm608, %v603, %v607
      %v611 = vsel %vm608, %v605, %v601
      %v612 = vsel %vm608, %v607, %v603
      %v614 = vlaneseq
      %v615 = vshrl.u32 %v614, 7
      %v616 = vsub.s32 0, %v615
      %v617 = vrot.slane %v425, %v616
      %v618 = vlaneseq
      %v619 = vshrl.u32 %v618, 7
      %v620 = vsub.s32 1, %v619
      %v621 = vrot.slane %v425, %v620
      %v624 = vmul.f32 %v609, %v617
      %v625 = vmul.f32 %v611, %v621
      %v626 = vmul.f32 %v610, %v617
      %v627 = vmul.f32 %v612, %v621
      %v628 = vpack.c.bf16 %v626, %v624
      %v629 = vpack.c.bf16 %v627, %v625
      %630 = vst [vmem:[#allocation2 + $0x60] sm:$0xff] %v628
      %631 = vst [vmem:[#allocation2 + $0x68] sm:$0xff] %v629
      %632 = vrot.lane.b32.xlu0 %v430, 112
      %v633 = vpop.permute.xlu0 %632
      %634 = vrot.lane.b32.xlu0 %v432, 112
      %v635 = vpop.permute.xlu0 %634
      %636 = vrot.lane.b32.xlu0 %v431, 112
      %v637 = vpop.permute.xlu0 %636
      %638 = vrot.lane.b32.xlu0 %v433, 112
      %v639 = vpop.permute.xlu0 %638
      %vm640 = vcmp.lt.s32.totalorder %v443, 112
      %v641 = vsel %vm640, %v633, %v637
      %v642 = vsel %vm640, %v635, %v639
      %v643 = vsel %vm640, %v637, %v633
      %v644 = vsel %vm640, %v639, %v635
      %v646 = vlaneseq
      %v647 = vshrl.u32 %v646, 7
      %v648 = vsub.s32 0, %v647
      %v649 = vrot.slane %v427, %v648
      %v650 = vlaneseq
      %v651 = vshrl.u32 %v650, 7
      %v652 = vsub.s32 1, %v651
      %v653 = vrot.slane %v427, %v652
      %v656 = vmul.f32 %v641, %v649
      %v657 = vmul.f32 %v643, %v653
      %v658 = vmul.f32 %v642, %v649
      %v659 = vmul.f32 %v644, %v653
      %v660 = vpack.c.bf16 %v658, %v656
      %v661 = vpack.c.bf16 %v659, %v657
      %662 = vst [vmem:[#allocation2 + $0x70] sm:$0xff] %v660
      %663 = vst [vmem:[#allocation2 + $0x78] sm:$0xff] %v661
      %664 = vrot.lane.b32.xlu0 %v430, 111
      %v665 = vpop.permute.xlu0 %664
      %666 = vrot.lane.b32.xlu0 %v432, 111
      %v667 = vpop.permute.xlu0 %666
      %668 = vrot.lane.b32.xlu0 %v431, 111
      %v669 = vpop.permute.xlu0 %668
      %670 = vrot.lane.b32.xlu0 %v433, 111
      %v671 = vpop.permute.xlu0 %670
      %vm672 = vcmp.lt.s32.totalorder %v443, 111
      %v673 = vsel %vm672, %v665, %v669
      %v674 = vsel %vm672, %v667, %v671
      %v675 = vsel %vm672, %v669, %v665
      %v676 = vsel %vm672, %v671, %v667
      %v678 = vlaneseq
      %v679 = vshrl.u32 %v678, 7
      %v680 = vsub.s32 0, %v679
      %v681 = vrot.slane %v429, %v680
      %v682 = vlaneseq
      %v683 = vshrl.u32 %v682, 7
      %v684 = vsub.s32 1, %v683
      %v685 = vrot.slane %v429, %v684
      %v688 = vmul.f32 %v673, %v681
      %v689 = vmul.f32 %v675, %v685
      %v690 = vmul.f32 %v674, %v681
      %v691 = vmul.f32 %v676, %v685
      %v692 = vpack.c.bf16 %v690, %v688
      %v693 = vpack.c.bf16 %v691, %v689
      %694 = vst [vmem:[#allocation2 + $0x80] sm:$0xff] %v692
      %695 = vst [vmem:[#allocation2 + $0x88] sm:$0xff] %v693
      %v696 = vld [vmem:[%s2] sm:$0xff]
      %v697 = vld [vmem:[%s2 + $0x8] sm:$0xff]
      %v698 = vld [vmem:[#allocation2] sm:$0xff]
      %v699 = vld [vmem:[#allocation2 + $0x8] sm:$0xff]
      %v700 = vld [vmem:[#allocation2 + $0x10] sm:$0xff]
      %v701 = vld [vmem:[#allocation2 + $0x18] sm:$0xff]
      %v702 = vld [vmem:[#allocation2 + $0x20] sm:$0xff]
      %v703 = vld [vmem:[#allocation2 + $0x28] sm:$0xff]
      %v704 = vld [vmem:[#allocation2 + $0x30] sm:$0xff]
      %v705 = vld [vmem:[#allocation2 + $0x38] sm:$0xff]
      %v706 = vld [vmem:[#allocation2 + $0x40] sm:$0xff]
      %v707 = vld [vmem:[#allocation2 + $0x48] sm:$0xff]
      %v708 = vld [vmem:[#allocation2 + $0x50] sm:$0xff]
      %v709 = vld [vmem:[#allocation2 + $0x58] sm:$0xff]
      %v710 = vld [vmem:[#allocation2 + $0x60] sm:$0xff]
      %v711 = vld [vmem:[#allocation2 + $0x68] sm:$0xff]
      %v712 = vld [vmem:[#allocation2 + $0x70] sm:$0xff]
      %v713 = vld [vmem:[#allocation2 + $0x78] sm:$0xff]
      %v714 = vld [vmem:[#allocation2 + $0x80] sm:$0xff]
      %v715 = vld [vmem:[#allocation2 + $0x88] sm:$0xff]
      %v716 = vld [vmem:[%s7] sm:$0xff]
      %v717 = vld [vmem:[%s7 + $0x8] sm:$0xff]
      %719 = vset.pattern.permute.xlu0 0
      %720 = vperm.xlu0 %719, %v716
      %v721 = vpop.permute.xlu0 %720
      %724 = vset.pattern.permute.xlu0 0
      %725 = vperm.xlu0 %724, %v717
      %v726 = vpop.permute.xlu0 %725
      %v730 = vunpack.c.l.b16 %v696
      %v731 = vunpack.c.h.b16 %v696
      %v732 = vunpack.c.l.b16 %v697
      %v733 = vunpack.c.h.b16 %v697
      %v734 = vpack.c.b16 %v732, %v730
      %v735 = vpack.c.b16 %v733, %v731
      %vm737 = vcmask 130048
      %v739 = vsel %vm737, %v735, 0
      %741 = vmatprep.subr.bf16.mxu0 %v699
      %742 = vmatpush1.bf16.msra.mxu0 %v698
      %743 = vmatprep.subr.bf16.mxu0 %v701
      %744 = vmatpush1.bf16.msra.mxu0 %v700
      %745 = vmatprep.subr.bf16.mxu0 %v703
      %746 = vmatpush1.bf16.msra.mxu0 %v702
      %747 = vmatprep.subr.bf16.mxu0 %v705
      %748 = vmatpush1.bf16.msra.mxu0 %v704
      %749 = vmatprep.subr.bf16.mxu0 %v707
      %750 = vmatpush1.bf16.msra.mxu0 %v706
      %751 = vmatprep.subr.bf16.mxu0 %v709
      %752 = vmatpush1.bf16.msra.mxu0 %v708
      %753 = vmatprep.subr.bf16.mxu0 %v711
      %754 = vmatpush1.bf16.msra.mxu0 %v710
      %755 = vmatprep.subr.bf16.mxu0 %v713
      %756 = vmatpush1.bf16.msra.mxu0 %v712
      %757 = vmatprep.subr.bf16.mxu0 %v715
      %758 = vmatpush1.bf16.msra.mxu0 %v714
      %759 = vmatprep.subr.bf16.mxu0 0
      %760 = vmatpush1.bf16.msra.mxu0 0
      %761 = vmatprep.subr.bf16.mxu0 0
      %762 = vmatpush1.bf16.msra.mxu0 0
      %763 = vmatprep.subr.bf16.mxu0 0
      %764 = vmatpush1.bf16.msra.mxu0 0
      %765 = vmatprep.subr.bf16.mxu0 0
      %766 = vmatpush1.bf16.msra.mxu0 0
      %767 = vmatprep.subr.bf16.mxu0 0
      %768 = vmatpush1.bf16.msra.mxu0 0
      %769 = vmatprep.subr.bf16.mxu0 0
      %770 = vmatpush1.bf16.msra.mxu0 0
      %771 = vmatprep.subr.bf16.mxu0 0
      %772 = vmatpush1.bf16.msra.mxu0 0
      %773 = vmatprep.mubr.bf16.mxu0 %v739
      %774 = vmatmul.mubr.bf16.gmra.mrb[0].mxu0 %v734
      %v775 = vpop.f32.mrb[0].mxu0
      %v776 = vadd.f32 %v721, %v775
      %v777 = vpop.f32.mrb[0].mxu0
      %v778 = vadd.f32 %v721, %v777
      %v779 = vpop.f32.mrb[0].mxu0
      %v780 = vadd.f32 %v726, %v779
      %v781 = vpop.f32.mrb[0].mxu0
      %v782 = vadd.f32 %v726, %v781
      %783 = vdwg.mxu0
      %vm784 = vcmp.ge.f32.partialorder %v776, 0.0
      %vm785 = vcmp.ge.f32.partialorder %v778, 0.0
      %vm786 = vcmp.ge.f32.partialorder %v780, 0.0
      %vm787 = vcmp.ge.f32.partialorder %v782, 0.0
      %v788 = vmul.f32 %v776, 0.2
      %v789 = vmul.f32 %v778, 0.2
      %v790 = vmul.f32 %v780, 0.2
      %v791 = vmul.f32 %v782, 0.2
      %v792 = vsel %vm784, %v776, %v788
      %v793 = vsel %vm785, %v778, %v789
      %v794 = vsel %vm786, %v780, %v790
      %v795 = vsel %vm787, %v782, %v791
      %796 = vrot.lane.b32.xlu0 %v792, 17
      %v797 = vpop.permute.xlu0 %796
      %798 = vrot.lane.b32.xlu0 %v794, 17
      %v799 = vpop.permute.xlu0 %798
      %800 = vrot.lane.b32.xlu0 %v793, 17
      %v801 = vpop.permute.xlu0 %800
      %802 = vrot.lane.b32.xlu0 %v795, 17
      %v803 = vpop.permute.xlu0 %802
      %v804 = vsel %vm444, %v797, %v801
      %v805 = vsel %vm444, %v799, %v803
      %v806 = vsel %vm444, %v801, %v797
      %v807 = vsel %vm444, %v803, %v799
      %v808 = vmul.f32 %v806, %v453
      %v809 = vmul.f32 %v804, %v457
      %v810 = vmul.f32 %v807, %v453
      %v811 = vmul.f32 %v805, %v457
      %v812 = vpack.c.bf16 %v810, %v808
      %v813 = vpack.c.bf16 %v811, %v809
      %814 = vst [vmem:[#allocation2 + $0x90] sm:$0xff] %v812
      %815 = vst [vmem:[#allocation2 + $0x98] sm:$0xff] %v813
      %816 = vrot.lane.b32.xlu0 %v792, 16
      %v817 = vpop.permute.xlu0 %816
      %818 = vrot.lane.b32.xlu0 %v794, 16
      %v819 = vpop.permute.xlu0 %818
      %820 = vrot.lane.b32.xlu0 %v793, 16
      %v821 = vpop.permute.xlu0 %820
      %822 = vrot.lane.b32.xlu0 %v795, 16
      %v823 = vpop.permute.xlu0 %822
      %v824 = vsel %vm476, %v817, %v821
      %v825 = vsel %vm476, %v819, %v823
      %v826 = vsel %vm476, %v821, %v817
      %v827 = vsel %vm476, %v823, %v819
      %v828 = vmul.f32 %v826, %v485
      %v829 = vmul.f32 %v824, %v489
      %v830 = vmul.f32 %v827, %v485
      %v831 = vmul.f32 %v825, %v489
      %v832 = vpack.c.bf16 %v830, %v828
      %v833 = vpack.c.bf16 %v831, %v829
      %834 = vst [vmem:[#allocation2 + $0xa0] sm:$0xff] %v832
      %835 = vst [vmem:[#allocation2 + $0xa8] sm:$0xff] %v833
      %836 = vrot.lane.b32.xlu0 %v792, 15
      %v837 = vpop.permute.xlu0 %836
      %838 = vrot.lane.b32.xlu0 %v794, 15
      %v839 = vpop.permute.xlu0 %838
      %840 = vrot.lane.b32.xlu0 %v793, 15
      %v841 = vpop.permute.xlu0 %840
      %842 = vrot.lane.b32.xlu0 %v795, 15
      %v843 = vpop.permute.xlu0 %842
      %v844 = vsel %vm508, %v837, %v841
      %v845 = vsel %vm508, %v839, %v843
      %v846 = vsel %vm508, %v841, %v837
      %v847 = vsel %vm508, %v843, %v839
      %v848 = vmul.f32 %v846, %v517
      %v849 = vmul.f32 %v844, %v521
      %v850 = vmul.f32 %v847, %v517
      %v851 = vmul.f32 %v845, %v521
      %v852 = vpack.c.bf16 %v850, %v848
      %v853 = vpack.c.bf16 %v851, %v849
      %854 = vst [vmem:[#allocation2 + $0xb0] sm:$0xff] %v852
      %855 = vst [vmem:[#allocation2 + $0xb8] sm:$0xff] %v853
      %856 = vrot.lane.b32.xlu0 %v792, 1
      %v857 = vpop.permute.xlu0 %856
      %858 = vrot.lane.b32.xlu0 %v794, 1
      %v859 = vpop.permute.xlu0 %858
      %860 = vrot.lane.b32.xlu0 %v793, 1
      %v861 = vpop.permute.xlu0 %860
      %862 = vrot.lane.b32.xlu0 %v795, 1
      %v863 = vpop.permute.xlu0 %862
      %v864 = vsel %vm540, %v857, %v861
      %v865 = vsel %vm540, %v859, %v863
      %v866 = vsel %vm540, %v861, %v857
      %v867 = vsel %vm540, %v863, %v859
      %v868 = vmul.f32 %v866, %v549
      %v869 = vmul.f32 %v864, %v553
      %v870 = vmul.f32 %v867, %v549
      %v871 = vmul.f32 %v865, %v553
      %v872 = vpack.c.bf16 %v870, %v868
      %v873 = vpack.c.bf16 %v871, %v869
      %874 = vst [vmem:[#allocation2 + $0xc0] sm:$0xff] %v872
      %875 = vst [vmem:[#allocation2 + $0xc8] sm:$0xff] %v873
      %v876 = vpack.c.bf16 %v794, %v792
      %v877 = vpack.c.bf16 %v795, %v793
      %878 = vst [vmem:[#allocation2 + $0xd0] sm:$0xff] %v876
      %879 = vst [vmem:[#allocation2 + $0xd8] sm:$0xff] %v877
      %880 = vrot.lane.b32.xlu0 %v792, 127
      %v881 = vpop.permute.xlu0 %880
      %882 = vrot.lane.b32.xlu0 %v794, 127
      %v883 = vpop.permute.xlu0 %882
      %884 = vrot.lane.b32.xlu0 %v793, 127
      %v885 = vpop.permute.xlu0 %884
      %886 = vrot.lane.b32.xlu0 %v795, 127
      %v887 = vpop.permute.xlu0 %886
      %v888 = vsel %vm576, %v881, %v885
      %v889 = vsel %vm576, %v883, %v887
      %v890 = vsel %vm576, %v885, %v881
      %v891 = vsel %vm576, %v887, %v883
      %v892 = vmul.f32 %v888, %v585
      %v893 = vmul.f32 %v890, %v589
      %v894 = vmul.f32 %v889, %v585
      %v895 = vmul.f32 %v891, %v589
      %v896 = vpack.c.bf16 %v894, %v892
      %v897 = vpack.c.bf16 %v895, %v893
      %898 = vst [vmem:[#allocation2 + $0xe0] sm:$0xff] %v896
      %899 = vst [vmem:[#allocation2 + $0xe8] sm:$0xff] %v897
      %900 = vrot.lane.b32.xlu0 %v792, 113
      %v901 = vpop.permute.xlu0 %900
      %902 = vrot.lane.b32.xlu0 %v794, 113
      %v903 = vpop.permute.xlu0 %902
      %904 = vrot.lane.b32.xlu0 %v793, 113
      %v905 = vpop.permute.xlu0 %904
      %906 = vrot.lane.b32.xlu0 %v795, 113
      %v907 = vpop.permute.xlu0 %906
      %v908 = vsel %vm608, %v901, %v905
      %v909 = vsel %vm608, %v903, %v907
      %v910 = vsel %vm608, %v905, %v901
      %v911 = vsel %vm608, %v907, %v903
      %v912 = vmul.f32 %v908, %v617
      %v913 = vmul.f32 %v910, %v621
      %v914 = vmul.f32 %v909, %v617
      %v915 = vmul.f32 %v911, %v621
      %v916 = vpack.c.bf16 %v914, %v912
      %v917 = vpack.c.bf16 %v915, %v913
      %918 = vst [vmem:[#allocation2 + $0xf0] sm:$0xff] %v916
      %919 = vst [vmem:[#allocation2 + $0xf8] sm:$0xff] %v917
      %920 = vrot.lane.b32.xlu0 %v792, 112
      %v921 = vpop.permute.xlu0 %920
      %922 = vrot.lane.b32.xlu0 %v794, 112
      %v923 = vpop.permute.xlu0 %922
      %924 = vrot.lane.b32.xlu0 %v793, 112
      %v925 = vpop.permute.xlu0 %924
      %926 = vrot.lane.b32.xlu0 %v795, 112
      %v927 = vpop.permute.xlu0 %926
      %v928 = vsel %vm640, %v921, %v925
      %v929 = vsel %vm640, %v923, %v927
      %v930 = vsel %vm640, %v925, %v921
      %v931 = vsel %vm640, %v927, %v923
      %v932 = vmul.f32 %v928, %v649
      %v933 = vmul.f32 %v930, %v653
      %v934 = vmul.f32 %v929, %v649
      %v935 = vmul.f32 %v931, %v653
      %v936 = vpack.c.bf16 %v934, %v932
      %v937 = vpack.c.bf16 %v935, %v933
      %938 = vst [vmem:[#allocation2 + $0x100] sm:$0xff] %v936
      %939 = vst [vmem:[#allocation2 + $0x108] sm:$0xff] %v937
      %940 = vrot.lane.b32.xlu0 %v792, 111
      %v941 = vpop.permute.xlu0 %940
      %942 = vrot.lane.b32.xlu0 %v794, 111
      %v943 = vpop.permute.xlu0 %942
      %944 = vrot.lane.b32.xlu0 %v793, 111
      %v945 = vpop.permute.xlu0 %944
      %946 = vrot.lane.b32.xlu0 %v795, 111
      %v947 = vpop.permute.xlu0 %946
      %v948 = vsel %vm672, %v941, %v945
      %v949 = vsel %vm672, %v943, %v947
      %v950 = vsel %vm672, %v945, %v941
      %v951 = vsel %vm672, %v947, %v943
      %v952 = vmul.f32 %v948, %v681
      %v953 = vmul.f32 %v950, %v685
      %v954 = vmul.f32 %v949, %v681
      %v955 = vmul.f32 %v951, %v685
      %v956 = vpack.c.bf16 %v954, %v952
      %v957 = vpack.c.bf16 %v955, %v953
      %958 = vst [vmem:[#allocation2 + $0x110] sm:$0xff] %v956
      %959 = vst [vmem:[#allocation2 + $0x118] sm:$0xff] %v957
      %v960 = vld [vmem:[%s3] sm:$0xff]
      %v961 = vld [vmem:[%s3 + $0x8] sm:$0xf]
      %v962 = vld [vmem:[%s3 + $0xc] sm:$0xff]
      %v963 = vld [vmem:[%s3 + $0x14] sm:$0xf]
      %v964 = vld [vmem:[#allocation2] sm:$0xff]
      %v965 = vld [vmem:[#allocation2 + $0x8] sm:$0xff]
      %v966 = vld [vmem:[#allocation2 + $0x10] sm:$0xff]
      %v967 = vld [vmem:[#allocation2 + $0x18] sm:$0xff]
      %v968 = vld [vmem:[#allocation2 + $0x20] sm:$0xff]
      %v969 = vld [vmem:[#allocation2 + $0x28] sm:$0xff]
      %v970 = vld [vmem:[#allocation2 + $0x30] sm:$0xff]
      %v971 = vld [vmem:[#allocation2 + $0x38] sm:$0xff]
      %v972 = vld [vmem:[#allocation2 + $0x40] sm:$0xff]
      %v973 = vld [vmem:[#allocation2 + $0x48] sm:$0xff]
      %v974 = vld [vmem:[#allocation2 + $0x50] sm:$0xff]
      %v975 = vld [vmem:[#allocation2 + $0x58] sm:$0xff]
      %v976 = vld [vmem:[#allocation2 + $0x60] sm:$0xff]
      %v977 = vld [vmem:[#allocation2 + $0x68] sm:$0xff]
      %v978 = vld [vmem:[#allocation2 + $0x70] sm:$0xff]
      %v979 = vld [vmem:[#allocation2 + $0x78] sm:$0xff]
      %v980 = vld [vmem:[#allocation2 + $0x80] sm:$0xff]
      %v981 = vld [vmem:[#allocation2 + $0x88] sm:$0xff]
      %v982 = vld [vmem:[#allocation2 + $0x90] sm:$0xff]
      %v983 = vld [vmem:[#allocation2 + $0x98] sm:$0xff]
      %v984 = vld [vmem:[#allocation2 + $0xa0] sm:$0xff]
      %v985 = vld [vmem:[#allocation2 + $0xa8] sm:$0xff]
      %v986 = vld [vmem:[#allocation2 + $0xb0] sm:$0xff]
      %v987 = vld [vmem:[#allocation2 + $0xb8] sm:$0xff]
      %v988 = vld [vmem:[#allocation2 + $0xc0] sm:$0xff]
      %v989 = vld [vmem:[#allocation2 + $0xc8] sm:$0xff]
      %v990 = vld [vmem:[#allocation2 + $0xd0] sm:$0xff]
      %v991 = vld [vmem:[#allocation2 + $0xd8] sm:$0xff]
      %v992 = vld [vmem:[#allocation2 + $0xe0] sm:$0xff]
      %v993 = vld [vmem:[#allocation2 + $0xe8] sm:$0xff]
      %v994 = vld [vmem:[#allocation2 + $0xf0] sm:$0xff]
      %v995 = vld [vmem:[#allocation2 + $0xf8] sm:$0xff]
      %v996 = vld [vmem:[#allocation2 + $0x100] sm:$0xff]
      %v997 = vld [vmem:[#allocation2 + $0x108] sm:$0xff]
      %v998 = vld [vmem:[#allocation2 + $0x110] sm:$0xff]
      %v999 = vld [vmem:[#allocation2 + $0x118] sm:$0xff]
      %v1000 = vld [vmem:[%s8] sm:$0xff]
      %v1001 = vld [vmem:[%s8 + $0x8] sm:$0xff]
      %1003 = vset.pattern.permute.xlu0 0
      %1004 = vperm.xlu0 %1003, %v1000
      %v1005 = vpop.permute.xlu0 %1004
      %1008 = vset.pattern.permute.xlu0 0
      %1009 = vperm.xlu0 %1008, %v1001
      %v1010 = vpop.permute.xlu0 %1009
      %v1016 = vunpack.c.l.b16 %v960
      %v1017 = vunpack.c.h.b16 %v960
      %v1018 = vunpack.c.l.b16 %v961
      %v1019 = vunpack.c.l.b16 %v962
      %v1020 = vunpack.c.h.b16 %v962
      %v1021 = vunpack.c.l.b16 %v963
      %v1022 = vpack.c.b16 %v1019, %v1016
      %v1023 = vpack.c.b16 %v1020, %v1017
      %v1024 = vpack.c.b16 %v1021, %v1018
      %vm1027 = vcmask 261120
      %v1029 = vsel %vm1027, %v1024, 0
      %1031 = vmatprep.subr.bf16.mxu0 %v965
      %1032 = vmatpush1.bf16.msra.mxu0 %v964
      %1033 = vmatprep.subr.bf16.mxu0 %v967
      %1034 = vmatpush1.bf16.msra.mxu0 %v966
      %1035 = vmatprep.subr.bf16.mxu0 %v969
      %1036 = vmatpush1.bf16.msra.mxu0 %v968
      %1037 = vmatprep.subr.bf16.mxu0 %v971
      %1038 = vmatpush1.bf16.msra.mxu0 %v970
      %1039 = vmatprep.subr.bf16.mxu0 %v973
      %1040 = vmatpush1.bf16.msra.mxu0 %v972
      %1041 = vmatprep.subr.bf16.mxu0 %v975
      %1042 = vmatpush1.bf16.msra.mxu0 %v974
      %1043 = vmatprep.subr.bf16.mxu0 %v977
      %1044 = vmatpush1.bf16.msra.mxu0 %v976
      %1045 = vmatprep.subr.bf16.mxu0 %v979
      %1046 = vmatpush1.bf16.msra.mxu0 %v978
      %1047 = vmatprep.subr.bf16.mxu0 %v981
      %1048 = vmatpush1.bf16.msra.mxu0 %v980
      %1049 = vmatprep.subr.bf16.mxu0 %v983
      %1050 = vmatpush1.bf16.msra.mxu0 %v982
      %1051 = vmatprep.subr.bf16.mxu0 %v985
      %1052 = vmatpush1.bf16.msra.mxu0 %v984
      %1053 = vmatprep.subr.bf16.mxu0 %v987
      %1054 = vmatpush1.bf16.msra.mxu0 %v986
      %1055 = vmatprep.subr.bf16.mxu0 %v989
      %1056 = vmatpush1.bf16.msra.mxu0 %v988
      %1057 = vmatprep.subr.bf16.mxu0 %v991
      %1058 = vmatpush1.bf16.msra.mxu0 %v990
      %1059 = vmatprep.subr.bf16.mxu0 %v993
      %1060 = vmatpush1.bf16.msra.mxu0 %v992
      %1061 = vmatprep.subr.bf16.mxu0 %v995
      %1062 = vmatpush1.bf16.msra.mxu0 %v994
      %1063 = vmatprep.mubr.bf16.mxu0 %v1023
      %1064 = vmatmul.mubr.bf16.gmra.mrb[0].mxu0 %v1022
      %v1065 = vpop.f32.mrb[0].mxu0
      %v1066 = vadd.f32 %v1005, %v1065
      %v1067 = vpop.f32.mrb[0].mxu0
      %v1068 = vadd.f32 %v1005, %v1067
      %v1069 = vpop.f32.mrb[0].mxu0
      %v1070 = vadd.f32 %v1010, %v1069
      %v1071 = vpop.f32.mrb[0].mxu0
      %v1072 = vadd.f32 %v1010, %v1071
      %1073 = vdwg.mxu0
      %1074 = vmatprep.subr.bf16.mxu0 %v997
      %1075 = vmatpush1.bf16.msra.mxu0 %v996
      %1076 = vmatprep.subr.bf16.mxu0 %v999
      %1077 = vmatpush1.bf16.msra.mxu0 %v998
      %1078 = vmatprep.subr.bf16.mxu0 0
      %1079 = vmatpush1.bf16.msra.mxu0 0
      %1080 = vmatprep.subr.bf16.mxu0 0
      %1081 = vmatpush1.bf16.msra.mxu0 0
      %1082 = vmatprep.subr.bf16.mxu0 0
      %1083 = vmatpush1.bf16.msra.mxu0 0
      %1084 = vmatprep.subr.bf16.mxu0 0
      %1085 = vmatpush1.bf16.msra.mxu0 0
      %1086 = vmatprep.subr.bf16.mxu0 0
      %1087 = vmatpush1.bf16.msra.mxu0 0
      %1088 = vmatprep.subr.bf16.mxu0 0
      %1089 = vmatpush1.bf16.msra.mxu0 0
      %1090 = vmatprep.subr.bf16.mxu0 0
      %1091 = vmatpush1.bf16.msra.mxu0 0
      %1092 = vmatprep.subr.bf16.mxu0 0
      %1093 = vmatpush1.bf16.msra.mxu0 0
      %1094 = vmatprep.subr.bf16.mxu0 0
      %1095 = vmatpush1.bf16.msra.mxu0 0
      %1096 = vmatprep.subr.bf16.mxu0 0
      %1097 = vmatpush1.bf16.msra.mxu0 0
      %1098 = vmatprep.subr.bf16.mxu0 0
      %1099 = vmatpush1.bf16.msra.mxu0 0
      %1100 = vmatprep.subr.bf16.mxu0 0
      %1101 = vmatpush1.bf16.msra.mxu0 0
      %1102 = vmatprep.subr.bf16.mxu0 0
      %1103 = vmatpush1.bf16.msra.mxu0 0
      %1104 = vmatprep.subr.bf16.mxu0 0
      %1105 = vmatpush1.bf16.msra.mxu0 0
      %1106 = vmatprep.mubr.bf16.mxu0 0
      %1107 = vmatmul.mubr.bf16.gmra.mrb[0].mxu0 %v1029
      %v1108 = vpop.f32.mrb[0].mxu0
      %v1109 = vadd.f32 %v1066, %v1108
      %v1110 = vpop.f32.mrb[0].mxu0
      %v1111 = vadd.f32 %v1068, %v1110
      %v1112 = vpop.f32.mrb[0].mxu0
      %v1113 = vadd.f32 %v1070, %v1112
      %v1114 = vpop.f32.mrb[0].mxu0
      %v1115 = vadd.f32 %v1072, %v1114
      %1116 = vdwg.mxu0
      %vm1117 = vcmp.ge.f32.partialorder %v1109, 0.0
      %vm1118 = vcmp.ge.f32.partialorder %v1111, 0.0
      %vm1119 = vcmp.ge.f32.partialorder %v1113, 0.0
      %vm1120 = vcmp.ge.f32.partialorder %v1115, 0.0
      %v1121 = vmul.f32 %v1109, 0.2
      %v1122 = vmul.f32 %v1111, 0.2
      %v1123 = vmul.f32 %v1113, 0.2
      %v1124 = vmul.f32 %v1115, 0.2
      %v1125 = vsel %vm1117, %v1109, %v1121
      %v1126 = vsel %vm1118, %v1111, %v1122
      %v1127 = vsel %vm1119, %v1113, %v1123
      %v1128 = vsel %vm1120, %v1115, %v1124
      %1129 = vrot.lane.b32.xlu0 %v1125, 17
      %v1130 = vpop.permute.xlu0 %1129
      %1131 = vrot.lane.b32.xlu0 %v1127, 17
      %v1132 = vpop.permute.xlu0 %1131
      %1133 = vrot.lane.b32.xlu0 %v1126, 17
      %v1134 = vpop.permute.xlu0 %1133
      %1135 = vrot.lane.b32.xlu0 %v1128, 17
      %v1136 = vpop.permute.xlu0 %1135
      %v1137 = vsel %vm444, %v1130, %v1134
      %v1138 = vsel %vm444, %v1132, %v1136
      %v1139 = vsel %vm444, %v1134, %v1130
      %v1140 = vsel %vm444, %v1136, %v1132
      %v1141 = vmul.f32 %v1139, %v453
      %v1142 = vmul.f32 %v1137, %v457
      %v1143 = vmul.f32 %v1140, %v453
      %v1144 = vmul.f32 %v1138, %v457
      %v1145 = vpack.c.bf16 %v1143, %v1141
      %v1146 = vpack.c.bf16 %v1144, %v1142
      %1147 = vst [vmem:[#allocation2 + $0x120] sm:$0xff] %v1145
      %1148 = vst [vmem:[#allocation2 + $0x128] sm:$0xff] %v1146
      %1149 = vrot.lane.b32.xlu0 %v1125, 16
      %v1150 = vpop.permute.xlu0 %1149
      %1151 = vrot.lane.b32.xlu0 %v1127, 16
      %v1152 = vpop.permute.xlu0 %1151
      %1153 = vrot.lane.b32.xlu0 %v1126, 16
      %v1154 = vpop.permute.xlu0 %1153
      %1155 = vrot.lane.b32.xlu0 %v1128, 16
      %v1156 = vpop.permute.xlu0 %1155
      %v1157 = vsel %vm476, %v1150, %v1154
      %v1158 = vsel %vm476, %v1152, %v1156
      %v1159 = vsel %vm476, %v1154, %v1150
      %v1160 = vsel %vm476, %v1156, %v1152
      %v1161 = vmul.f32 %v1159, %v485
      %v1162 = vmul.f32 %v1157, %v489
      %v1163 = vmul.f32 %v1160, %v485
      %v1164 = vmul.f32 %v1158, %v489
      %v1165 = vpack.c.bf16 %v1163, %v1161
      %v1166 = vpack.c.bf16 %v1164, %v1162
      %1167 = vst [vmem:[#allocation2 + $0x130] sm:$0xff] %v1165
      %1168 = vst [vmem:[#allocation2 + $0x138] sm:$0xff] %v1166
      %1169 = vrot.lane.b32.xlu0 %v1125, 15
      %v1170 = vpop.permute.xlu0 %1169
      %1171 = vrot.lane.b32.xlu0 %v1127, 15
      %v1172 = vpop.permute.xlu0 %1171
      %1173 = vrot.lane.b32.xlu0 %v1126, 15
      %v1174 = vpop.permute.xlu0 %1173
      %1175 = vrot.lane.b32.xlu0 %v1128, 15
      %v1176 = vpop.permute.xlu0 %1175
      %v1177 = vsel %vm508, %v1170, %v1174
      %v1178 = vsel %vm508, %v1172, %v1176
      %v1179 = vsel %vm508, %v1174, %v1170
      %v1180 = vsel %vm508, %v1176, %v1172
      %v1181 = vmul.f32 %v1179, %v517
      %v1182 = vmul.f32 %v1177, %v521
      %v1183 = vmul.f32 %v1180, %v517
      %v1184 = vmul.f32 %v1178, %v521
      %v1185 = vpack.c.bf16 %v1183, %v1181
      %v1186 = vpack.c.bf16 %v1184, %v1182
      %1187 = vst [vmem:[#allocation2 + $0x140] sm:$0xff] %v1185
      %1188 = vst [vmem:[#allocation2 + $0x148] sm:$0xff] %v1186
      %1189 = vrot.lane.b32.xlu0 %v1125, 1
      %v1190 = vpop.permute.xlu0 %1189
      %1191 = vrot.lane.b32.xlu0 %v1127, 1
      %v1192 = vpop.permute.xlu0 %1191
      %1193 = vrot.lane.b32.xlu0 %v1126, 1
      %v1194 = vpop.permute.xlu0 %1193
      %1195 = vrot.lane.b32.xlu0 %v1128, 1
      %v1196 = vpop.permute.xlu0 %1195
      %v1197 = vsel %vm540, %v1190, %v1194
      %v1198 = vsel %vm540, %v1192, %v1196
      %v1199 = vsel %vm540, %v1194, %v1190
      %v1200 = vsel %vm540, %v1196, %v1192
      %v1201 = vmul.f32 %v1199, %v549
      %v1202 = vmul.f32 %v1197, %v553
      %v1203 = vmul.f32 %v1200, %v549
      %v1204 = vmul.f32 %v1198, %v553
      %v1205 = vpack.c.bf16 %v1203, %v1201
      %v1206 = vpack.c.bf16 %v1204, %v1202
      %1207 = vst [vmem:[#allocation2 + $0x150] sm:$0xff] %v1205
      %1208 = vst [vmem:[#allocation2 + $0x158] sm:$0xff] %v1206
      %v1209 = vpack.c.bf16 %v1127, %v1125
      %v1210 = vpack.c.bf16 %v1128, %v1126
      %1211 = vst [vmem:[#allocation2 + $0x160] sm:$0xff] %v1209
      %1212 = vst [vmem:[#allocation2 + $0x168] sm:$0xff] %v1210
      %1213 = vrot.lane.b32.xlu0 %v1125, 127
      %v1214 = vpop.permute.xlu0 %1213
      %1215 = vrot.lane.b32.xlu0 %v1127, 127
      %v1216 = vpop.permute.xlu0 %1215
      %1217 = vrot.lane.b32.xlu0 %v1126, 127
      %v1218 = vpop.permute.xlu0 %1217
      %1219 = vrot.lane.b32.xlu0 %v1128, 127
      %v1220 = vpop.permute.xlu0 %1219
      %v1221 = vsel %vm576, %v1214, %v1218
      %v1222 = vsel %vm576, %v1216, %v1220
      %v1223 = vsel %vm576, %v1218, %v1214
      %v1224 = vsel %vm576, %v1220, %v1216
      %v1225 = vmul.f32 %v1221, %v585
      %v1226 = vmul.f32 %v1223, %v589
      %v1227 = vmul.f32 %v1222, %v585
      %v1228 = vmul.f32 %v1224, %v589
      %v1229 = vpack.c.bf16 %v1227, %v1225
      %v1230 = vpack.c.bf16 %v1228, %v1226
      %1231 = vst [vmem:[#allocation2 + $0x170] sm:$0xff] %v1229
      %1232 = vst [vmem:[#allocation2 + $0x178] sm:$0xff] %v1230
      %1233 = vrot.lane.b32.xlu0 %v1125, 113
      %v1234 = vpop.permute.xlu0 %1233
      %1235 = vrot.lane.b32.xlu0 %v1127, 113
      %v1236 = vpop.permute.xlu0 %1235
      %1237 = vrot.lane.b32.xlu0 %v1126, 113
      %v1238 = vpop.permute.xlu0 %1237
      %1239 = vrot.lane.b32.xlu0 %v1128, 113
      %v1240 = vpop.permute.xlu0 %1239
      %v1241 = vsel %vm608, %v1234, %v1238
      %v1242 = vsel %vm608, %v1236, %v1240
      %v1243 = vsel %vm608, %v1238, %v1234
      %v1244 = vsel %vm608, %v1240, %v1236
      %v1245 = vmul.f32 %v1241, %v617
      %v1246 = vmul.f32 %v1243, %v621
      %v1247 = vmul.f32 %v1242, %v617
      %v1248 = vmul.f32 %v1244, %v621
      %v1249 = vpack.c.bf16 %v1247, %v1245
      %v1250 = vpack.c.bf16 %v1248, %v1246
      %1251 = vst [vmem:[#allocation2 + $0x180] sm:$0xff] %v1249
      %1252 = vst [vmem:[#allocation2 + $0x188] sm:$0xff] %v1250
      %1253 = vrot.lane.b32.xlu0 %v1125, 112
      %v1254 = vpop.permute.xlu0 %1253
      %1255 = vrot.lane.b32.xlu0 %v1127, 112
      %v1256 = vpop.permute.xlu0 %1255
      %1257 = vrot.lane.b32.xlu0 %v1126, 112
      %v1258 = vpop.permute.xlu0 %1257
      %1259 = vrot.lane.b32.xlu0 %v1128, 112
      %v1260 = vpop.permute.xlu0 %1259
      %v1261 = vsel %vm640, %v1254, %v1258
      %v1262 = vsel %vm640, %v1256, %v1260
      %v1263 = vsel %vm640, %v1258, %v1254
      %v1264 = vsel %vm640, %v1260, %v1256
      %v1265 = vmul.f32 %v1261, %v649
      %v1266 = vmul.f32 %v1263, %v653
      %v1267 = vmul.f32 %v1262, %v649
      %v1268 = vmul.f32 %v1264, %v653
      %v1269 = vpack.c.bf16 %v1267, %v1265
      %v1270 = vpack.c.bf16 %v1268, %v1266
      %1271 = vst [vmem:[#allocation2 + $0x190] sm:$0xff] %v1269
      %1272 = vst [vmem:[#allocation2 + $0x198] sm:$0xff] %v1270
      %1273 = vrot.lane.b32.xlu0 %v1125, 111
      %v1274 = vpop.permute.xlu0 %1273
      %1275 = vrot.lane.b32.xlu0 %v1127, 111
      %v1276 = vpop.permute.xlu0 %1275
      %1277 = vrot.lane.b32.xlu0 %v1126, 111
      %v1278 = vpop.permute.xlu0 %1277
      %1279 = vrot.lane.b32.xlu0 %v1128, 111
      %v1280 = vpop.permute.xlu0 %1279
      %v1281 = vsel %vm672, %v1274, %v1278
      %v1282 = vsel %vm672, %v1276, %v1280
      %v1283 = vsel %vm672, %v1278, %v1274
      %v1284 = vsel %vm672, %v1280, %v1276
      %v1285 = vmul.f32 %v1281, %v681
      %v1286 = vmul.f32 %v1283, %v685
      %v1287 = vmul.f32 %v1282, %v681
      %v1288 = vmul.f32 %v1284, %v685
      %v1289 = vpack.c.bf16 %v1287, %v1285
      %v1290 = vpack.c.bf16 %v1288, %v1286
      %1291 = vst [vmem:[#allocation2 + $0x1a0] sm:$0xff] %v1289
      %1292 = vst [vmem:[#allocation2 + $0x1a8] sm:$0xff] %v1290
      %v1293 = vld [vmem:[%s4] sm:$0xff]
      %v1294 = vld [vmem:[%s4 + $0x8] sm:$0xff]
      %v1295 = vld [vmem:[%s4 + $0x10] sm:$0xff]
      %v1296 = vld [vmem:[%s4 + $0x18] sm:$0xff]
      %v1297 = vld [vmem:[#allocation2] sm:$0xff]
      %v1298 = vld [vmem:[#allocation2 + $0x8] sm:$0xff]
      %v1299 = vld [vmem:[#allocation2 + $0x10] sm:$0xff]
      %v1300 = vld [vmem:[#allocation2 + $0x18] sm:$0xff]
      %v1301 = vld [vmem:[#allocation2 + $0x20] sm:$0xff]
      %v1302 = vld [vmem:[#allocation2 + $0x28] sm:$0xff]
      %v1303 = vld [vmem:[#allocation2 + $0x30] sm:$0xff]
      %v1304 = vld [vmem:[#allocation2 + $0x38] sm:$0xff]
      %v1305 = vld [vmem:[#allocation2 + $0x40] sm:$0xff]
      %v1306 = vld [vmem:[#allocation2 + $0x48] sm:$0xff]
      %v1307 = vld [vmem:[#allocation2 + $0x50] sm:$0xff]
      %v1308 = vld [vmem:[#allocation2 + $0x58] sm:$0xff]
      %v1309 = vld [vmem:[#allocation2 + $0x60] sm:$0xff]
      %v1310 = vld [vmem:[#allocation2 + $0x68] sm:$0xff]
      %v1311 = vld [vmem:[#allocation2 + $0x70] sm:$0xff]
      %v1312 = vld [vmem:[#allocation2 + $0x78] sm:$0xff]
      %v1313 = vld [vmem:[#allocation2 + $0x80] sm:$0xff]
      %v1314 = vld [vmem:[#allocation2 + $0x88] sm:$0xff]
      %v1315 = vld [vmem:[#allocation2 + $0x90] sm:$0xff]
      %v1316 = vld [vmem:[#allocation2 + $0x98] sm:$0xff]
      %v1317 = vld [vmem:[#allocation2 + $0xa0] sm:$0xff]
      %v1318 = vld [vmem:[#allocation2 + $0xa8] sm:$0xff]
      %v1319 = vld [vmem:[#allocation2 + $0xb0] sm:$0xff]
      %v1320 = vld [vmem:[#allocation2 + $0xb8] sm:$0xff]
      %v1321 = vld [vmem:[#allocation2 + $0xc0] sm:$0xff]
      %v1322 = vld [vmem:[#allocation2 + $0xc8] sm:$0xff]
      %v1323 = vld [vmem:[#allocation2 + $0xd0] sm:$0xff]
      %v1324 = vld [vmem:[#allocation2 + $0xd8] sm:$0xff]
      %v1325 = vld [vmem:[#allocation2 + $0xe0] sm:$0xff]
      %v1326 = vld [vmem:[#allocation2 + $0xe8] sm:$0xff]
      %v1327 = vld [vmem:[#allocation2 + $0xf0] sm:$0xff]
      %v1328 = vld [vmem:[#allocation2 + $0xf8] sm:$0xff]
      %v1329 = vld [vmem:[#allocation2 + $0x100] sm:$0xff]
      %v1330 = vld [vmem:[#allocation2 + $0x108] sm:$0xff]
      %v1331 = vld [vmem:[#allocation2 + $0x110] sm:$0xff]
      %v1332 = vld [vmem:[#allocation2 + $0x118] sm:$0xff]
      %v1333 = vld [vmem:[#allocation2 + $0x120] sm:$0xff]
      %v1334 = vld [vmem:[#allocation2 + $0x128] sm:$0xff]
      %v1335 = vld [vmem:[#allocation2 + $0x130] sm:$0xff]
      %v1336 = vld [vmem:[#allocation2 + $0x138] sm:$0xff]
      %v1337 = vld [vmem:[#allocation2 + $0x140] sm:$0xff]
      %v1338 = vld [vmem:[#allocation2 + $0x148] sm:$0xff]
      %v1339 = vld [vmem:[#allocation2 + $0x150] sm:$0xff]
      %v1340 = vld [vmem:[#allocation2 + $0x158] sm:$0xff]
      %v1341 = vld [vmem:[#allocation2 + $0x160] sm:$0xff]
      %v1342 = vld [vmem:[#allocation2 + $0x168] sm:$0xff]
      %v1343 = vld [vmem:[#allocation2 + $0x170] sm:$0xff]
      %v1344 = vld [vmem:[#allocation2 + $0x178] sm:$0xff]
      %v1345 = vld [vmem:[#allocation2 + $0x180] sm:$0xff]
      %v1346 = vld [vmem:[#allocation2 + $0x188] sm:$0xff]
      %v1347 = vld [vmem:[#allocation2 + $0x190] sm:$0xff]
      %v1348 = vld [vmem:[#allocation2 + $0x198] sm:$0xff]
      %v1349 = vld [vmem:[#allocation2 + $0x1a0] sm:$0xff]
      %v1350 = vld [vmem:[#allocation2 + $0x1a8] sm:$0xff]
      %v1351 = vld [vmem:[%s9] sm:$0xff]
      %v1352 = vld [vmem:[%s9 + $0x8] sm:$0xff]
      %1354 = vset.pattern.permute.xlu0 0
      %1355 = vperm.xlu0 %1354, %v1351
      %v1356 = vpop.permute.xlu0 %1355
      %1359 = vset.pattern.permute.xlu0 0
      %1360 = vperm.xlu0 %1359, %v1352
      %v1361 = vpop.permute.xlu0 %1360
      %v1367 = vunpack.c.l.b16 %v1293
      %v1368 = vunpack.c.h.b16 %v1293
      %v1369 = vunpack.c.l.b16 %v1294
      %v1370 = vunpack.c.h.b16 %v1294
      %v1371 = vunpack.c.l.b16 %v1295
      %v1372 = vunpack.c.h.b16 %v1295
      %v1373 = vunpack.c.l.b16 %v1296
      %v1374 = vunpack.c.h.b16 %v1296
      %v1375 = vpack.c.b16 %v1371, %v1367
      %v1376 = vpack.c.b16 %v1372, %v1368
      %v1377 = vpack.c.b16 %v1373, %v1369
      %v1378 = vpack.c.b16 %v1374, %v1370
      %vm1382 = vcmask 392192
      %v1384 = vsel %vm1382, %v1378, 0
      %1386 = vmatprep.subr.bf16.mxu0 %v1298
      %1387 = vmatpush1.bf16.msra.mxu0 %v1297
      %1388 = vmatprep.subr.bf16.mxu0 %v1300
      %1389 = vmatpush1.bf16.msra.mxu0 %v1299
      %1390 = vmatprep.subr.bf16.mxu0 %v1302
      %1391 = vmatpush1.bf16.msra.mxu0 %v1301
      %1392 = vmatprep.subr.bf16.mxu0 %v1304
      %1393 = vmatpush1.bf16.msra.mxu0 %v1303
      %1394 = vmatprep.subr.bf16.mxu0 %v1306
      %1395 = vmatpush1.bf16.msra.mxu0 %v1305
      %1396 = vmatprep.subr.bf16.mxu0 %v1308
      %1397 = vmatpush1.bf16.msra.mxu0 %v1307
      %1398 = vmatprep.subr.bf16.mxu0 %v1310
      %1399 = vmatpush1.bf16.msra.mxu0 %v1309
      %1400 = vmatprep.subr.bf16.mxu0 %v1312
      %1401 = vmatpush1.bf16.msra.mxu0 %v1311
      %1402 = vmatprep.subr.bf16.mxu0 %v1314
      %1403 = vmatpush1.bf16.msra.mxu0 %v1313
      %1404 = vmatprep.subr.bf16.mxu0 %v1316
      %1405 = vmatpush1.bf16.msra.mxu0 %v1315
      %1406 = vmatprep.subr.bf16.mxu0 %v1318
      %1407 = vmatpush1.bf16.msra.mxu0 %v1317
      %1408 = vmatprep.subr.bf16.mxu0 %v1320
      %1409 = vmatpush1.bf16.msra.mxu0 %v1319
      %1410 = vmatprep.subr.bf16.mxu0 %v1322
      %1411 = vmatpush1.bf16.msra.mxu0 %v1321
      %1412 = vmatprep.subr.bf16.mxu0 %v1324
      %1413 = vmatpush1.bf16.msra.mxu0 %v1323
      %1414 = vmatprep.subr.bf16.mxu0 %v1326
      %1415 = vmatpush1.bf16.msra.mxu0 %v1325
      %1416 = vmatprep.subr.bf16.mxu0 %v1328
      %1417 = vmatpush1.bf16.msra.mxu0 %v1327
      %1418 = vmatprep.mubr.bf16.mxu0 %v1376
      %1419 = vmatmul.mubr.bf16.gmra.mrb[0].mxu0 %v1375
      %v1420 = vpop.f32.mrb[0].mxu0
      %v1421 = vadd.f32 %v1356, %v1420
      %v1422 = vpop.f32.mrb[0].mxu0
      %v1423 = vadd.f32 %v1356, %v1422
      %v1424 = vpop.f32.mrb[0].mxu0
      %v1425 = vadd.f32 %v1361, %v1424
      %v1426 = vpop.f32.mrb[0].mxu0
      %v1427 = vadd.f32 %v1361, %v1426
      %1428 = vdwg.mxu0
      %1429 = vmatprep.subr.bf16.mxu0 %v1330
      %1430 = vmatpush1.bf16.msra.mxu0 %v1329
      %1431 = vmatprep.subr.bf16.mxu0 %v1332
      %1432 = vmatpush1.bf16.msra.mxu0 %v1331
      %1433 = vmatprep.subr.bf16.mxu0 %v1334
      %1434 = vmatpush1.bf16.msra.mxu0 %v1333
      %1435 = vmatprep.subr.bf16.mxu0 %v1336
      %1436 = vmatpush1.bf16.msra.mxu0 %v1335
      %1437 = vmatprep.subr.bf16.mxu0 %v1338
      %1438 = vmatpush1.bf16.msra.mxu0 %v1337
      %1439 = vmatprep.subr.bf16.mxu0 %v1340
      %1440 = vmatpush1.bf16.msra.mxu0 %v1339
      %1441 = vmatprep.subr.bf16.mxu0 %v1342
      %1442 = vmatpush1.bf16.msra.mxu0 %v1341
      %1443 = vmatprep.subr.bf16.mxu0 %v1344
      %1444 = vmatpush1.bf16.msra.mxu0 %v1343
      %1445 = vmatprep.subr.bf16.mxu0 %v1346
      %1446 = vmatpush1.bf16.msra.mxu0 %v1345
      %1447 = vmatprep.subr.bf16.mxu0 %v1348
      %1448 = vmatpush1.bf16.msra.mxu0 %v1347
      %1449 = vmatprep.subr.bf16.mxu0 %v1350
      %1450 = vmatpush1.bf16.msra.mxu0 %v1349
      %1451 = vmatprep.subr.bf16.mxu0 0
      %1452 = vmatpush1.bf16.msra.mxu0 0
      %1453 = vmatprep.subr.bf16.mxu0 0
      %1454 = vmatpush1.bf16.msra.mxu0 0
      %1455 = vmatprep.subr.bf16.mxu0 0
      %1456 = vmatpush1.bf16.msra.mxu0 0
      %1457 = vmatprep.subr.bf16.mxu0 0
      %1458 = vmatpush1.bf16.msra.mxu0 0
      %1459 = vmatprep.subr.bf16.mxu0 0
      %1460 = vmatpush1.bf16.msra.mxu0 0
      %1461 = vmatprep.mubr.bf16.mxu0 %v1384
      %1462 = vmatmul.mubr.bf16.gmra.mrb[0].mxu0 %v1377
      %v1463 = vpop.f32.mrb[0].mxu0
      %v1464 = vadd.f32 %v1421, %v1463
      %v1465 = vpop.f32.mrb[0].mxu0
      %v1466 = vadd.f32 %v1423, %v1465
      %v1467 = vpop.f32.mrb[0].mxu0
      %v1468 = vadd.f32 %v1425, %v1467
      %v1469 = vpop.f32.mrb[0].mxu0
      %v1470 = vadd.f32 %v1427, %v1469
      %1471 = vdwg.mxu0
      %vm1472 = vcmp.ge.f32.partialorder %v1464, 0.0
      %vm1473 = vcmp.ge.f32.partialorder %v1466, 0.0
      %vm1474 = vcmp.ge.f32.partialorder %v1468, 0.0
      %vm1475 = vcmp.ge.f32.partialorder %v1470, 0.0
      %v1476 = vmul.f32 %v1464, 0.2
      %v1477 = vmul.f32 %v1466, 0.2
      %v1478 = vmul.f32 %v1468, 0.2
      %v1479 = vmul.f32 %v1470, 0.2
      %v1480 = vsel %vm1472, %v1464, %v1476
      %v1481 = vsel %vm1473, %v1466, %v1477
      %v1482 = vsel %vm1474, %v1468, %v1478
      %v1483 = vsel %vm1475, %v1470, %v1479
      %1484 = vrot.lane.b32.xlu0 %v1480, 17
      %v1485 = vpop.permute.xlu0 %1484
      %1486 = vrot.lane.b32.xlu0 %v1482, 17
      %v1487 = vpop.permute.xlu0 %1486
      %1488 = vrot.lane.b32.xlu0 %v1481, 17
      %v1489 = vpop.permute.xlu0 %1488
      %1490 = vrot.lane.b32.xlu0 %v1483, 17
      %v1491 = vpop.permute.xlu0 %1490
      %v1492 = vsel %vm444, %v1485, %v1489
      %v1493 = vsel %vm444, %v1487, %v1491
      %v1494 = vsel %vm444, %v1489, %v1485
      %v1495 = vsel %vm444, %v1491, %v1487
      %v1496 = vmul.f32 %v1494, %v453
      %v1497 = vmul.f32 %v1492, %v457
      %v1498 = vmul.f32 %v1495, %v453
      %v1499 = vmul.f32 %v1493, %v457
      %v1500 = vpack.c.bf16 %v1498, %v1496
      %v1501 = vpack.c.bf16 %v1499, %v1497
      %1502 = vst [vmem:[#allocation2 + $0x1b0] sm:$0xff] %v1500
      %1503 = vst [vmem:[#allocation2 + $0x1b8] sm:$0xff] %v1501
      %1504 = vrot.lane.b32.xlu0 %v1480, 16
      %v1505 = vpop.permute.xlu0 %1504
      %1506 = vrot.lane.b32.xlu0 %v1482, 16
      %v1507 = vpop.permute.xlu0 %1506
      %1508 = vrot.lane.b32.xlu0 %v1481, 16
      %v1509 = vpop.permute.xlu0 %1508
      %1510 = vrot.lane.b32.xlu0 %v1483, 16
      %v1511 = vpop.permute.xlu0 %1510
      %v1512 = vsel %vm476, %v1505, %v1509
      %v1513 = vsel %vm476, %v1507, %v1511
      %v1514 = vsel %vm476, %v1509, %v1505
      %v1515 = vsel %vm476, %v1511, %v1507
      %v1516 = vmul.f32 %v1514, %v485
      %v1517 = vmul.f32 %v1512, %v489
      %v1518 = vmul.f32 %v1515, %v485
      %v1519 = vmul.f32 %v1513, %v489
      %v1520 = vpack.c.bf16 %v1518, %v1516
      %v1521 = vpack.c.bf16 %v1519, %v1517
      %1522 = vst [vmem:[#allocation2 + $0x1c0] sm:$0xff] %v1520
      %1523 = vst [vmem:[#allocation2 + $0x1c8] sm:$0xff] %v1521
      %1524 = vrot.lane.b32.xlu0 %v1480, 15
      %v1525 = vpop.permute.xlu0 %1524
      %1526 = vrot.lane.b32.xlu0 %v1482, 15
      %v1527 = vpop.permute.xlu0 %1526
      %1528 = vrot.lane.b32.xlu0 %v1481, 15
      %v1529 = vpop.permute.xlu0 %1528
      %1530 = vrot.lane.b32.xlu0 %v1483, 15
      %v1531 = vpop.permute.xlu0 %1530
      %v1532 = vsel %vm508, %v1525, %v1529
      %v1533 = vsel %vm508, %v1527, %v1531
      %v1534 = vsel %vm508, %v1529, %v1525
      %v1535 = vsel %vm508, %v1531, %v1527
      %v1536 = vmul.f32 %v1534, %v517
      %v1537 = vmul.f32 %v1532, %v521
      %v1538 = vmul.f32 %v1535, %v517
      %v1539 = vmul.f32 %v1533, %v521
      %v1540 = vpack.c.bf16 %v1538, %v1536
      %v1541 = vpack.c.bf16 %v1539, %v1537
      %1542 = vst [vmem:[#allocation2 + $0x1d0] sm:$0xff] %v1540
      %1543 = vst [vmem:[#allocation2 + $0x1d8] sm:$0xff] %v1541
      %1544 = vrot.lane.b32.xlu0 %v1480, 1
      %v1545 = vpop.permute.xlu0 %1544
      %1546 = vrot.lane.b32.xlu0 %v1482, 1
      %v1547 = vpop.permute.xlu0 %1546
      %1548 = vrot.lane.b32.xlu0 %v1481, 1
      %v1549 = vpop.permute.xlu0 %1548
      %1550 = vrot.lane.b32.xlu0 %v1483, 1
      %v1551 = vpop.permute.xlu0 %1550
      %v1552 = vsel %vm540, %v1545, %v1549
      %v1553 = vsel %vm540, %v1547, %v1551
      %v1554 = vsel %vm540, %v1549, %v1545
      %v1555 = vsel %vm540, %v1551, %v1547
      %v1556 = vmul.f32 %v1554, %v549
      %v1557 = vmul.f32 %v1552, %v553
      %v1558 = vmul.f32 %v1555, %v549
      %v1559 = vmul.f32 %v1553, %v553
      %v1560 = vpack.c.bf16 %v1558, %v1556
      %v1561 = vpack.c.bf16 %v1559, %v1557
      %1562 = vst [vmem:[#allocation2 + $0x1e0] sm:$0xff] %v1560
      %1563 = vst [vmem:[#allocation2 + $0x1e8] sm:$0xff] %v1561
      %v1564 = vpack.c.bf16 %v1482, %v1480
      %v1565 = vpack.c.bf16 %v1483, %v1481
      %1566 = vst [vmem:[#allocation2 + $0x1f0] sm:$0xff] %v1564
      %1567 = vst [vmem:[#allocation2 + $0x1f8] sm:$0xff] %v1565
      %1568 = vrot.lane.b32.xlu0 %v1480, 127
      %v1569 = vpop.permute.xlu0 %1568
      %1570 = vrot.lane.b32.xlu0 %v1482, 127
      %v1571 = vpop.permute.xlu0 %1570
      %1572 = vrot.lane.b32.xlu0 %v1481, 127
      %v1573 = vpop.permute.xlu0 %1572
      %1574 = vrot.lane.b32.xlu0 %v1483, 127
      %v1575 = vpop.permute.xlu0 %1574
      %v1576 = vsel %vm576, %v1569, %v1573
      %v1577 = vsel %vm576, %v1571, %v1575
      %v1578 = vsel %vm576, %v1573, %v1569
      %v1579 = vsel %vm576, %v1575, %v1571
      %v1580 = vmul.f32 %v1576, %v585
      %v1581 = vmul.f32 %v1578, %v589
      %v1582 = vmul.f32 %v1577, %v585
      %v1583 = vmul.f32 %v1579, %v589
      %v1584 = vpack.c.bf16 %v1582, %v1580
      %v1585 = vpack.c.bf16 %v1583, %v1581
      %1586 = vst [vmem:[#allocation2 + $0x200] sm:$0xff] %v1584
      %1587 = vst [vmem:[#allocation2 + $0x208] sm:$0xff] %v1585
      %1588 = vrot.lane.b32.xlu0 %v1480, 113
      %v1589 = vpop.permute.xlu0 %1588
      %1590 = vrot.lane.b32.xlu0 %v1482, 113
      %v1591 = vpop.permute.xlu0 %1590
      %1592 = vrot.lane.b32.xlu0 %v1481, 113
      %v1593 = vpop.permute.xlu0 %1592
      %1594 = vrot.lane.b32.xlu0 %v1483, 113
      %v1595 = vpop.permute.xlu0 %1594
      %v1596 = vsel %vm608, %v1589, %v1593
      %v1597 = vsel %vm608, %v1591, %v1595
      %v1598 = vsel %vm608, %v1593, %v1589
      %v1599 = vsel %vm608, %v1595, %v1591
      %v1600 = vmul.f32 %v1596, %v617
      %v1601 = vmul.f32 %v1598, %v621
      %v1602 = vmul.f32 %v1597, %v617
      %v1603 = vmul.f32 %v1599, %v621
      %v1604 = vpack.c.bf16 %v1602, %v1600
      %v1605 = vpack.c.bf16 %v1603, %v1601
      %1606 = vst [vmem:[#allocation2 + $0x210] sm:$0xff] %v1604
      %1607 = vst [vmem:[#allocation2 + $0x218] sm:$0xff] %v1605
      %1608 = vrot.lane.b32.xlu0 %v1480, 112
      %v1609 = vpop.permute.xlu0 %1608
      %1610 = vrot.lane.b32.xlu0 %v1482, 112
      %v1611 = vpop.permute.xlu0 %1610
      %1612 = vrot.lane.b32.xlu0 %v1481, 112
      %v1613 = vpop.permute.xlu0 %1612
      %1614 = vrot.lane.b32.xlu0 %v1483, 112
      %v1615 = vpop.permute.xlu0 %1614
      %v1616 = vsel %vm640, %v1609, %v1613
      %v1617 = vsel %vm640, %v1611, %v1615
      %v1618 = vsel %vm640, %v1613, %v1609
      %v1619 = vsel %vm640, %v1615, %v1611
      %v1620 = vmul.f32 %v1616, %v649
      %v1621 = vmul.f32 %v1618, %v653
      %v1622 = vmul.f32 %v1617, %v649
      %v1623 = vmul.f32 %v1619, %v653
      %v1624 = vpack.c.bf16 %v1622, %v1620
      %v1625 = vpack.c.bf16 %v1623, %v1621
      %1626 = vst [vmem:[#allocation2 + $0x220] sm:$0xff] %v1624
      %1627 = vst [vmem:[#allocation2 + $0x228] sm:$0xff] %v1625
      %1628 = vrot.lane.b32.xlu0 %v1480, 111
      %v1629 = vpop.permute.xlu0 %1628
      %1630 = vrot.lane.b32.xlu0 %v1482, 111
      %v1631 = vpop.permute.xlu0 %1630
      %1632 = vrot.lane.b32.xlu0 %v1481, 111
      %v1633 = vpop.permute.xlu0 %1632
      %1634 = vrot.lane.b32.xlu0 %v1483, 111
      %v1635 = vpop.permute.xlu0 %1634
      %v1636 = vsel %vm672, %v1629, %v1633
      %v1637 = vsel %vm672, %v1631, %v1635
      %v1638 = vsel %vm672, %v1633, %v1629
      %v1639 = vsel %vm672, %v1635, %v1631
      %v1640 = vmul.f32 %v1636, %v681
      %v1641 = vmul.f32 %v1638, %v685
      %v1642 = vmul.f32 %v1637, %v681
      %v1643 = vmul.f32 %v1639, %v685
      %v1644 = vpack.c.bf16 %v1642, %v1640
      %v1645 = vpack.c.bf16 %v1643, %v1641
      %1646 = vst [vmem:[#allocation2 + $0x230] sm:$0xff] %v1644
      %1647 = vst [vmem:[#allocation2 + $0x238] sm:$0xff] %v1645
      %v1648 = vld [vmem:[%s5] sm:$0xff]
      %v1649 = vld [vmem:[%s5 + $0x8] sm:$0xff]
      %v1650 = vld [vmem:[%s5 + $0x10] sm:$0xf]
      %v1651 = vld [vmem:[%s5 + $0x14] sm:$0xff]
      %v1652 = vld [vmem:[%s5 + $0x1c] sm:$0xff]
      %v1653 = vld [vmem:[%s5 + $0x24] sm:$0xf]
      %v1654 = vld [vmem:[#allocation2] sm:$0xff]
      %v1655 = vld [vmem:[#allocation2 + $0x8] sm:$0xff]
      %v1656 = vld [vmem:[#allocation2 + $0x10] sm:$0xff]
      %v1657 = vld [vmem:[#allocation2 + $0x18] sm:$0xff]
      %v1658 = vld [vmem:[#allocation2 + $0x20] sm:$0xff]
      %v1659 = vld [vmem:[#allocation2 + $0x28] sm:$0xff]
      %v1660 = vld [vmem:[#allocation2 + $0x30] sm:$0xff]
      %v1661 = vld [vmem:[#allocation2 + $0x38] sm:$0xff]
      %v1662 = vld [vmem:[#allocation2 + $0x40] sm:$0xff]
      %v1663 = vld [vmem:[#allocation2 + $0x48] sm:$0xff]
      %v1664 = vld [vmem:[#allocation2 + $0x50] sm:$0xff]
      %v1665 = vld [vmem:[#allocation2 + $0x58] sm:$0xff]
      %v1666 = vld [vmem:[#allocation2 + $0x60] sm:$0xff]
      %v1667 = vld [vmem:[#allocation2 + $0x68] sm:$0xff]
      %v1668 = vld [vmem:[#allocation2 + $0x70] sm:$0xff]
      %v1669 = vld [vmem:[#allocation2 + $0x78] sm:$0xff]
      %v1670 = vld [vmem:[#allocation2 + $0x80] sm:$0xff]
      %v1671 = vld [vmem:[#allocation2 + $0x88] sm:$0xff]
      %v1672 = vld [vmem:[#allocation2 + $0x90] sm:$0xff]
      %v1673 = vld [vmem:[#allocation2 + $0x98] sm:$0xff]
      %v1674 = vld [vmem:[#allocation2 + $0xa0] sm:$0xff]
      %v1675 = vld [vmem:[#allocation2 + $0xa8] sm:$0xff]
      %v1676 = vld [vmem:[#allocation2 + $0xb0] sm:$0xff]
      %v1677 = vld [vmem:[#allocation2 + $0xb8] sm:$0xff]
      %v1678 = vld [vmem:[#allocation2 + $0xc0] sm:$0xff]
      %v1679 = vld [vmem:[#allocation2 + $0xc8] sm:$0xff]
      %v1680 = vld [vmem:[#allocation2 + $0xd0] sm:$0xff]
      %v1681 = vld [vmem:[#allocation2 + $0xd8] sm:$0xff]
      %v1682 = vld [vmem:[#allocation2 + $0xe0] sm:$0xff]
      %v1683 = vld [vmem:[#allocation2 + $0xe8] sm:$0xff]
      %v1684 = vld [vmem:[#allocation2 + $0xf0] sm:$0xff]
      %v1685 = vld [vmem:[#allocation2 + $0xf8] sm:$0xff]
      %v1686 = vld [vmem:[#allocation2 + $0x100] sm:$0xff]
      %v1687 = vld [vmem:[#allocation2 + $0x108] sm:$0xff]
      %v1688 = vld [vmem:[#allocation2 + $0x110] sm:$0xff]
      %v1689 = vld [vmem:[#allocation2 + $0x118] sm:$0xff]
      %v1690 = vld [vmem:[#allocation2 + $0x120] sm:$0xff]
      %v1691 = vld [vmem:[#allocation2 + $0x128] sm:$0xff]
      %v1692 = vld [vmem:[#allocation2 + $0x130] sm:$0xff]
      %v1693 = vld [vmem:[#allocation2 + $0x138] sm:$0xff]
      %v1694 = vld [vmem:[#allocation2 + $0x140] sm:$0xff]
      %v1695 = vld [vmem:[#allocation2 + $0x148] sm:$0xff]
      %v1696 = vld [vmem:[#allocation2 + $0x150] sm:$0xff]
      %v1697 = vld [vmem:[#allocation2 + $0x158] sm:$0xff]
      %v1698 = vld [vmem:[#allocation2 + $0x160] sm:$0xff]
      %v1699 = vld [vmem:[#allocation2 + $0x168] sm:$0xff]
      %v1700 = vld [vmem:[#allocation2 + $0x170] sm:$0xff]
      %v1701 = vld [vmem:[#allocation2 + $0x178] sm:$0xff]
      %v1702 = vld [vmem:[#allocation2 + $0x180] sm:$0xff]
      %v1703 = vld [vmem:[#allocation2 + $0x188] sm:$0xff]
      %v1704 = vld [vmem:[#allocation2 + $0x190] sm:$0xff]
      %v1705 = vld [vmem:[#allocation2 + $0x198] sm:$0xff]
      %v1706 = vld [vmem:[#allocation2 + $0x1a0] sm:$0xff]
      %v1707 = vld [vmem:[#allocation2 + $0x1a8] sm:$0xff]
      %v1708 = vld [vmem:[#allocation2 + $0x1b0] sm:$0xff]
      %v1709 = vld [vmem:[#allocation2 + $0x1b8] sm:$0xff]
      %v1710 = vld [vmem:[#allocation2 + $0x1c0] sm:$0xff]
      %v1711 = vld [vmem:[#allocation2 + $0x1c8] sm:$0xff]
      %v1712 = vld [vmem:[#allocation2 + $0x1d0] sm:$0xff]
      %v1713 = vld [vmem:[#allocation2 + $0x1d8] sm:$0xff]
      %v1714 = vld [vmem:[#allocation2 + $0x1e0] sm:$0xff]
      %v1715 = vld [vmem:[#allocation2 + $0x1e8] sm:$0xff]
      %v1716 = vld [vmem:[#allocation2 + $0x1f0] sm:$0xff]
      %v1717 = vld [vmem:[#allocation2 + $0x1f8] sm:$0xff]
      %v1718 = vld [vmem:[#allocation2 + $0x200] sm:$0xff]
      %v1719 = vld [vmem:[#allocation2 + $0x208] sm:$0xff]
      %v1720 = vld [vmem:[#allocation2 + $0x210] sm:$0xff]
      %v1721 = vld [vmem:[#allocation2 + $0x218] sm:$0xff]
      %v1722 = vld [vmem:[#allocation2 + $0x220] sm:$0xff]
      %v1723 = vld [vmem:[#allocation2 + $0x228] sm:$0xff]
      %v1724 = vld [vmem:[#allocation2 + $0x230] sm:$0xff]
      %v1725 = vld [vmem:[#allocation2 + $0x238] sm:$0xff]
      %v1726 = vld [vmem:[%s10] sm:$0xff]
      %v1727 = vld [vmem:[%s10 + $0x8] sm:$0xff]
      %1729 = vset.pattern.permute.xlu0 0
      %1730 = vperm.xlu0 %1729, %v1726
      %v1731 = vpop.permute.xlu0 %1730
      %1734 = vset.pattern.permute.xlu0 0
      %1735 = vperm.xlu0 %1734, %v1727
      %v1736 = vpop.permute.xlu0 %1735
      %v1744 = vunpack.c.l.b16 %v1648
      %v1745 = vunpack.c.h.b16 %v1648
      %v1746 = vunpack.c.l.b16 %v1649
      %v1747 = vunpack.c.h.b16 %v1649
      %v1748 = vunpack.c.l.b16 %v1650
      %v1749 = vunpack.c.l.b16 %v1651
      %v1750 = vunpack.c.h.b16 %v1651
      %v1751 = vunpack.c.l.b16 %v1652
      %v1752 = vunpack.c.h.b16 %v1652
      %v1753 = vunpack.c.l.b16 %v1653
      %v1754 = vpack.c.b16 %v1749, %v1744
      %v1755 = vpack.c.b16 %v1750, %v1745
      %v1756 = vpack.c.b16 %v1751, %v1746
      %v1757 = vpack.c.b16 %v1752, %v1747
      %v1758 = vpack.c.b16 %v1753, %v1748
      %vm1763 = vcmask 523264
      %v1765 = vsel %vm1763, %v1758, 0
      %1767 = vmatprep.subr.bf16.mxu0 %v1655
      %1768 = vmatpush1.bf16.msra.mxu0 %v1654
      %1769 = vmatprep.subr.bf16.mxu0 %v1657
      %1770 = vmatpush1.bf16.msra.mxu0 %v1656
      %1771 = vmatprep.subr.bf16.mxu0 %v1659
      %1772 = vmatpush1.bf16.msra.mxu0 %v1658
      %1773 = vmatprep.subr.bf16.mxu0 %v1661
      %1774 = vmatpush1.bf16.msra.mxu0 %v1660
      %1775 = vmatprep.subr.bf16.mxu0 %v1663
      %1776 = vmatpush1.bf16.msra.mxu0 %v1662
      %1777 = vmatprep.subr.bf16.mxu0 %v1665
      %1778 = vmatpush1.bf16.msra.mxu0 %v1664
      %1779 = vmatprep.subr.bf16.mxu0 %v1667
      %1780 = vmatpush1.bf16.msra.mxu0 %v1666
      %1781 = vmatprep.subr.bf16.mxu0 %v1669
      %1782 = vmatpush1.bf16.msra.mxu0 %v1668
      %1783 = vmatprep.subr.bf16.mxu0 %v1671
      %1784 = vmatpush1.bf16.msra.mxu0 %v1670
      %1785 = vmatprep.subr.bf16.mxu0 %v1673
      %1786 = vmatpush1.bf16.msra.mxu0 %v1672
      %1787 = vmatprep.subr.bf16.mxu0 %v1675
      %1788 = vmatpush1.bf16.msra.mxu0 %v1674
      %1789 = vmatprep.subr.bf16.mxu0 %v1677
      %1790 = vmatpush1.bf16.msra.mxu0 %v1676
      %1791 = vmatprep.subr.bf16.mxu0 %v1679
      %1792 = vmatpush1.bf16.msra.mxu0 %v1678
      %1793 = vmatprep.subr.bf16.mxu0 %v1681
      %1794 = vmatpush1.bf16.msra.mxu0 %v1680
      %1795 = vmatprep.subr.bf16.mxu0 %v1683
      %1796 = vmatpush1.bf16.msra.mxu0 %v1682
      %1797 = vmatprep.subr.bf16.mxu0 %v1685
      %1798 = vmatpush1.bf16.msra.mxu0 %v1684
      %1799 = vmatprep.mubr.bf16.mxu0 %v1755
      %1800 = vmatmul.mubr.bf16.gmra.mrb[0].mxu0 %v1754
      %v1801 = vpop.f32.mrb[0].mxu0
      %v1802 = vadd.f32 %v1731, %v1801
      %v1803 = vpop.f32.mrb[0].mxu0
      %v1804 = vadd.f32 %v1731, %v1803
      %v1805 = vpop.f32.mrb[0].mxu0
      %v1806 = vadd.f32 %v1736, %v1805
      %v1807 = vpop.f32.mrb[0].mxu0
      %v1808 = vadd.f32 %v1736, %v1807
      %1809 = vdwg.mxu0
      %1810 = vmatprep.subr.bf16.mxu0 %v1687
      %1811 = vmatpush1.bf16.msra.mxu0 %v1686
      %1812 = vmatprep.subr.bf16.mxu0 %v1689
      %1813 = vmatpush1.bf16.msra.mxu0 %v1688
      %1814 = vmatprep.subr.bf16.mxu0 %v1691
      %1815 = vmatpush1.bf16.msra.mxu0 %v1690
      %1816 = vmatprep.subr.bf16.mxu0 %v1693
      %1817 = vmatpush1.bf16.msra.mxu0 %v1692
      %1818 = vmatprep.subr.bf16.mxu0 %v1695
      %1819 = vmatpush1.bf16.msra.mxu0 %v1694
      %1820 = vmatprep.subr.bf16.mxu0 %v1697
      %1821 = vmatpush1.bf16.msra.mxu0 %v1696
      %1822 = vmatprep.subr.bf16.mxu0 %v1699
      %1823 = vmatpush1.bf16.msra.mxu0 %v1698
      %1824 = vmatprep.subr.bf16.mxu0 %v1701
      %1825 = vmatpush1.bf16.msra.mxu0 %v1700
      %1826 = vmatprep.subr.bf16.mxu0 %v1703
      %1827 = vmatpush1.bf16.msra.mxu0 %v1702
      %1828 = vmatprep.subr.bf16.mxu0 %v1705
      %1829 = vmatpush1.bf16.msra.mxu0 %v1704
      %1830 = vmatprep.subr.bf16.mxu0 %v1707
      %1831 = vmatpush1.bf16.msra.mxu0 %v1706
      %1832 = vmatprep.subr.bf16.mxu0 %v1709
      %1833 = vmatpush1.bf16.msra.mxu0 %v1708
      %1834 = vmatprep.subr.bf16.mxu0 %v1711
      %1835 = vmatpush1.bf16.msra.mxu0 %v1710
      %1836 = vmatprep.subr.bf16.mxu0 %v1713
      %1837 = vmatpush1.bf16.msra.mxu0 %v1712
      %1838 = vmatprep.subr.bf16.mxu0 %v1715
      %1839 = vmatpush1.bf16.msra.mxu0 %v1714
      %1840 = vmatprep.subr.bf16.mxu0 %v1717
      %1841 = vmatpush1.bf16.msra.mxu0 %v1716
      %1842 = vmatprep.mubr.bf16.mxu0 %v1757
      %1843 = vmatmul.mubr.bf16.gmra.mrb[0].mxu0 %v1756
      %v1844 = vpop.f32.mrb[0].mxu0
      %v1845 = vadd.f32 %v1802, %v1844
      %v1846 = vpop.f32.mrb[0].mxu0
      %v1847 = vadd.f32 %v1804, %v1846
      %v1848 = vpop.f32.mrb[0].mxu0
      %v1849 = vadd.f32 %v1806, %v1848
      %v1850 = vpop.f32.mrb[0].mxu0
      %v1851 = vadd.f32 %v1808, %v1850
      %1852 = vdwg.mxu0
      %1853 = vmatprep.subr.bf16.mxu0 %v1719
      %1854 = vmatpush1.bf16.msra.mxu0 %v1718
      %1855 = vmatprep.subr.bf16.mxu0 %v1721
      %1856 = vmatpush1.bf16.msra.mxu0 %v1720
      %1857 = vmatprep.subr.bf16.mxu0 %v1723
      %1858 = vmatpush1.bf16.msra.mxu0 %v1722
      %1859 = vmatprep.subr.bf16.mxu0 %v1725
      %1860 = vmatpush1.bf16.msra.mxu0 %v1724
      %1861 = vmatprep.subr.bf16.mxu0 0
      %1862 = vmatpush1.bf16.msra.mxu0 0
      %1863 = vmatprep.subr.bf16.mxu0 0
      %1864 = vmatpush1.bf16.msra.mxu0 0
      %1865 = vmatprep.subr.bf16.mxu0 0
      %1866 = vmatpush1.bf16.msra.mxu0 0
      %1867 = vmatprep.subr.bf16.mxu0 0
      %1868 = vmatpush1.bf16.msra.mxu0 0
      %1869 = vmatprep.subr.bf16.mxu0 0
      %1870 = vmatpush1.bf16.msra.mxu0 0
      %1871 = vmatprep.subr.bf16.mxu0 0
      %1872 = vmatpush1.bf16.msra.mxu0 0
      %1873 = vmatprep.subr.bf16.mxu0 0
      %1874 = vmatpush1.bf16.msra.mxu0 0
      %1875 = vmatprep.subr.bf16.mxu0 0
      %1876 = vmatpush1.bf16.msra.mxu0 0
      %1877 = vmatprep.subr.bf16.mxu0 0
      %1878 = vmatpush1.bf16.msra.mxu0 0
      %1879 = vmatprep.subr.bf16.mxu0 0
      %1880 = vmatpush1.bf16.msra.mxu0 0
      %1881 = vmatprep.subr.bf16.mxu0 0
      %1882 = vmatpush1.bf16.msra.mxu0 0
      %1883 = vmatprep.subr.bf16.mxu0 0
      %1884 = vmatpush1.bf16.msra.mxu0 0
      %1885 = vmatprep.mubr.bf16.mxu0 0
      %1886 = vmatmul.mubr.bf16.gmra.mrb[0].mxu0 %v1765
      %v1887 = vpop.f32.mrb[0].mxu0
      %v1888 = vadd.f32 %v1845, %v1887
      %v1889 = vpop.f32.mrb[0].mxu0
      %v1890 = vadd.f32 %v1847, %v1889
      %v1891 = vpop.f32.mrb[0].mxu0
      %v1892 = vadd.f32 %v1849, %v1891
      %v1893 = vpop.f32.mrb[0].mxu0
      %v1894 = vadd.f32 %v1851, %v1893
      %1895 = vdwg.mxu0
      %vm1896 = vcmp.ge.f32.partialorder %v1888, 0.0
      %vm1897 = vcmp.ge.f32.partialorder %v1890, 0.0
      %vm1898 = vcmp.ge.f32.partialorder %v1892, 0.0
      %vm1899 = vcmp.ge.f32.partialorder %v1894, 0.0
      %v1900 = vmul.f32 %v1888, 0.2
      %v1901 = vmul.f32 %v1890, 0.2
      %v1902 = vmul.f32 %v1892, 0.2
      %v1903 = vmul.f32 %v1894, 0.2
      %v1904 = vsel %vm1896, %v1888, %v1900
      %v1905 = vsel %vm1897, %v1890, %v1901
      %v1906 = vsel %vm1898, %v1892, %v1902
      %v1907 = vsel %vm1899, %v1894, %v1903
      %1908 = vrot.lane.b32.xlu0 %v1904, 17
      %v1909 = vpop.permute.xlu0 %1908
      %1910 = vrot.lane.b32.xlu0 %v1906, 17
      %v1911 = vpop.permute.xlu0 %1910
      %1912 = vrot.lane.b32.xlu0 %v1905, 17
      %v1913 = vpop.permute.xlu0 %1912
      %1914 = vrot.lane.b32.xlu0 %v1907, 17
      %v1915 = vpop.permute.xlu0 %1914
      %v1916 = vsel %vm444, %v1909, %v1913
      %v1917 = vsel %vm444, %v1911, %v1915
      %v1918 = vsel %vm444, %v1913, %v1909
      %v1919 = vsel %vm444, %v1915, %v1911
      %v1920 = vmul.f32 %v1918, %v453
      %v1921 = vmul.f32 %v1916, %v457
      %v1922 = vmul.f32 %v1919, %v453
      %v1923 = vmul.f32 %v1917, %v457
      %v1924 = vpack.c.bf16 %v1922, %v1920
      %v1925 = vpack.c.bf16 %v1923, %v1921
      %1926 = vst [vmem:[#allocation2 + $0x240] sm:$0xff] %v1924
      %1927 = vst [vmem:[#allocation2 + $0x248] sm:$0xff] %v1925
      %1928 = vrot.lane.b32.xlu0 %v1904, 16
      %v1929 = vpop.permute.xlu0 %1928
      %1930 = vrot.lane.b32.xlu0 %v1906, 16
      %v1931 = vpop.permute.xlu0 %1930
      %1932 = vrot.lane.b32.xlu0 %v1905, 16
      %v1933 = vpop.permute.xlu0 %1932
      %1934 = vrot.lane.b32.xlu0 %v1907, 16
      %v1935 = vpop.permute.xlu0 %1934
      %v1936 = vsel %vm476, %v1929, %v1933
      %v1937 = vsel %vm476, %v1931, %v1935
      %v1938 = vsel %vm476, %v1933, %v1929
      %v1939 = vsel %vm476, %v1935, %v1931
      %v1940 = vmul.f32 %v1938, %v485
      %v1941 = vmul.f32 %v1936, %v489
      %v1942 = vmul.f32 %v1939, %v485
      %v1943 = vmul.f32 %v1937, %v489
      %v1944 = vpack.c.bf16 %v1942, %v1940
      %v1945 = vpack.c.bf16 %v1943, %v1941
      %1946 = vst [vmem:[#allocation2 + $0x250] sm:$0xff] %v1944
      %1947 = vst [vmem:[#allocation2 + $0x258] sm:$0xff] %v1945
      %1948 = vrot.lane.b32.xlu0 %v1904, 15
      %v1949 = vpop.permute.xlu0 %1948
      %1950 = vrot.lane.b32.xlu0 %v1906, 15
      %v1951 = vpop.permute.xlu0 %1950
      %1952 = vrot.lane.b32.xlu0 %v1905, 15
      %v1953 = vpop.permute.xlu0 %1952
      %1954 = vrot.lane.b32.xlu0 %v1907, 15
      %v1955 = vpop.permute.xlu0 %1954
      %v1956 = vsel %vm508, %v1949, %v1953
      %v1957 = vsel %vm508, %v1951, %v1955
      %v1958 = vsel %vm508, %v1953, %v1949
      %v1959 = vsel %vm508, %v1955, %v1951
      %v1960 = vmul.f32 %v1958, %v517
      %v1961 = vmul.f32 %v1956, %v521
      %v1962 = vmul.f32 %v1959, %v517
      %v1963 = vmul.f32 %v1957, %v521
      %v1964 = vpack.c.bf16 %v1962, %v1960
      %v1965 = vpack.c.bf16 %v1963, %v1961
      %1966 = vst [vmem:[#allocation2 + $0x260] sm:$0xff] %v1964
      %1967 = vst [vmem:[#allocation2 + $0x268] sm:$0xff] %v1965
      %1968 = vrot.lane.b32.xlu0 %v1904, 1
      %v1969 = vpop.permute.xlu0 %1968
      %1970 = vrot.lane.b32.xlu0 %v1906, 1
      %v1971 = vpop.permute.xlu0 %1970
      %1972 = vrot.lane.b32.xlu0 %v1905, 1
      %v1973 = vpop.permute.xlu0 %1972
      %1974 = vrot.lane.b32.xlu0 %v1907, 1
      %v1975 = vpop.permute.xlu0 %1974
      %v1976 = vsel %vm540, %v1969, %v1973
      %v1977 = vsel %vm540, %v1971, %v1975
      %v1978 = vsel %vm540, %v1973, %v1969
      %v1979 = vsel %vm540, %v1975, %v1971
      %v1980 = vmul.f32 %v1978, %v549
      %v1981 = vmul.f32 %v1976, %v553
      %v1982 = vmul.f32 %v1979, %v549
      %v1983 = vmul.f32 %v1977, %v553
      %v1984 = vpack.c.bf16 %v1982, %v1980
      %v1985 = vpack.c.bf16 %v1983, %v1981
      %1986 = vst [vmem:[#allocation2 + $0x270] sm:$0xff] %v1984
      %1987 = vst [vmem:[#allocation2 + $0x278] sm:$0xff] %v1985
      %v1988 = vpack.c.bf16 %v1906, %v1904
      %v1989 = vpack.c.bf16 %v1907, %v1905
      %1990 = vst [vmem:[#allocation2 + $0x280] sm:$0xff] %v1988
      %1991 = vst [vmem:[#allocation2 + $0x288] sm:$0xff] %v1989
      %1992 = vrot.lane.b32.xlu0 %v1904, 127
      %v1993 = vpop.permute.xlu0 %1992
      %1994 = vrot.lane.b32.xlu0 %v1906, 127
      %v1995 = vpop.permute.xlu0 %1994
      %1996 = vrot.lane.b32.xlu0 %v1905, 127
      %v1997 = vpop.permute.xlu0 %1996
      %1998 = vrot.lane.b32.xlu0 %v1907, 127
      %v1999 = vpop.permute.xlu0 %1998
      %v2000 = vsel %vm576, %v1993, %v1997
      %v2001 = vsel %vm576, %v1995, %v1999
      %v2002 = vsel %vm576, %v1997, %v1993
      %v2003 = vsel %vm576, %v1999, %v1995
      %v2004 = vmul.f32 %v2000, %v585
      %v2005 = vmul.f32 %v2002, %v589
      %v2006 = vmul.f32 %v2001, %v585
      %v2007 = vmul.f32 %v2003, %v589
      %v2008 = vpack.c.bf16 %v2006, %v2004
      %v2009 = vpack.c.bf16 %v2007, %v2005
      %2010 = vst [vmem:[#allocation2 + $0x290] sm:$0xff] %v2008
      %2011 = vst [vmem:[#allocation2 + $0x298] sm:$0xff] %v2009
      %2012 = vrot.lane.b32.xlu0 %v1904, 113
      %v2013 = vpop.permute.xlu0 %2012
      %2014 = vrot.lane.b32.xlu0 %v1906, 113
      %v2015 = vpop.permute.xlu0 %2014
      %2016 = vrot.lane.b32.xlu0 %v1905, 113
      %v2017 = vpop.permute.xlu0 %2016
      %2018 = vrot.lane.b32.xlu0 %v1907, 113
      %v2019 = vpop.permute.xlu0 %2018
      %v2020 = vsel %vm608, %v2013, %v2017
      %v2021 = vsel %vm608, %v2015, %v2019
      %v2022 = vsel %vm608, %v2017, %v2013
      %v2023 = vsel %vm608, %v2019, %v2015
      %v2024 = vmul.f32 %v2020, %v617
      %v2025 = vmul.f32 %v2022, %v621
      %v2026 = vmul.f32 %v2021, %v617
      %v2027 = vmul.f32 %v2023, %v621
      %v2028 = vpack.c.bf16 %v2026, %v2024
      %v2029 = vpack.c.bf16 %v2027, %v2025
      %2030 = vst [vmem:[#allocation2 + $0x2a0] sm:$0xff] %v2028
      %2031 = vst [vmem:[#allocation2 + $0x2a8] sm:$0xff] %v2029
      %2032 = vrot.lane.b32.xlu0 %v1904, 112
      %v2033 = vpop.permute.xlu0 %2032
      %2034 = vrot.lane.b32.xlu0 %v1906, 112
      %v2035 = vpop.permute.xlu0 %2034
      %2036 = vrot.lane.b32.xlu0 %v1905, 112
      %v2037 = vpop.permute.xlu0 %2036
      %2038 = vrot.lane.b32.xlu0 %v1907, 112
      %v2039 = vpop.permute.xlu0 %2038
      %v2040 = vsel %vm640, %v2033, %v2037
      %v2041 = vsel %vm640, %v2035, %v2039
      %v2042 = vsel %vm640, %v2037, %v2033
      %v2043 = vsel %vm640, %v2039, %v2035
      %v2044 = vmul.f32 %v2040, %v649
      %v2045 = vmul.f32 %v2042, %v653
      %v2046 = vmul.f32 %v2041, %v649
      %v2047 = vmul.f32 %v2043, %v653
      %v2048 = vpack.c.bf16 %v2046, %v2044
      %v2049 = vpack.c.bf16 %v2047, %v2045
      %2050 = vst [vmem:[#allocation2 + $0x2b0] sm:$0xff] %v2048
      %2051 = vst [vmem:[#allocation2 + $0x2b8] sm:$0xff] %v2049
      %2052 = vrot.lane.b32.xlu0 %v1904, 111
      %v2053 = vpop.permute.xlu0 %2052
      %2054 = vrot.lane.b32.xlu0 %v1906, 111
      %v2055 = vpop.permute.xlu0 %2054
      %2056 = vrot.lane.b32.xlu0 %v1905, 111
      %v2057 = vpop.permute.xlu0 %2056
      %2058 = vrot.lane.b32.xlu0 %v1907, 111
      %v2059 = vpop.permute.xlu0 %2058
      %v2060 = vsel %vm672, %v2053, %v2057
      %v2061 = vsel %vm672, %v2055, %v2059
      %v2062 = vsel %vm672, %v2057, %v2053
      %v2063 = vsel %vm672, %v2059, %v2055
      %v2064 = vmul.f32 %v2060, %v681
      %v2065 = vmul.f32 %v2062, %v685
      %v2066 = vmul.f32 %v2061, %v681
      %v2067 = vmul.f32 %v2063, %v685
      %v2068 = vpack.c.bf16 %v2066, %v2064
      %v2069 = vpack.c.bf16 %v2067, %v2065
      %2070 = vst [vmem:[#allocation2 + $0x2c0] sm:$0xff] %v2068
      %2071 = vst [vmem:[#allocation2 + $0x2c8] sm:$0xff] %v2069
      %v2072 = vld [vmem:[%s6] sm:$0xff]
      %v2073 = vld [vmem:[%s6 + $0x8] sm:$0xff]
      %v2074 = vld [vmem:[%s6 + $0x10] sm:$0xff]
      %v2075 = vld [vmem:[%s6 + $0x18] sm:$0xff]
      %v2076 = vld [vmem:[%s6 + $0x20] sm:$0xff]
      %v2077 = vld [vmem:[%s6 + $0x28] sm:$0xff]
      %v2078 = vld [vmem:[#allocation2] sm:$0xff]
      %v2079 = vld [vmem:[#allocation2 + $0x8] sm:$0xff]
      %v2080 = vld [vmem:[#allocation2 + $0x10] sm:$0xff]
      %v2081 = vld [vmem:[#allocation2 + $0x18] sm:$0xff]
      %v2082 = vld [vmem:[#allocation2 + $0x20] sm:$0xff]
      %v2083 = vld [vmem:[#allocation2 + $0x28] sm:$0xff]
      %v2084 = vld [vmem:[#allocation2 + $0x30] sm:$0xff]
      %v2085 = vld [vmem:[#allocation2 + $0x38] sm:$0xff]
      %v2086 = vld [vmem:[#allocation2 + $0x40] sm:$0xff]
      %v2087 = vld [vmem:[#allocation2 + $0x48] sm:$0xff]
      %v2088 = vld [vmem:[#allocation2 + $0x50] sm:$0xff]
      %v2089 = vld [vmem:[#allocation2 + $0x58] sm:$0xff]
      %v2090 = vld [vmem:[#allocation2 + $0x60] sm:$0xff]
      %v2091 = vld [vmem:[#allocation2 + $0x68] sm:$0xff]
      %v2092 = vld [vmem:[#allocation2 + $0x70] sm:$0xff]
      %v2093 = vld [vmem:[#allocation2 + $0x78] sm:$0xff]
      %v2094 = vld [vmem:[#allocation2 + $0x80] sm:$0xff]
      %v2095 = vld [vmem:[#allocation2 + $0x88] sm:$0xff]
      %v2096 = vld [vmem:[#allocation2 + $0x90] sm:$0xff]
      %v2097 = vld [vmem:[#allocation2 + $0x98] sm:$0xff]
      %v2098 = vld [vmem:[#allocation2 + $0xa0] sm:$0xff]
      %v2099 = vld [vmem:[#allocation2 + $0xa8] sm:$0xff]
      %v2100 = vld [vmem:[#allocation2 + $0xb0] sm:$0xff]
      %v2101 = vld [vmem:[#allocation2 + $0xb8] sm:$0xff]
      %v2102 = vld [vmem:[#allocation2 + $0xc0] sm:$0xff]
      %v2103 = vld [vmem:[#allocation2 + $0xc8] sm:$0xff]
      %v2104 = vld [vmem:[#allocation2 + $0xd0] sm:$0xff]
      %v2105 = vld [vmem:[#allocation2 + $0xd8] sm:$0xff]
      %v2106 = vld [vmem:[#allocation2 + $0xe0] sm:$0xff]
      %v2107 = vld [vmem:[#allocation2 + $0xe8] sm:$0xff]
      %v2108 = vld [vmem:[#allocation2 + $0xf0] sm:$0xff]
      %v2109 = vld [vmem:[#allocation2 + $0xf8] sm:$0xff]
      %v2110 = vld [vmem:[#allocation2 + $0x100] sm:$0xff]
      %v2111 = vld [vmem:[#allocation2 + $0x108] sm:$0xff]
      %v2112 = vld [vmem:[#allocation2 + $0x110] sm:$0xff]
      %v2113 = vld [vmem:[#allocation2 + $0x118] sm:$0xff]
      %v2114 = vld [vmem:[#allocation2 + $0x120] sm:$0xff]
      %v2115 = vld [vmem:[#allocation2 + $0x128] sm:$0xff]
      %v2116 = vld [vmem:[#allocation2 + $0x130] sm:$0xff]
      %v2117 = vld [vmem:[#allocation2 + $0x138] sm:$0xff]
      %v2118 = vld [vmem:[#allocation2 + $0x140] sm:$0xff]
      %v2119 = vld [vmem:[#allocation2 + $0x148] sm:$0xff]
      %v2120 = vld [vmem:[#allocation2 + $0x150] sm:$0xff]
      %v2121 = vld [vmem:[#allocation2 + $0x158] sm:$0xff]
      %v2122 = vld [vmem:[#allocation2 + $0x160] sm:$0xff]
      %v2123 = vld [vmem:[#allocation2 + $0x168] sm:$0xff]
      %v2124 = vld [vmem:[#allocation2 + $0x170] sm:$0xff]
      %v2125 = vld [vmem:[#allocation2 + $0x178] sm:$0xff]
      %v2126 = vld [vmem:[#allocation2 + $0x180] sm:$0xff]
      %v2127 = vld [vmem:[#allocation2 + $0x188] sm:$0xff]
      %v2128 = vld [vmem:[#allocation2 + $0x190] sm:$0xff]
      %v2129 = vld [vmem:[#allocation2 + $0x198] sm:$0xff]
      %v2130 = vld [vmem:[#allocation2 + $0x1a0] sm:$0xff]
      %v2131 = vld [vmem:[#allocation2 + $0x1a8] sm:$0xff]
      %v2132 = vld [vmem:[#allocation2 + $0x1b0] sm:$0xff]
      %v2133 = vld [vmem:[#allocation2 + $0x1b8] sm:$0xff]
      %v2134 = vld [vmem:[#allocation2 + $0x1c0] sm:$0xff]
      %v2135 = vld [vmem:[#allocation2 + $0x1c8] sm:$0xff]
      %v2136 = vld [vmem:[#allocation2 + $0x1d0] sm:$0xff]
      %v2137 = vld [vmem:[#allocation2 + $0x1d8] sm:$0xff]
      %v2138 = vld [vmem:[#allocation2 + $0x1e0] sm:$0xff]
      %v2139 = vld [vmem:[#allocation2 + $0x1e8] sm:$0xff]
      %v2140 = vld [vmem:[#allocation2 + $0x1f0] sm:$0xff]
      %v2141 = vld [vmem:[#allocation2 + $0x1f8] sm:$0xff]
      %v2142 = vld [vmem:[#allocation2 + $0x200] sm:$0xff]
      %v2143 = vld [vmem:[#allocation2 + $0x208] sm:$0xff]
      %v2144 = vld [vmem:[#allocation2 + $0x210] sm:$0xff]
      %v2145 = vld [vmem:[#allocation2 + $0x218] sm:$0xff]
      %v2146 = vld [vmem:[#allocation2 + $0x220] sm:$0xff]
      %v2147 = vld [vmem:[#allocation2 + $0x228] sm:$0xff]
      %v2148 = vld [vmem:[#allocation2 + $0x230] sm:$0xff]
      %v2149 = vld [vmem:[#allocation2 + $0x238] sm:$0xff]
      %v2150 = vld [vmem:[#allocation2 + $0x240] sm:$0xff]
      %v2151 = vld [vmem:[#allocation2 + $0x248] sm:$0xff]
      %v2152 = vld [vmem:[#allocation2 + $0x250] sm:$0xff]
      %v2153 = vld [vmem:[#allocation2 + $0x258] sm:$0xff]
      %v2154 = vld [vmem:[#allocation2 + $0x260] sm:$0xff]
      %v2155 = vld [vmem:[#allocation2 + $0x268] sm:$0xff]
      %v2156 = vld [vmem:[#allocation2 + $0x270] sm:$0xff]
      %v2157 = vld [vmem:[#allocation2 + $0x278] sm:$0xff]
      %v2158 = vld [vmem:[#allocation2 + $0x280] sm:$0xff]
      %v2159 = vld [vmem:[#allocation2 + $0x288] sm:$0xff]
      %v2160 = vld [vmem:[#allocation2 + $0x290] sm:$0xff]
      %v2161 = vld [vmem:[#allocation2 + $0x298] sm:$0xff]
      %v2162 = vld [vmem:[#allocation2 + $0x2a0] sm:$0xff]
      %v2163 = vld [vmem:[#allocation2 + $0x2a8] sm:$0xff]
      %v2164 = vld [vmem:[#allocation2 + $0x2b0] sm:$0xff]
      %v2165 = vld [vmem:[#allocation2 + $0x2b8] sm:$0xff]
      %v2166 = vld [vmem:[#allocation2 + $0x2c0] sm:$0xff]
      %v2167 = vld [vmem:[#allocation2 + $0x2c8] sm:$0xff]
      %v2168 = vld [vmem:[%s11] sm:$0xff]
      %v2169 = vld [vmem:[%s11 + $0x8] sm:$0xff]
      %2171 = vset.pattern.permute.xlu0 0
      %2172 = vperm.xlu0 %2171, %v2168
      %v2173 = vpop.permute.xlu0 %2172
      %2176 = vset.pattern.permute.xlu0 0
      %2177 = vperm.xlu0 %2176, %v2169
      %v2178 = vpop.permute.xlu0 %2177
      %v2186 = vunpack.c.l.b16 %v2072
      %v2187 = vunpack.c.h.b16 %v2072
      %v2188 = vunpack.c.l.b16 %v2073
      %v2189 = vunpack.c.h.b16 %v2073
      %v2190 = vunpack.c.l.b16 %v2074
      %v2191 = vunpack.c.h.b16 %v2074
      %v2192 = vunpack.c.l.b16 %v2075
      %v2193 = vunpack.c.h.b16 %v2075
      %v2194 = vunpack.c.l.b16 %v2076
      %v2195 = vunpack.c.h.b16 %v2076
      %v2196 = vunpack.c.l.b16 %v2077
      %v2197 = vunpack.c.h.b16 %v2077
      %v2198 = vpack.c.b16 %v2192, %v2186
      %v2199 = vpack.c.b16 %v2193, %v2187
      %v2200 = vpack.c.b16 %v2194, %v2188
      %v2201 = vpack.c.b16 %v2195, %v2189
      %v2202 = vpack.c.b16 %v2196, %v2190
      %v2203 = vpack.c.b16 %v2197, %v2191
      %vm2209 = vcmask 654336
      %v2211 = vsel %vm2209, %v2203, 0
      %2213 = vmatprep.subr.bf16.mxu0 %v2079
      %2214 = vmatpush1.bf16.msra.mxu0 %v2078
      %2215 = vmatprep.subr.bf16.mxu0 %v2081
      %2216 = vmatpush1.bf16.msra.mxu0 %v2080
      %2217 = vmatprep.subr.bf16.mxu0 %v2083
      %2218 = vmatpush1.bf16.msra.mxu0 %v2082
      %2219 = vmatprep.subr.bf16.mxu0 %v2085
      %2220 = vmatpush1.bf16.msra.mxu0 %v2084
      %2221 = vmatprep.subr.bf16.mxu0 %v2087
      %2222 = vmatpush1.bf16.msra.mxu0 %v2086
      %2223 = vmatprep.subr.bf16.mxu0 %v2089
      %2224 = vmatpush1.bf16.msra.mxu0 %v2088
      %2225 = vmatprep.subr.bf16.mxu0 %v2091
      %2226 = vmatpush1.bf16.msra.mxu0 %v2090
      %2227 = vmatprep.subr.bf16.mxu0 %v2093
      %2228 = vmatpush1.bf16.msra.mxu0 %v2092
      %2229 = vmatprep.subr.bf16.mxu0 %v2095
      %2230 = vmatpush1.bf16.msra.mxu0 %v2094
      %2231 = vmatprep.subr.bf16.mxu0 %v2097
      %2232 = vmatpush1.bf16.msra.mxu0 %v2096
      %2233 = vmatprep.subr.bf16.mxu0 %v2099
      %2234 = vmatpush1.bf16.msra.mxu0 %v2098
      %2235 = vmatprep.subr.bf16.mxu0 %v2101
      %2236 = vmatpush1.bf16.msra.mxu0 %v2100
      %2237 = vmatprep.subr.bf16.mxu0 %v2103
      %2238 = vmatpush1.bf16.msra.mxu0 %v2102
      %2239 = vmatprep.subr.bf16.mxu0 %v2105
      %2240 = vmatpush1.bf16.msra.mxu0 %v2104
      %2241 = vmatprep.subr.bf16.mxu0 %v2107
      %2242 = vmatpush1.bf16.msra.mxu0 %v2106
      %2243 = vmatprep.subr.bf16.mxu0 %v2109
      %2244 = vmatpush1.bf16.msra.mxu0 %v2108
      %2245 = vmatprep.mubr.bf16.mxu0 %v2199
      %2246 = vmatmul.mubr.bf16.gmra.mrb[0].mxu0 %v2198
      %v2247 = vpop.f32.mrb[0].mxu0
      %v2248 = vadd.f32 %v2173, %v2247
      %v2249 = vpop.f32.mrb[0].mxu0
      %v2250 = vadd.f32 %v2173, %v2249
      %v2251 = vpop.f32.mrb[0].mxu0
      %v2252 = vadd.f32 %v2178, %v2251
      %v2253 = vpop.f32.mrb[0].mxu0
      %v2254 = vadd.f32 %v2178, %v2253
      %2255 = vdwg.mxu0
      %2256 = vmatprep.subr.bf16.mxu0 %v2111
      %2257 = vmatpush1.bf16.msra.mxu0 %v2110
      %2258 = vmatprep.subr.bf16.mxu0 %v2113
      %2259 = vmatpush1.bf16.msra.mxu0 %v2112
      %2260 = vmatprep.subr.bf16.mxu0 %v2115
      %2261 = vmatpush1.bf16.msra.mxu0 %v2114
      %2262 = vmatprep.subr.bf16.mxu0 %v2117
      %2263 = vmatpush1.bf16.msra.mxu0 %v2116
      %2264 = vmatprep.subr.bf16.mxu0 %v2119
      %2265 = vmatpush1.bf16.msra.mxu0 %v2118
      %2266 = vmatprep.subr.bf16.mxu0 %v2121
      %2267 = vmatpush1.bf16.msra.mxu0 %v2120
      %2268 = vmatprep.subr.bf16.mxu0 %v2123
      %2269 = vmatpush1.bf16.msra.mxu0 %v2122
      %2270 = vmatprep.subr.bf16.mxu0 %v2125
      %2271 = vmatpush1.bf16.msra.mxu0 %v2124
      %2272 = vmatprep.subr.bf16.mxu0 %v2127
      %2273 = vmatpush1.bf16.msra.mxu0 %v2126
      %2274 = vmatprep.subr.bf16.mxu0 %v2129
      %2275 = vmatpush1.bf16.msra.mxu0 %v2128
      %2276 = vmatprep.subr.bf16.mxu0 %v2131
      %2277 = vmatpush1.bf16.msra.mxu0 %v2130
      %2278 = vmatprep.subr.bf16.mxu0 %v2133
      %2279 = vmatpush1.bf16.msra.mxu0 %v2132
      %2280 = vmatprep.subr.bf16.mxu0 %v2135
      %2281 = vmatpush1.bf16.msra.mxu0 %v2134
      %2282 = vmatprep.subr.bf16.mxu0 %v2137
      %2283 = vmatpush1.bf16.msra.mxu0 %v2136
      %2284 = vmatprep.subr.bf16.mxu0 %v2139
      %2285 = vmatpush1.bf16.msra.mxu0 %v2138
      %2286 = vmatprep.subr.bf16.mxu0 %v2141
      %2287 = vmatpush1.bf16.msra.mxu0 %v2140
      %2288 = vmatprep.mubr.bf16.mxu0 %v2201
      %2289 = vmatmul.mubr.bf16.gmra.mrb[0].mxu0 %v2200
      %v2290 = vpop.f32.mrb[0].mxu0
      %v2291 = vadd.f32 %v2248, %v2290
      %v2292 = vpop.f32.mrb[0].mxu0
      %v2293 = vadd.f32 %v2250, %v2292
      %v2294 = vpop.f32.mrb[0].mxu0
      %v2295 = vadd.f32 %v2252, %v2294
      %v2296 = vpop.f32.mrb[0].mxu0
      %v2297 = vadd.f32 %v2254, %v2296
      %2298 = vdwg.mxu0
      %2299 = vmatprep.subr.bf16.mxu0 %v2143
      %2300 = vmatpush1.bf16.msra.mxu0 %v2142
      %2301 = vmatprep.subr.bf16.mxu0 %v2145
      %2302 = vmatpush1.bf16.msra.mxu0 %v2144
      %2303 = vmatprep.subr.bf16.mxu0 %v2147
      %2304 = vmatpush1.bf16.msra.mxu0 %v2146
      %2305 = vmatprep.subr.bf16.mxu0 %v2149
      %2306 = vmatpush1.bf16.msra.mxu0 %v2148
      %2307 = vmatprep.subr.bf16.mxu0 %v2151
      %2308 = vmatpush1.bf16.msra.mxu0 %v2150
      %2309 = vmatprep.subr.bf16.mxu0 %v2153
      %2310 = vmatpush1.bf16.msra.mxu0 %v2152
      %2311 = vmatprep.subr.bf16.mxu0 %v2155
      %2312 = vmatpush1.bf16.msra.mxu0 %v2154
      %2313 = vmatprep.subr.bf16.mxu0 %v2157
      %2314 = vmatpush1.bf16.msra.mxu0 %v2156
      %2315 = vmatprep.subr.bf16.mxu0 %v2159
      %2316 = vmatpush1.bf16.msra.mxu0 %v2158
      %2317 = vmatprep.subr.bf16.mxu0 %v2161
      %2318 = vmatpush1.bf16.msra.mxu0 %v2160
      %2319 = vmatprep.subr.bf16.mxu0 %v2163
      %2320 = vmatpush1.bf16.msra.mxu0 %v2162
      %2321 = vmatprep.subr.bf16.mxu0 %v2165
      %2322 = vmatpush1.bf16.msra.mxu0 %v2164
      %2323 = vmatprep.subr.bf16.mxu0 %v2167
      %2324 = vmatpush1.bf16.msra.mxu0 %v2166
      %2325 = vmatprep.subr.bf16.mxu0 0
      %2326 = vmatpush1.bf16.msra.mxu0 0
      %2327 = vmatprep.subr.bf16.mxu0 0
      %2328 = vmatpush1.bf16.msra.mxu0 0
      %2329 = vmatprep.subr.bf16.mxu0 0
      %2330 = vmatpush1.bf16.msra.mxu0 0
      %2331 = vmatprep.mubr.bf16.mxu0 %v2211
      %2332 = vmatmul.mubr.bf16.gmra.mrb[0].mxu0 %v2202
      %v2333 = vpop.f32.mrb[0].mxu0
      %v2334 = vadd.f32 %v2291, %v2333
      %v2335 = vpop.f32.mrb[0].mxu0
      %v2336 = vadd.f32 %v2293, %v2335
      %v2337 = vpop.f32.mrb[0].mxu0
      %v2338 = vadd.f32 %v2295, %v2337
      %v2339 = vpop.f32.mrb[0].mxu0
      %v2340 = vadd.f32 %v2297, %v2339
      %2341 = vdwg.mxu0
      %v2342 = vmul.f32 %v2334, 0.2
      %v2343 = vmul.f32 %v2336, 0.2
      %v2344 = vmul.f32 %v2338, 0.2
      %v2345 = vmul.f32 %v2340, 0.2
      %v2346 = vadd.f32 %v2342, %v430
      %v2347 = vadd.f32 %v2343, %v431
      %v2348 = vadd.f32 %v2344, %v432
      %v2349 = vadd.f32 %v2345, %v433
      %2350 = vst [vmem:[%s413] sm:$0xff] %v2346
      %2351 = vst [vmem:[%s413 + $0x8] sm:$0xff] %v2347
      %2352 = vst [vmem:[%s413 + $0x10] sm:$0xff] %v2348
      %2353 = vst [vmem:[%s413 + $0x18] sm:$0xff] %v2349
      %p2354 = scmp.lt.s32.totalorder %s23, 1
      %s2355 = scalar_select %p2354, %s23, 1
      %s2356 = smul.addr %s2355, 4
      %s2357 = smul.addr %s2356, 8
      %s2358 = scalar_lea.vmem %s12, %s2357
      // Predicated region
      $region69: #{rdb5c_forward.1} parent=67 // pred_check
        %p2359 = pneg %p298
      $region70: #{rdb5c_forward.1} parent=67 // pred_check_branch
        %2361 = sbr.rel (%p2359) target = $region72
      $region71: #{rdb5c_forward.1} parent=67 // pred_region
        _
      $region72: #{rdb5c_forward.1} parent=67 // pred_fallthru
        _
    $region68: #{rdb5c_forward.1} parent=5 // pred_fallthru
      _
    %p2362 = scmp.le.s32.totalorder 2, %s18
    // Predicated region
    $region73: #{rdb5c_forward.1} parent=5 // pred_check
      %p2363 = pneg %p2362
    $region74: #{rdb5c_forward.1} parent=5 // pred_check_branch
      %2365 = sbr.rel (%p2363) target = $region76
    $region75: #{rdb5c_forward.1} parent=5 // pred_region
      %s2366 = ssub.s32 %s18, 2
      // Predicated region
      $region77: #{rdb5c_forward.1} parent=75 // pred_check
        %p2367 = pneg %p304
      $region78: #{rdb5c_forward.1} parent=75 // pred_check_branch
        %2369 = sbr.rel (%p2367) target = $region80
      $region79: #{rdb5c_forward.1} parent=75 // pred_region
        %p2370 = scmp.lt.s32.totalorder %s24, 1
        %s2371 = scalar_select %p2370, %s24, 1
        %s2372 = smul.addr %s2371, 4
        %s2373 = smul.addr %s2372, 8
        %s2374 = scalar_lea.vmem %s12, %s2373
      $region80: #{rdb5c_forward.1} parent=75 // pred_fallthru
        _
    $region76: #{rdb5c_forward.1} parent=5 // pred_fallthru
      _
  $region6: #{rdb5c_forward.1} parent=0 // loop_footer
    %s22 = sadd.s32 1, %s18
  $region7: #{rdb5c_forward.1} parent=0 // loop_footer_branch
    %17 = sbr.rel target = $region3
  $region8: #{rdb5c_forward.1} parent=0 // loop_exit
    _

</llo_original>
